<compile_context>
chip_gen: v6e
topology: v6e:2x2x1
jax: 0.10.0
libtpu: 0.0.40
codegen_flags: <defaults>
</compile_context>

<pallas_src>
import jax
import jax.numpy as jnp
import numpy as np
from jax.experimental import pallas as pl
from jax.experimental.pallas import tpu as pltpu


# ----------------------------------------------------------------------------
# Wrapper: single pallas_call for the whole forward pass
# ----------------------------------------------------------------------------
@jax.jit
def cnf_aag_encoder_forward(params, lit_labels, clause_labels,
                            adj_lc, aag_ft, aag_bt):
  """Mirrors CnfAagEncoder.forward; literals arrive/leave in interleaved order."""
  bf16, f32 = jnp.bfloat16, jnp.float32
  max_iters, in_half, cemb = params["w1a"].shape
  vemb = params["w2c"].shape[2]
  clabel = clause_labels.shape[1]
  n_lits = lit_labels.shape[0]
  n_vars = n_lits // 2
  n_clauses = clause_labels.shape[0]

  # ---------------- one-time host prep (outside the kernel) ----------------
  # De-interleave literal rows: new row k <- old 2k (pos), new n_vars+k <- 2k+1.
  perm = jnp.concatenate([jnp.arange(0, n_lits, 2), jnp.arange(1, n_lits, 2)])
  inv_perm = jnp.argsort(perm)
  lit_d = lit_labels[perm]
  adj_lc_d = adj_lc[perm]                       # literal rows permuted
  aag_ft_d = aag_ft[perm][:, perm]              # rows & cols are literals
  aag_bt_d = aag_bt[perm][:, perm]

  # Fold the mean-reducer reciprocal degrees into the adjacency rows; bf16.
  rdeg_lc = 1.0 / jnp.maximum(jnp.sum(adj_lc_d, axis=1, keepdims=True), 1.0)
  rdeg_f = 1.0 / jnp.maximum(jnp.sum(aag_ft_d, axis=1, keepdims=True), 1.0)
  rdeg_b = 1.0 / jnp.maximum(jnp.sum(aag_bt_d, axis=1, keepdims=True), 1.0)
  adj_mean = (adj_lc_d * rdeg_lc).astype(bf16)  # clause -> literal (mean)
  adj_sum = adj_lc_d.T.astype(bf16)             # literal -> clause (sum)
  aag_f = (aag_ft_d * rdeg_f).astype(bf16)
  aag_b = (aag_bt_d * rdeg_b).astype(bf16)

  pad = in_half - lit_labels.shape[1]
  lit_pad = jnp.pad(lit_d, ((0, 0), (0, pad))) if pad else lit_d    # f32 seed
  cl_bf = clause_labels.astype(bf16)

  wts = {k: params[k].astype(bf16)
         for k in ("w1a", "w1b", "w2c", "w2l", "wfa", "wfb", "wba", "wbb")}
  bias = {k: params[k] for k in ("b1", "b2", "bf", "bb")}      # biases stay f32

  # ------------------------------ the kernel -------------------------------
  def kernel(lit_ref, cl_ref, adj_sum_ref, adj_mean_ref, aag_f_ref, aag_b_ref,
             w1a_ref, w1b_ref, b1_ref, w2c_ref, w2l_ref, b2_ref,
             wfa_ref, wfb_ref, bf_ref, wba_ref, wbb_ref, bb_ref,
             out_ref, emb_ref):
    it = pl.program_id(0)
    last = pl.num_programs(0) - 1

    @pl.when(it == 0)
    def _seed():
      emb_ref[...] = lit_ref[...]

    def half_swap(h):
      # de-interleaved layout: pair swap == swap the two static row halves
      return jnp.concatenate([h[n_vars:, :], h[:n_vars, :]], axis=0)

    x = emb_ref[...]                                   # f32 (n_lits, in_half)
    xb = x.astype(bf16)
    xsb = half_swap(x).astype(bf16)                    # w1b[0]==0 -> exact

    # ------------------------------ CNF layer ------------------------------
    wh = (jnp.dot(xb, w1a_ref[...], preferred_element_type=f32)
          + jnp.dot(xsb, w1b_ref[...], preferred_element_type=f32)
          + b1_ref[...])
    c_act = jnp.maximum(
        jnp.dot(adj_sum_ref[...], wh.astype(bf16),
                preferred_element_type=f32), 0.0)      # (n_clauses, cemb)
    wh2 = (jnp.dot(c_act.astype(bf16), w2c_ref[...], preferred_element_type=f32)
           + jnp.dot(cl_ref[...], w2l_ref[...], preferred_element_type=f32)
           + b2_ref[...])
    pre_cnf = jnp.maximum(
        jnp.dot(adj_mean_ref[...], wh2.astype(bf16),
                preferred_element_type=f32), 0.0)      # (n_lits, vemb)

    # --------- tie_literals via split weights (no lane concat) + AAG --------
    pcb = pre_cnf.astype(bf16)
    pcsb = half_swap(pre_cnf).astype(bf16)
    wh_f = (jnp.dot(pcb, wfa_ref[...], preferred_element_type=f32)
            + jnp.dot(pcsb, wfb_ref[...], preferred_element_type=f32)
            + bf_ref[...])
    wh_b = (jnp.dot(pcb, wba_ref[...], preferred_element_type=f32)
            + jnp.dot(pcsb, wbb_ref[...], preferred_element_type=f32)
            + bb_ref[...])
    pre_aag = jnp.maximum(
        jnp.dot(aag_f_ref[...], wh_f.astype(bf16), preferred_element_type=f32)
        + jnp.dot(aag_b_ref[...], wh_b.astype(bf16), preferred_element_type=f32),
        0.0)                                           # (n_lits, vemb)

    # carry only pre_aag; swapped half is re-formed next iteration
    if in_half == vemb:                                # static branch
      emb_ref[...] = pre_aag
    else:
      emb_ref[:, 0:vemb] = pre_aag
      @pl.when(it == 0)                                # pad cols never change
      def _clear_pad():
        emb_ref[:, vemb:in_half] = jnp.zeros((n_lits, in_half - vemb), f32)

    @pl.when(it == last)
    def _emit():
      out_ref[:, 0:vemb] = pre_aag                     # lane-dense half stores
      out_ref[:, vemb:2 * vemb] = half_swap(pre_aag)

  # ------------------------------ specs ------------------------------------
  def rep(shape):                      # graph constants: same block every step
    return pl.BlockSpec(shape, lambda i: (0,) * len(shape))

  def per_iter(shape):                 # stacked weights: slice per iteration
    return pl.BlockSpec((None,) + shape, lambda i: (i,) + (0,) * len(shape))

  grid_spec = pltpu.PrefetchScalarGridSpec(
      num_scalar_prefetch=0,
      grid=(max_iters,),
      in_specs=[
          rep((n_lits, in_half)),            # de-interleaved padded lit labels
          rep((n_clauses, clabel)),          # clause labels (bf16)
          rep((n_clauses, n_lits)),          # literal->clause sum adjacency
          rep((n_lits, n_clauses)),          # clause->literal mean adjacency
          rep((n_lits, n_lits)),             # AAG forward mean adjacency
          rep((n_lits, n_lits)),             # AAG backward mean adjacency
          per_iter((in_half, cemb)),         # w1 (origin half, padded)
          per_iter((in_half, cemb)),         # w1 (swapped half, padded)
          per_iter((1, cemb)),               # b1
          per_iter((cemb, vemb)),            # w2 (clause-emb part)
          per_iter((clabel, vemb)),          # w2 (clause-label part)
          per_iter((1, vemb)),               # b2
          per_iter((vemb, vemb)),            # wf (origin half)
          per_iter((vemb, vemb)),            # wf (swapped half)
          per_iter((1, vemb)),               # bf
          per_iter((vemb, vemb)),            # wb (origin half)
          per_iter((vemb, vemb)),            # wb (swapped half)
          per_iter((1, vemb)),               # bb
      ],
      out_specs=pl.BlockSpec((n_lits, 2 * vemb), lambda i: (0, 0)),
      scratch_shapes=[pltpu.VMEM((n_lits, in_half), jnp.float32)],
  )

  # --------------------- VMEM limit + cost estimate ------------------------
  const_bytes = (n_lits * in_half * 4 + n_clauses * clabel * 2
                 + n_clauses * n_lits * 2 + n_lits * n_clauses * 2
                 + 2 * n_lits * n_lits * 2)
  w_iter_bytes = (2 * in_half * cemb * 2 + cemb * vemb * 2 + clabel * vemb * 2
                  + 4 * vemb * vemb * 2 + (cemb + 3 * vemb) * 4)
  out_bytes = n_lits * 2 * vemb * 4
  scratch_bytes = n_lits * in_half * 4
  resident = 2 * (const_bytes + w_iter_bytes + out_bytes) + scratch_bytes
  vmem_limit = int(min(64 * 1024 * 1024,
                       max(32 * 1024 * 1024, resident + (8 << 20))))

  flops_iter = (2 * n_lits * in_half * cemb * 2
                + 2 * n_clauses * n_lits * cemb
                + 2 * n_clauses * (cemb + clabel) * vemb
                + 2 * n_lits * n_clauses * vemb
                + 4 * 2 * n_lits * vemb * vemb
                + 2 * 2 * n_lits * n_lits * vemb)
  cost = pl.CostEstimate(
      flops=int(max_iters * flops_iter), transcendentals=0,
      bytes_accessed=int(const_bytes + max_iters * w_iter_bytes + out_bytes))

  out_d = pl.pallas_call(
      kernel,
      out_shape=jax.ShapeDtypeStruct((n_lits, 2 * vemb), jnp.float32),
      grid_spec=grid_spec,
      compiler_params=pltpu.CompilerParams(
          dimension_semantics=("arbitrary",),       # sequential, state in VMEM
          vmem_limit_bytes=vmem_limit),
      cost_estimate=cost,
  )(lit_pad, cl_bf, adj_sum, adj_mean, aag_f, aag_b,
    wts["w1a"], wts["w1b"], bias["b1"], wts["w2c"], wts["w2l"], bias["b2"],
    wts["wfa"], wts["wfb"], bias["bf"], wts["wba"], wts["wbb"], bias["bb"])

  return out_d[inv_perm]                          # back to interleaved order


# ----------------------------------------------------------------------------
# Parameter construction (stacked along the iteration axis, split halves)
# ----------------------------------------------------------------------------
def init_linear(key, in_dim, out_dim):
  """nn.Linear-style init: U(-1/sqrt(in), 1/sqrt(in))."""
  k_w, k_b = jax.random.split(key)
  bound = 1.0 / np.sqrt(in_dim)
  w = jax.random.uniform(k_w, (in_dim, out_dim), jnp.float32, -bound, bound)
  b = jax.random.uniform(k_b, (1, out_dim), jnp.float32, -bound, bound)
  return w, b


def init_params(key, vlabel_dim, clabel_dim, vemb_dim, cemb_dim, max_iters):
  in_half = max(vlabel_dim, vemb_dim)
  keys = ("w1a", "w1b", "b1", "w2c", "w2l", "b2",
          "wfa", "wfb", "bf", "wba", "wbb", "bb")
  cols = {k: [] for k in keys}
  for i in range(max_iters):
    key, k1, k2, k3, k4 = jax.random.split(key, 5)
    if i == 0:
      # CNFLayer(vlabel, cemb, vemb): Linear(vlabel, cemb)
      w1, b1 = init_linear(k1, vlabel_dim, cemb_dim)
      w1a = jnp.pad(w1, ((0, in_half - vlabel_dim), (0, 0)))
      w1b = jnp.zeros((in_half, cemb_dim), jnp.float32)
    else:
      # CNFLayer(2*vemb, cemb, vemb): Linear(2*vemb, cemb) split in halves
      w1, b1 = init_linear(k1, 2 * vemb_dim, cemb_dim)
      w1a = jnp.pad(w1[:vemb_dim], ((0, in_half - vemb_dim), (0, 0)))
      w1b = jnp.pad(w1[vemb_dim:], ((0, in_half - vemb_dim), (0, 0)))
    w2, b2 = init_linear(k2, cemb_dim + clabel_dim, vemb_dim)
    wf, bf_ = init_linear(k3, 2 * vemb_dim, vemb_dim)
    wb, bb_ = init_linear(k4, 2 * vemb_dim, vemb_dim)
    cols["w1a"].append(w1a); cols["w1b"].append(w1b); cols["b1"].append(b1)
    cols["w2c"].append(w2[:cemb_dim]); cols["w2l"].append(w2[cemb_dim:])
    cols["b2"].append(b2)
    cols["wfa"].append(wf[:vemb_dim]); cols["wfb"].append(wf[vemb_dim:])
    cols["bf"].append(bf_)
    cols["wba"].append(wb[:vemb_dim]); cols["wbb"].append(wb[vemb_dim:])
    cols["bb"].append(bb_)
  return {k: jnp.stack(v) for k, v in cols.items()}


# ----------------------------------------------------------------------------
# Pure-JAX reference (interleaved layout, PyTorch-style reshape tie); mirrors
# the kernel's bf16-input / f32-accumulate cast points for a tight comparison.
# ----------------------------------------------------------------------------
def _pair_swap(h):
  feat = h.shape[1]
  return h.reshape(-1, 2, feat)[:, ::-1, :].reshape(-1, feat)


def encoder_reference(params, lit_labels, clause_labels, adj_lc, aag_ft, aag_bt):
  bf16, f32 = jnp.bfloat16, jnp.float32
  dot = lambda a, b: jnp.dot(a.astype(bf16), b.astype(bf16),
                             preferred_element_type=f32)
  max_iters, in_half, _ = params["w1a"].shape
  vemb = params["w2c"].shape[2]
  rdeg_lc = 1.0 / jnp.maximum(jnp.sum(adj_lc, axis=1, keepdims=True), 1.0)
  rdeg_f = 1.0 / jnp.maximum(jnp.sum(aag_ft, axis=1, keepdims=True), 1.0)
  rdeg_b = 1.0 / jnp.maximum(jnp.sum(aag_bt, axis=1, keepdims=True), 1.0)
  adj_mean = (adj_lc * rdeg_lc).astype(bf16)
  adj_sum = adj_lc.T.astype(bf16)
  aag_f = (aag_ft * rdeg_f).astype(bf16)
  aag_b = (aag_bt * rdeg_b).astype(bf16)
  x = jnp.pad(lit_labels, ((0, 0), (0, in_half - lit_labels.shape[1])))
  embs = None
  for i in range(max_iters):
    x_sw = _pair_swap(x)
    wh = dot(x, params["w1a"][i]) + dot(x_sw, params["w1b"][i]) + params["b1"][i]
    c = jnp.maximum(jnp.dot(adj_sum, wh.astype(bf16),
                            preferred_element_type=f32), 0.0)
    wh2 = (dot(c, params["w2c"][i]) + dot(clause_labels, params["w2l"][i])
           + params["b2"][i])
    pre_cnf = jnp.maximum(jnp.dot(adj_mean, wh2.astype(bf16),
                                  preferred_element_type=f32), 0.0)
    pc_sw = _pair_swap(pre_cnf)
    whf = (dot(pre_cnf, params["wfa"][i]) + dot(pc_sw, params["wfb"][i])
           + params["bf"][i])
    whb = (dot(pre_cnf, params["wba"][i]) + dot(pc_sw, params["wbb"][i])
           + params["bb"][i])
    pre_aag = jnp.maximum(
        jnp.dot(aag_f, whf.astype(bf16), preferred_element_type=f32)
        + jnp.dot(aag_b, whb.astype(bf16), preferred_element_type=f32), 0.0)
    embs = jnp.concatenate([pre_aag, _pair_swap(pre_aag)], axis=1)
    x = jnp.pad(pre_aag, ((0, 0), (0, in_half - vemb)))
  return embs


# ----------------------------------------------------------------------------
# main
# ----------------------------------------------------------------------------
if __name__ == "__main__":
  # small, synthetic settings (feature dims lane-dense: multiples of 128).
  # NOTE: on v6e/v7x, vemb/cemb >= 256 would fill the 256x256 MXU better.
  vlabel_dim = 8       # literal input label size
  clabel_dim = 8       # clause input label size
  vemb_dim = 128       # literal embedding size
  cemb_dim = 128       # clause embedding size
  max_iters = 2

  n_vars = 64
  n_lits = 2 * n_vars  # literals are interleaved (pos, neg) pairs
  n_clauses = 128

  key = jax.random.PRNGKey(0)
  key, k_lit, k_cl, k_adj, k_aag, k_par = jax.random.split(key, 6)

  # node features
  lit_labels = jax.random.normal(k_lit, (n_lits, vlabel_dim), jnp.float32)
  clause_labels = jax.random.normal(k_cl, (n_clauses, clabel_dim), jnp.float32)

  # CNF bipartite incidence: literal i appears in clause j
  adj_lc = (jax.random.uniform(k_adj, (n_lits, n_clauses)) < 0.15).astype(jnp.float32)

  # AAG (AIG) directed edges between literals
  aag_edges = (jax.random.uniform(k_aag, (n_lits, n_lits)) < 0.08).astype(jnp.float32)
  aag_ft = aag_edges.T   # forward etype, rows = destination literals
  aag_bt = aag_edges     # backward etype (reversed edges), rows = destination

  params = init_params(k_par, vlabel_dim, clabel_dim, vemb_dim, cemb_dim, max_iters)

  out = jax.block_until_ready(
      cnf_aag_encoder_forward(params, lit_labels, clause_labels,
                              adj_lc, aag_ft, aag_bt))

  assert out.shape == (n_lits, 2 * vemb_dim), out.shape
  assert bool(jnp.all(jnp.isfinite(out)))

  ref = encoder_reference(params, lit_labels, clause_labels, adj_lc, aag_ft, aag_bt)
  np.testing.assert_allclose(np.asarray(out), np.asarray(ref),
                             rtol=2e-3, atol=2e-3)
  print("KERNEL_OK")
</pallas_src>

<mosaic_0001>
module attributes {stable_mosaic.version = 11 : i64} {
  func.func @kernel(%arg0: i32, %arg1: memref<128x128xf32, #tpu.memory_space<vmem>>, %arg2: memref<128x8xbf16, #tpu.memory_space<vmem>>, %arg3: memref<128x128xbf16, #tpu.memory_space<vmem>>, %arg4: memref<128x128xbf16, #tpu.memory_space<vmem>>, %arg5: memref<128x128xbf16, #tpu.memory_space<vmem>>, %arg6: memref<128x128xbf16, #tpu.memory_space<vmem>>, %arg7: memref<1x128x128xbf16, #tpu.memory_space<vmem>>, %arg8: memref<1x128x128xbf16, #tpu.memory_space<vmem>>, %arg9: memref<1x1x128xf32, #tpu.memory_space<vmem>>, %arg10: memref<1x128x128xbf16, #tpu.memory_space<vmem>>, %arg11: memref<1x8x128xbf16, #tpu.memory_space<vmem>>, %arg12: memref<1x1x128xf32, #tpu.memory_space<vmem>>, %arg13: memref<1x128x128xbf16, #tpu.memory_space<vmem>>, %arg14: memref<1x128x128xbf16, #tpu.memory_space<vmem>>, %arg15: memref<1x1x128xf32, #tpu.memory_space<vmem>>, %arg16: memref<1x128x128xbf16, #tpu.memory_space<vmem>>, %arg17: memref<1x128x128xbf16, #tpu.memory_space<vmem>>, %arg18: memref<1x1x128xf32, #tpu.memory_space<vmem>>, %arg19: memref<128x256xf32, #tpu.memory_space<vmem>>, %arg20: memref<128x128xf32, #tpu.memory_space<vmem>>) attributes {dimension_semantics = [#tpu.dimension_semantics<arbitrary>], iteration_bounds = array<i64: 2>, scalar_prefetch = 0 : i64, scratch_operands = 1 : i64, tpu.core_type = #tpu.core_type<tc>, window_params = [{pipeline_mode = #tpu.pipeline_mode<synchronous>, transform_indices = @transform_0, window_bounds = array<i64: 128, 128>}, {pipeline_mode = #tpu.pipeline_mode<synchronous>, transform_indices = @transform_1, window_bounds = array<i64: 128, 8>}, {pipeline_mode = #tpu.pipeline_mode<synchronous>, transform_indices = @transform_2, window_bounds = array<i64: 128, 128>}, {pipeline_mode = #tpu.pipeline_mode<synchronous>, transform_indices = @transform_3, window_bounds = array<i64: 128, 128>}, {pipeline_mode = #tpu.pipeline_mode<synchronous>, transform_indices = @transform_4, window_bounds = array<i64: 128, 128>}, {pipeline_mode = #tpu.pipeline_mode<synchronous>, transform_indices = @transform_5, window_bounds = array<i64: 128, 128>}, {transform_indices = @transform_6, window_bounds = array<i64: 1, 128, 128>}, {transform_indices = @transform_7, window_bounds = array<i64: 1, 128, 128>}, {transform_indices = @transform_8, window_bounds = array<i64: 1, 1, 128>}, {transform_indices = @transform_9, window_bounds = array<i64: 1, 128, 128>}, {transform_indices = @transform_10, window_bounds = array<i64: 1, 8, 128>}, {transform_indices = @transform_11, window_bounds = array<i64: 1, 1, 128>}, {transform_indices = @transform_12, window_bounds = array<i64: 1, 128, 128>}, {transform_indices = @transform_13, window_bounds = array<i64: 1, 128, 128>}, {transform_indices = @transform_14, window_bounds = array<i64: 1, 1, 128>}, {transform_indices = @transform_15, window_bounds = array<i64: 1, 128, 128>}, {transform_indices = @transform_16, window_bounds = array<i64: 1, 128, 128>}, {transform_indices = @transform_17, window_bounds = array<i64: 1, 1, 128>}, {pipeline_mode = #tpu.pipeline_mode<synchronous>, transform_indices = @transform_18, window_bounds = array<i64: 128, 256>}]} {
    %c0_i32 = arith.constant 0 : i32
    %0 = arith.cmpi eq, %arg0, %c0_i32 : i32
    %1 = arith.extui %0 : i1 to i32
    %c0_i32_0 = arith.constant 0 : i32
    %2 = arith.cmpi ne, %1, %c0_i32_0 : i32
    scf.if %2 {
      %c0_65 = arith.constant 0 : index
      %c0_66 = arith.constant 0 : index
      %83 = vector.load %arg1[%c0_65, %c0_66] : memref<128x128xf32, #tpu.memory_space<vmem>>, vector<128x128xf32>
      %c0_67 = arith.constant 0 : index
      %c0_68 = arith.constant 0 : index
      %84 = vector.load %arg20[%c0_67, %c0_68] : memref<128x128xf32, #tpu.memory_space<vmem>>, vector<128x128xf32>
      tpu.vector_store %arg20[%c0_67, %c0_68], %83 {strides = array<i32>} : memref<128x128xf32, #tpu.memory_space<vmem>>, vector<128x128xf32>,
    } else {
    }
    %c0 = arith.constant 0 : index
    %c0_1 = arith.constant 0 : index
    %3 = vector.load %arg20[%c0, %c0_1] : memref<128x128xf32, #tpu.memory_space<vmem>>, vector<128x128xf32>
    %4 = arith.truncf %3 : vector<128x128xf32> to vector<128x128xbf16>
    %5 = vector.extract_strided_slice %3 {offsets = [64, 0], sizes = [64, 128], strides = [1, 1]} : vector<128x128xf32> to vector<64x128xf32>
    %6 = vector.extract_strided_slice %3 {offsets = [0, 0], sizes = [64, 128], strides = [1, 1]} : vector<128x128xf32> to vector<64x128xf32>
    %7 = tpu.concatenate %5, %6 in 0 : vector<64x128xf32>, vector<64x128xf32> -> vector<128x128xf32>
    %8 = arith.truncf %7 : vector<128x128xf32> to vector<128x128xbf16>
    %c0_2 = arith.constant 0 : index
    %c0_3 = arith.constant 0 : index
    %c0_4 = arith.constant 0 : index
    %9 = vector.load %arg7[%c0_2, %c0_3, %c0_4] : memref<1x128x128xbf16, #tpu.memory_space<vmem>>, vector<1x128x128xbf16>
    %10 = vector.shape_cast %9 : vector<1x128x128xbf16> to vector<128x128xbf16>
    %cst = arith.constant dense<0.000000e+00> : vector<128x128xf32>
    %11 = tpu.matmul %4, %10, %cst {dimension_numbers = #tpu.dot_dimension_numbers<[1], [0], [0], [1], [0, 0, 1, 1], [], []>} : vector<128x128xbf16>, vector<128x128xbf16>, vector<128x128xf32> -> vector<128x128xf32>
    %c0_5 = arith.constant 0 : index
    %c0_6 = arith.constant 0 : index
    %c0_7 = arith.constant 0 : index
    %12 = vector.load %arg8[%c0_5, %c0_6, %c0_7] : memref<1x128x128xbf16, #tpu.memory_space<vmem>>, vector<1x128x128xbf16>
    %13 = vector.shape_cast %12 : vector<1x128x128xbf16> to vector<128x128xbf16>
    %cst_8 = arith.constant dense<0.000000e+00> : vector<128x128xf32>
    %14 = tpu.matmul %8, %13, %cst_8 {dimension_numbers = #tpu.dot_dimension_numbers<[1], [0], [0], [1], [0, 0, 1, 1], [], []>} : vector<128x128xbf16>, vector<128x128xbf16>, vector<128x128xf32> -> vector<128x128xf32>
    %15 = arith.addf %11, %14 : vector<128x128xf32>
    %c0_9 = arith.constant 0 : index
    %c0_10 = arith.constant 0 : index
    %c0_11 = arith.constant 0 : index
    %16 = vector.load %arg9[%c0_9, %c0_10, %c0_11] : memref<1x1x128xf32, #tpu.memory_space<vmem>>, vector<1x1x128xf32>
    %17 = vector.shape_cast %16 : vector<1x1x128xf32> to vector<1x128xf32>
    %18 = vector.broadcast %17 : vector<1x128xf32> to vector<128x128xf32>
    %19 = arith.addf %15, %18 : vector<128x128xf32>
    %c0_12 = arith.constant 0 : index
    %c0_13 = arith.constant 0 : index
    %20 = vector.load %arg3[%c0_12, %c0_13] : memref<128x128xbf16, #tpu.memory_space<vmem>>, vector<128x128xbf16>
    %21 = arith.truncf %19 : vector<128x128xf32> to vector<128x128xbf16>
    %cst_14 = arith.constant dense<0.000000e+00> : vector<128x128xf32>
    %22 = tpu.matmul %20, %21, %cst_14 {dimension_numbers = #tpu.dot_dimension_numbers<[1], [0], [0], [1], [0, 0, 1, 1], [], []>} : vector<128x128xbf16>, vector<128x128xbf16>, vector<128x128xf32> -> vector<128x128xf32>
    %cst_15 = arith.constant 0.000000e+00 : f32
    %23 = vector.broadcast %cst_15 : f32 to vector<128x128xf32>
    %24 = arith.maximumf %22, %23 : vector<128x128xf32>
    %25 = arith.truncf %24 : vector<128x128xf32> to vector<128x128xbf16>
    %c0_16 = arith.constant 0 : index
    %c0_17 = arith.constant 0 : index
    %c0_18 = arith.constant 0 : index
    %26 = vector.load %arg10[%c0_16, %c0_17, %c0_18] : memref<1x128x128xbf16, #tpu.memory_space<vmem>>, vector<1x128x128xbf16>
    %27 = vector.shape_cast %26 : vector<1x128x128xbf16> to vector<128x128xbf16>
    %cst_19 = arith.constant dense<0.000000e+00> : vector<128x128xf32>
    %28 = tpu.matmul %25, %27, %cst_19 {dimension_numbers = #tpu.dot_dimension_numbers<[1], [0], [0], [1], [0, 0, 1, 1], [], []>} : vector<128x128xbf16>, vector<128x128xbf16>, vector<128x128xf32> -> vector<128x128xf32>
    %c0_20 = arith.constant 0 : index
    %c0_21 = arith.constant 0 : index
    %29 = vector.load %arg2[%c0_20, %c0_21] : memref<128x8xbf16, #tpu.memory_space<vmem>>, vector<128x8xbf16>
    %c0_22 = arith.constant 0 : index
    %c0_23 = arith.constant 0 : index
    %c0_24 = arith.constant 0 : index
    %30 = vector.load %arg11[%c0_22, %c0_23, %c0_24] : memref<1x8x128xbf16, #tpu.memory_space<vmem>>, vector<1x8x128xbf16>
    %31 = vector.shape_cast %30 : vector<1x8x128xbf16> to vector<8x128xbf16>
    %cst_25 = arith.constant dense<0.000000e+00> : vector<128x128xf32>
    %32 = tpu.matmul %29, %31, %cst_25 {dimension_numbers = #tpu.dot_dimension_numbers<[1], [0], [0], [1], [0, 0, 1, 1], [], []>} : vector<128x8xbf16>, vector<8x128xbf16>, vector<128x128xf32> -> vector<128x128xf32>
    %33 = arith.addf %28, %32 : vector<128x128xf32>
    %c0_26 = arith.constant 0 : index
    %c0_27 = arith.constant 0 : index
    %c0_28 = arith.constant 0 : index
    %34 = vector.load %arg12[%c0_26, %c0_27, %c0_28] : memref<1x1x128xf32, #tpu.memory_space<vmem>>, vector<1x1x128xf32>
    %35 = vector.shape_cast %34 : vector<1x1x128xf32> to vector<1x128xf32>
    %36 = vector.broadcast %35 : vector<1x128xf32> to vector<128x128xf32>
    %37 = arith.addf %33, %36 : vector<128x128xf32>
    %c0_29 = arith.constant 0 : index
    %c0_30 = arith.constant 0 : index
    %38 = vector.load %arg4[%c0_29, %c0_30] : memref<128x128xbf16, #tpu.memory_space<vmem>>, vector<128x128xbf16>
    %39 = arith.truncf %37 : vector<128x128xf32> to vector<128x128xbf16>
    %cst_31 = arith.constant dense<0.000000e+00> : vector<128x128xf32>
    %40 = tpu.matmul %38, %39, %cst_31 {dimension_numbers = #tpu.dot_dimension_numbers<[1], [0], [0], [1], [0, 0, 1, 1], [], []>} : vector<128x128xbf16>, vector<128x128xbf16>, vector<128x128xf32> -> vector<128x128xf32>
    %cst_32 = arith.constant 0.000000e+00 : f32
    %41 = vector.broadcast %cst_32 : f32 to vector<128x128xf32>
    %42 = arith.maximumf %40, %41 : vector<128x128xf32>
    %43 = arith.truncf %42 : vector<128x128xf32> to vector<128x128xbf16>
    %44 = vector.extract_strided_slice %42 {offsets = [64, 0], sizes = [64, 128], strides = [1, 1]} : vector<128x128xf32> to vector<64x128xf32>
    %45 = vector.extract_strided_slice %42 {offsets = [0, 0], sizes = [64, 128], strides = [1, 1]} : vector<128x128xf32> to vector<64x128xf32>
    %46 = tpu.concatenate %44, %45 in 0 : vector<64x128xf32>, vector<64x128xf32> -> vector<128x128xf32>
    %47 = arith.truncf %46 : vector<128x128xf32> to vector<128x128xbf16>
    %c0_33 = arith.constant 0 : index
    %c0_34 = arith.constant 0 : index
    %c0_35 = arith.constant 0 : index
    %48 = vector.load %arg13[%c0_33, %c0_34, %c0_35] : memref<1x128x128xbf16, #tpu.memory_space<vmem>>, vector<1x128x128xbf16>
    %49 = vector.shape_cast %48 : vector<1x128x128xbf16> to vector<128x128xbf16>
    %cst_36 = arith.constant dense<0.000000e+00> : vector<128x128xf32>
    %50 = tpu.matmul %43, %49, %cst_36 {dimension_numbers = #tpu.dot_dimension_numbers<[1], [0], [0], [1], [0, 0, 1, 1], [], []>} : vector<128x128xbf16>, vector<128x128xbf16>, vector<128x128xf32> -> vector<128x128xf32>
    %c0_37 = arith.constant 0 : index
    %c0_38 = arith.constant 0 : index
    %c0_39 = arith.constant 0 : index
    %51 = vector.load %arg14[%c0_37, %c0_38, %c0_39] : memref<1x128x128xbf16, #tpu.memory_space<vmem>>, vector<1x128x128xbf16>
    %52 = vector.shape_cast %51 : vector<1x128x128xbf16> to vector<128x128xbf16>
    %cst_40 = arith.constant dense<0.000000e+00> : vector<128x128xf32>
    %53 = tpu.matmul %47, %52, %cst_40 {dimension_numbers = #tpu.dot_dimension_numbers<[1], [0], [0], [1], [0, 0, 1, 1], [], []>} : vector<128x128xbf16>, vector<128x128xbf16>, vector<128x128xf32> -> vector<128x128xf32>
    %54 = arith.addf %50, %53 : vector<128x128xf32>
    %c0_41 = arith.constant 0 : index
    %c0_42 = arith.constant 0 : index
    %c0_43 = arith.constant 0 : index
    %55 = vector.load %arg15[%c0_41, %c0_42, %c0_43] : memref<1x1x128xf32, #tpu.memory_space<vmem>>, vector<1x1x128xf32>
    %56 = vector.shape_cast %55 : vector<1x1x128xf32> to vector<1x128xf32>
    %57 = vector.broadcast %56 : vector<1x128xf32> to vector<128x128xf32>
    %58 = arith.addf %54, %57 : vector<128x128xf32>
    %c0_44 = arith.constant 0 : index
    %c0_45 = arith.constant 0 : index
    %c0_46 = arith.constant 0 : index
    %59 = vector.load %arg16[%c0_44, %c0_45, %c0_46] : memref<1x128x128xbf16, #tpu.memory_space<vmem>>, vector<1x128x128xbf16>
    %60 = vector.shape_cast %59 : vector<1x128x128xbf16> to vector<128x128xbf16>
    %cst_47 = arith.constant dense<0.000000e+00> : vector<128x128xf32>
    %61 = tpu.matmul %43, %60, %cst_47 {dimension_numbers = #tpu.dot_dimension_numbers<[1], [0], [0], [1], [0, 0, 1, 1], [], []>} : vector<128x128xbf16>, vector<128x128xbf16>, vector<128x128xf32> -> vector<128x128xf32>
    %c0_48 = arith.constant 0 : index
    %c0_49 = arith.constant 0 : index
    %c0_50 = arith.constant 0 : index
    %62 = vector.load %arg17[%c0_48, %c0_49, %c0_50] : memref<1x128x128xbf16, #tpu.memory_space<vmem>>, vector<1x128x128xbf16>
    %63 = vector.shape_cast %62 : vector<1x128x128xbf16> to vector<128x128xbf16>
    %cst_51 = arith.constant dense<0.000000e+00> : vector<128x128xf32>
    %64 = tpu.matmul %47, %63, %cst_51 {dimension_numbers = #tpu.dot_dimension_numbers<[1], [0], [0], [1], [0, 0, 1, 1], [], []>} : vector<128x128xbf16>, vector<128x128xbf16>, vector<128x128xf32> -> vector<128x128xf32>
    %65 = arith.addf %61, %64 : vector<128x128xf32>
    %c0_52 = arith.constant 0 : index
    %c0_53 = arith.constant 0 : index
    %c0_54 = arith.constant 0 : index
    %66 = vector.load %arg18[%c0_52, %c0_53, %c0_54] : memref<1x1x128xf32, #tpu.memory_space<vmem>>, vector<1x1x128xf32>
    %67 = vector.shape_cast %66 : vector<1x1x128xf32> to vector<1x128xf32>
    %68 = vector.broadcast %67 : vector<1x128xf32> to vector<128x128xf32>
    %69 = arith.addf %65, %68 : vector<128x128xf32>
    %c0_55 = arith.constant 0 : index
    %c0_56 = arith.constant 0 : index
    %70 = vector.load %arg5[%c0_55, %c0_56] : memref<128x128xbf16, #tpu.memory_space<vmem>>, vector<128x128xbf16>
    %71 = arith.truncf %58 : vector<128x128xf32> to vector<128x128xbf16>
    %cst_57 = arith.constant dense<0.000000e+00> : vector<128x128xf32>
    %72 = tpu.matmul %70, %71, %cst_57 {dimension_numbers = #tpu.dot_dimension_numbers<[1], [0], [0], [1], [0, 0, 1, 1], [], []>} : vector<128x128xbf16>, vector<128x128xbf16>, vector<128x128xf32> -> vector<128x128xf32>
    %c0_58 = arith.constant 0 : index
    %c0_59 = arith.constant 0 : index
    %73 = vector.load %arg6[%c0_58, %c0_59] : memref<128x128xbf16, #tpu.memory_space<vmem>>, vector<128x128xbf16>
    %74 = arith.truncf %69 : vector<128x128xf32> to vector<128x128xbf16>
    %cst_60 = arith.constant dense<0.000000e+00> : vector<128x128xf32>
    %75 = tpu.matmul %73, %74, %cst_60 {dimension_numbers = #tpu.dot_dimension_numbers<[1], [0], [0], [1], [0, 0, 1, 1], [], []>} : vector<128x128xbf16>, vector<128x128xbf16>, vector<128x128xf32> -> vector<128x128xf32>
    %76 = arith.addf %72, %75 : vector<128x128xf32>
    %cst_61 = arith.constant 0.000000e+00 : f32
    %77 = vector.broadcast %cst_61 : f32 to vector<128x128xf32>
    %78 = arith.maximumf %76, %77 : vector<128x128xf32>
    %c0_62 = arith.constant 0 : index
    %c0_63 = arith.constant 0 : index
    %79 = vector.load %arg20[%c0_62, %c0_63] : memref<128x128xf32, #tpu.memory_space<vmem>>, vector<128x128xf32>
    tpu.vector_store %arg20[%c0_62, %c0_63], %78 {strides = array<i32>} : memref<128x128xf32, #tpu.memory_space<vmem>>, vector<128x128xf32>,
    %c1_i32 = arith.constant 1 : i32
    %80 = arith.cmpi eq, %arg0, %c1_i32 : i32
    %81 = arith.extui %80 : i1 to i32
    %c0_i32_64 = arith.constant 0 : i32
    %82 = arith.cmpi ne, %81, %c0_i32_64 : i32
    scf.if %82 {
      %c0_65 = arith.constant 0 : index
      %c0_66 = arith.constant 0 : index
      %83 = vector.load %arg19[%c0_65, %c0_66] : memref<128x256xf32, #tpu.memory_space<vmem>>, vector<128x128xf32>
      tpu.vector_store %arg19[%c0_65, %c0_66], %78 {strides = array<i32>} : memref<128x256xf32, #tpu.memory_space<vmem>>, vector<128x128xf32>,
      %84 = vector.extract_strided_slice %78 {offsets = [64, 0], sizes = [64, 128], strides = [1, 1]} : vector<128x128xf32> to vector<64x128xf32>
      %85 = vector.extract_strided_slice %78 {offsets = [0, 0], sizes = [64, 128], strides = [1, 1]} : vector<128x128xf32> to vector<64x128xf32>
      %86 = tpu.concatenate %84, %85 in 0 : vector<64x128xf32>, vector<64x128xf32> -> vector<128x128xf32>
      %c0_67 = arith.constant 0 : index
      %c128 = arith.constant 128 : index
      %87 = vector.load %arg19[%c0_67, %c128] : memref<128x256xf32, #tpu.memory_space<vmem>>, vector<128x128xf32>
      tpu.vector_store %arg19[%c0_67, %c128], %86 {strides = array<i32>} : memref<128x256xf32, #tpu.memory_space<vmem>>, vector<128x128xf32>,
    } else {
    }
    return
  }
  func.func @transform_0(%arg0: i32) -> (i32, i32) {
    %c0_i32 = arith.constant 0 : i32
    %c0_i32_0 = arith.constant 0 : i32
    %c0_i32_1 = arith.constant 0 : i32
    return %c0_i32, %c0_i32_0 : i32, i32
  }
  func.func @transform_1(%arg0: i32) -> (i32, i32) {
    %c0_i32 = arith.constant 0 : i32
    %c0_i32_0 = arith.constant 0 : i32
    %c0_i32_1 = arith.constant 0 : i32
    return %c0_i32, %c0_i32_0 : i32, i32
  }
  func.func @transform_2(%arg0: i32) -> (i32, i32) {
    %c0_i32 = arith.constant 0 : i32
    %c0_i32_0 = arith.constant 0 : i32
    %c0_i32_1 = arith.constant 0 : i32
    return %c0_i32, %c0_i32_0 : i32, i32
  }
  func.func @transform_3(%arg0: i32) -> (i32, i32) {
    %c0_i32 = arith.constant 0 : i32
    %c0_i32_0 = arith.constant 0 : i32
    %c0_i32_1 = arith.constant 0 : i32
    return %c0_i32, %c0_i32_0 : i32, i32
  }
  func.func @transform_4(%arg0: i32) -> (i32, i32) {
    %c0_i32 = arith.constant 0 : i32
    %c0_i32_0 = arith.constant 0 : i32
    %c0_i32_1 = arith.constant 0 : i32
    return %c0_i32, %c0_i32_0 : i32, i32
  }
  func.func @transform_5(%arg0: i32) -> (i32, i32) {
    %c0_i32 = arith.constant 0 : i32
    %c0_i32_0 = arith.constant 0 : i32
    %c0_i32_1 = arith.constant 0 : i32
    return %c0_i32, %c0_i32_0 : i32, i32
  }
  func.func @transform_6(%arg0: i32) -> (i32, i32, i32) {
    %c0_i32 = arith.constant 0 : i32
    %c0_i32_0 = arith.constant 0 : i32
    %c0_i32_1 = arith.constant 0 : i32
    return %arg0, %c0_i32, %c0_i32_0 : i32, i32, i32
  }
  func.func @transform_7(%arg0: i32) -> (i32, i32, i32) {
    %c0_i32 = arith.constant 0 : i32
    %c0_i32_0 = arith.constant 0 : i32
    %c0_i32_1 = arith.constant 0 : i32
    return %arg0, %c0_i32, %c0_i32_0 : i32, i32, i32
  }
  func.func @transform_8(%arg0: i32) -> (i32, i32, i32) {
    %c0_i32 = arith.constant 0 : i32
    %c0_i32_0 = arith.constant 0 : i32
    %c0_i32_1 = arith.constant 0 : i32
    return %arg0, %c0_i32, %c0_i32_0 : i32, i32, i32
  }
  func.func @transform_9(%arg0: i32) -> (i32, i32, i32) {
    %c0_i32 = arith.constant 0 : i32
    %c0_i32_0 = arith.constant 0 : i32
    %c0_i32_1 = arith.constant 0 : i32
    return %arg0, %c0_i32, %c0_i32_0 : i32, i32, i32
  }
  func.func @transform_10(%arg0: i32) -> (i32, i32, i32) {
    %c0_i32 = arith.constant 0 : i32
    %c0_i32_0 = arith.constant 0 : i32
    %c0_i32_1 = arith.constant 0 : i32
    return %arg0, %c0_i32, %c0_i32_0 : i32, i32, i32
  }
  func.func @transform_11(%arg0: i32) -> (i32, i32, i32) {
    %c0_i32 = arith.constant 0 : i32
    %c0_i32_0 = arith.constant 0 : i32
    %c0_i32_1 = arith.constant 0 : i32
    return %arg0, %c0_i32, %c0_i32_0 : i32, i32, i32
  }
  func.func @transform_12(%arg0: i32) -> (i32, i32, i32) {
    %c0_i32 = arith.constant 0 : i32
    %c0_i32_0 = arith.constant 0 : i32
    %c0_i32_1 = arith.constant 0 : i32
    return %arg0, %c0_i32, %c0_i32_0 : i32, i32, i32
  }
  func.func @transform_13(%arg0: i32) -> (i32, i32, i32) {
    %c0_i32 = arith.constant 0 : i32
    %c0_i32_0 = arith.constant 0 : i32
    %c0_i32_1 = arith.constant 0 : i32
    return %arg0, %c0_i32, %c0_i32_0 : i32, i32, i32
  }
  func.func @transform_14(%arg0: i32) -> (i32, i32, i32) {
    %c0_i32 = arith.constant 0 : i32
    %c0_i32_0 = arith.constant 0 : i32
    %c0_i32_1 = arith.constant 0 : i32
    return %arg0, %c0_i32, %c0_i32_0 : i32, i32, i32
  }
  func.func @transform_15(%arg0: i32) -> (i32, i32, i32) {
    %c0_i32 = arith.constant 0 : i32
    %c0_i32_0 = arith.constant 0 : i32
    %c0_i32_1 = arith.constant 0 : i32
    return %arg0, %c0_i32, %c0_i32_0 : i32, i32, i32
  }
  func.func @transform_16(%arg0: i32) -> (i32, i32, i32) {
    %c0_i32 = arith.constant 0 : i32
    %c0_i32_0 = arith.constant 0 : i32
    %c0_i32_1 = arith.constant 0 : i32
    return %arg0, %c0_i32, %c0_i32_0 : i32, i32, i32
  }
  func.func @transform_17(%arg0: i32) -> (i32, i32, i32) {
    %c0_i32 = arith.constant 0 : i32
    %c0_i32_0 = arith.constant 0 : i32
    %c0_i32_1 = arith.constant 0 : i32
    return %arg0, %c0_i32, %c0_i32_0 : i32, i32, i32
  }
  func.func @transform_18(%arg0: i32) -> (i32, i32) {
    %c0_i32 = arith.constant 0 : i32
    %c0_i32_0 = arith.constant 0 : i32
    %c0_i32_1 = arith.constant 0 : i32
    return %c0_i32, %c0_i32_0 : i32, i32
  }
}

</mosaic_0001>

<llo_original>
// kernel: cnf_aag_encoder_forward.1
$region0: #{cnf_aag_encoder_forward.1}
  #allocation0 [shape = 'u32[]', space=smem, size = 0x4, offset = 0x4, fixed_abs, tag = 'smem constant byte address 0x4 - core index']
  #allocation1 [shape = 'u32[144,128]{1,0:T(1,128)}', space=vmem, size = 0x12000, scoped, tag = 'internal scratch']
  #allocation2 [shape = 'f32[128,128]{1,0:T(8,128)}', space=vmem, size = 0x10000, scoped, tag = 'scratch operand']
  %s0 = inlined_call_operand.vmem [shape: f32[128,128], index: 0, kind: input, shape index: {}]
  %s1 = inlined_call_operand.vmem [shape: bf16[128,8], index: 1, kind: input, shape index: {}]
  %s2 = inlined_call_operand.vmem [shape: bf16[128,128], index: 2, kind: input, shape index: {}]
  %s3 = inlined_call_operand.vmem [shape: bf16[128,128], index: 3, kind: input, shape index: {}]
  %s4 = inlined_call_operand.vmem [shape: bf16[128,128], index: 4, kind: input, shape index: {}]
  %s5 = inlined_call_operand.vmem [shape: bf16[128,128], index: 5, kind: input, shape index: {}]
  %s6 = inlined_call_operand.vmem [shape: bf16[2,128,128], index: 6, kind: input, shape index: {}]
  %s7 = inlined_call_operand.vmem [shape: bf16[2,128,128], index: 7, kind: input, shape index: {}]
  %s8 = inlined_call_operand.vmem [shape: f32[2,1,128], index: 8, kind: input, shape index: {}]
  %s9 = inlined_call_operand.vmem [shape: bf16[2,128,128], index: 9, kind: input, shape index: {}]
  %s10 = inlined_call_operand.vmem [shape: bf16[2,8,128], index: 10, kind: input, shape index: {}]
  %s11 = inlined_call_operand.vmem [shape: f32[2,1,128], index: 11, kind: input, shape index: {}]
  %s12 = inlined_call_operand.vmem [shape: bf16[2,128,128], index: 12, kind: input, shape index: {}]
  %s13 = inlined_call_operand.vmem [shape: bf16[2,128,128], index: 13, kind: input, shape index: {}]
  %s14 = inlined_call_operand.vmem [shape: f32[2,1,128], index: 14, kind: input, shape index: {}]
  %s15 = inlined_call_operand.vmem [shape: bf16[2,128,128], index: 15, kind: input, shape index: {}]
  %s16 = inlined_call_operand.vmem [shape: bf16[2,128,128], index: 16, kind: input, shape index: {}]
  %s17 = inlined_call_operand.vmem [shape: f32[2,1,128], index: 17, kind: input, shape index: {}]
  %s18 = inlined_call_operand.vmem [shape: f32[128,256], index: 18, kind: output, shape index: {}]
  %s19 = sld [smem:[#allocation0]]
  $region113: #{cnf_aag_encoder_forward.1} parent=0
    _
  %s21 = ssub.s32 1, %s19
  %s22 = scalar_select 0, %s21, %s19
  loop: start=0, step=1, limit=4
  $region2: #{cnf_aag_encoder_forward.1} parent=0 // loop_pre_header
    _
  $region3: #{cnf_aag_encoder_forward.1} parent=0 // loop_header
    %s24 = sphi 0, %s28
    %p25 = scmp.ge.s32.totalorder %s24, 4
    %s32 = sphi 0, %s32
    %s34 = sphi 0, %s32
    %s35 = sphi 0, %s34
    %s49 = sphi 0, %s35
    %s53 = sphi 0, %s53
    %s55 = sphi 0, %s53
    %s56 = sphi 0, %s55
    %s70 = sphi 0, %s56
    %s74 = sphi 0, %s74
    %s76 = sphi 0, %s74
    %s77 = sphi 0, %s76
    %s91 = sphi 0, %s77
    %s95 = sphi 0, %s95
    %s97 = sphi 0, %s95
    %s98 = sphi 0, %s97
    %s112 = sphi 0, %s98
    %s116 = sphi 0, %s116
    %s118 = sphi 0, %s116
    %s119 = sphi 0, %s118
    %s133 = sphi 0, %s119
    %s137 = sphi 0, %s137
    %s139 = sphi 0, %s137
    %s140 = sphi 0, %s139
    %s154 = sphi 0, %s140
    %s160 = sphi 0, %s162
    %s163 = sphi 0, %s160
    %s164 = sphi 0, %s163
    %s180 = sphi 0, %s164
    %s186 = sphi 0, %s188
    %s189 = sphi 0, %s186
    %s190 = sphi 0, %s189
    %s206 = sphi 0, %s190
    %s212 = sphi 0, %s214
    %s215 = sphi 0, %s212
    %s216 = sphi 0, %s215
    %s232 = sphi 0, %s216
    %s238 = sphi 0, %s240
    %s241 = sphi 0, %s238
    %s242 = sphi 0, %s241
    %s258 = sphi 0, %s242
    %s264 = sphi 0, %s266
    %s267 = sphi 0, %s264
    %s268 = sphi 0, %s267
    %s284 = sphi 0, %s268
    %s290 = sphi 0, %s292
    %s293 = sphi 0, %s290
    %s294 = sphi 0, %s293
    %s310 = sphi 0, %s294
    %s316 = sphi 0, %s318
    %s319 = sphi 0, %s316
    %s320 = sphi 0, %s319
    %s336 = sphi 0, %s320
    %s342 = sphi 0, %s344
    %s345 = sphi 0, %s342
    %s346 = sphi 0, %s345
    %s362 = sphi 0, %s346
    %s368 = sphi 0, %s370
    %s371 = sphi 0, %s368
    %s372 = sphi 0, %s371
    %s388 = sphi 0, %s372
    %s394 = sphi 0, %s396
    %s397 = sphi 0, %s394
    %s398 = sphi 0, %s397
    %s414 = sphi 0, %s398
    %s420 = sphi 0, %s422
    %s423 = sphi 0, %s420
    %s424 = sphi 0, %s423
    %s440 = sphi 0, %s424
    %s446 = sphi 0, %s448
    %s449 = sphi 0, %s446
    %s450 = sphi 0, %s449
    %s466 = sphi 0, %s450
    %s470 = sphi 0, %s470
    %s472 = sphi 0, %s470
    %s473 = sphi 0, %s472
    %s487 = sphi 0, %s473
  $region4: #{cnf_aag_encoder_forward.1} parent=0 // loop_header_branch
    %27 = sbr.rel (%p25) target = $region8
  $region5: #{cnf_aag_encoder_forward.1} parent=0 // loop_body
    %s29 = ssub.s32 %s24, 1
    %s30 = ssub.s32 %s24, 2
    %s31 = sadd.s32 %s24, 1
    %s33 = sadd.s32 %s32, 1
    %p36 = scmp.eq.s32.totalorder %s24, 1
    %p37 = scmp.ne.s32.totalorder %s32, %s34
    %p38 = scmp.eq.s32.totalorder %s24, 0
    %p39 = por %p37, %p38
    %p40 = scmp.ne.s32.totalorder %s32, %s34
    %p41 = scmp.eq.s32.totalorder %s29, 1
    %p42 = por %p40, %p41
    %p43 = scmp.ne.s32.totalorder %s34, %s35
    %p44 = scmp.eq.s32.totalorder %s29, 0
    %p45 = por %p43, %p44
    %p46 = scmp.ne.s32.totalorder %s34, %s35
    %p47 = scmp.eq.s32.totalorder %s30, 1
    %p48 = por %p46, %p47
    %p50 = scmp.ne.s32.totalorder %s35, %s49
    %p51 = scmp.eq.s32.totalorder %s30, 0
    %p52 = por %p50, %p51
    %s54 = sadd.s32 %s53, 1
    %p57 = scmp.eq.s32.totalorder %s24, 1
    %p58 = scmp.ne.s32.totalorder %s53, %s55
    %p59 = scmp.eq.s32.totalorder %s24, 0
    %p60 = por %p58, %p59
    %p61 = scmp.ne.s32.totalorder %s53, %s55
    %p62 = scmp.eq.s32.totalorder %s29, 1
    %p63 = por %p61, %p62
    %p64 = scmp.ne.s32.totalorder %s55, %s56
    %p65 = scmp.eq.s32.totalorder %s29, 0
    %p66 = por %p64, %p65
    %p67 = scmp.ne.s32.totalorder %s55, %s56
    %p68 = scmp.eq.s32.totalorder %s30, 1
    %p69 = por %p67, %p68
    %p71 = scmp.ne.s32.totalorder %s56, %s70
    %p72 = scmp.eq.s32.totalorder %s30, 0
    %p73 = por %p71, %p72
    %s75 = sadd.s32 %s74, 1
    %p78 = scmp.eq.s32.totalorder %s24, 1
    %p79 = scmp.ne.s32.totalorder %s74, %s76
    %p80 = scmp.eq.s32.totalorder %s24, 0
    %p81 = por %p79, %p80
    %p82 = scmp.ne.s32.totalorder %s74, %s76
    %p83 = scmp.eq.s32.totalorder %s29, 1
    %p84 = por %p82, %p83
    %p85 = scmp.ne.s32.totalorder %s76, %s77
    %p86 = scmp.eq.s32.totalorder %s29, 0
    %p87 = por %p85, %p86
    %p88 = scmp.ne.s32.totalorder %s76, %s77
    %p89 = scmp.eq.s32.totalorder %s30, 1
    %p90 = por %p88, %p89
    %p92 = scmp.ne.s32.totalorder %s77, %s91
    %p93 = scmp.eq.s32.totalorder %s30, 0
    %p94 = por %p92, %p93
    %s96 = sadd.s32 %s95, 1
    %p99 = scmp.eq.s32.totalorder %s24, 1
    %p100 = scmp.ne.s32.totalorder %s95, %s97
    %p101 = scmp.eq.s32.totalorder %s24, 0
    %p102 = por %p100, %p101
    %p103 = scmp.ne.s32.totalorder %s95, %s97
    %p104 = scmp.eq.s32.totalorder %s29, 1
    %p105 = por %p103, %p104
    %p106 = scmp.ne.s32.totalorder %s97, %s98
    %p107 = scmp.eq.s32.totalorder %s29, 0
    %p108 = por %p106, %p107
    %p109 = scmp.ne.s32.totalorder %s97, %s98
    %p110 = scmp.eq.s32.totalorder %s30, 1
    %p111 = por %p109, %p110
    %p113 = scmp.ne.s32.totalorder %s98, %s112
    %p114 = scmp.eq.s32.totalorder %s30, 0
    %p115 = por %p113, %p114
    %s117 = sadd.s32 %s116, 1
    %p120 = scmp.eq.s32.totalorder %s24, 1
    %p121 = scmp.ne.s32.totalorder %s116, %s118
    %p122 = scmp.eq.s32.totalorder %s24, 0
    %p123 = por %p121, %p122
    %p124 = scmp.ne.s32.totalorder %s116, %s118
    %p125 = scmp.eq.s32.totalorder %s29, 1
    %p126 = por %p124, %p125
    %p127 = scmp.ne.s32.totalorder %s118, %s119
    %p128 = scmp.eq.s32.totalorder %s29, 0
    %p129 = por %p127, %p128
    %p130 = scmp.ne.s32.totalorder %s118, %s119
    %p131 = scmp.eq.s32.totalorder %s30, 1
    %p132 = por %p130, %p131
    %p134 = scmp.ne.s32.totalorder %s119, %s133
    %p135 = scmp.eq.s32.totalorder %s30, 0
    %p136 = por %p134, %p135
    %s138 = sadd.s32 %s137, 1
    %p141 = scmp.eq.s32.totalorder %s24, 1
    %p142 = scmp.ne.s32.totalorder %s137, %s139
    %p143 = scmp.eq.s32.totalorder %s24, 0
    %p144 = por %p142, %p143
    %p145 = scmp.ne.s32.totalorder %s137, %s139
    %p146 = scmp.eq.s32.totalorder %s29, 1
    %p147 = por %p145, %p146
    %p148 = scmp.ne.s32.totalorder %s139, %s140
    %p149 = scmp.eq.s32.totalorder %s29, 0
    %p150 = por %p148, %p149
    %p151 = scmp.ne.s32.totalorder %s139, %s140
    %p152 = scmp.eq.s32.totalorder %s30, 1
    %p153 = por %p151, %p152
    %p155 = scmp.ne.s32.totalorder %s140, %s154
    %p156 = scmp.eq.s32.totalorder %s30, 0
    %p157 = por %p155, %p156
    %s158 = ssub.s32 %s24, %s31
    %p159 = scmp.eq.s32.totalorder %s158, 0
    %s161 = sadd.s32 %s160, 1
    %s162 = scalar_select %p159, %s160, %s161
    %p165 = pneg %p159
    %p166 = scmp.eq.s32.totalorder %s24, 1
    %p167 = por %p165, %p166
    %p168 = scmp.ne.s32.totalorder %s160, %s163
    %p169 = scmp.eq.s32.totalorder %s24, 0
    %p170 = por %p168, %p169
    %p171 = scmp.ne.s32.totalorder %s160, %s163
    %p172 = scmp.eq.s32.totalorder %s29, 1
    %p173 = por %p171, %p172
    %p174 = scmp.ne.s32.totalorder %s163, %s164
    %p175 = scmp.eq.s32.totalorder %s29, 0
    %p176 = por %p174, %p175
    %p177 = scmp.ne.s32.totalorder %s163, %s164
    %p178 = scmp.eq.s32.totalorder %s30, 1
    %p179 = por %p177, %p178
    %p181 = scmp.ne.s32.totalorder %s164, %s180
    %p182 = scmp.eq.s32.totalorder %s30, 0
    %p183 = por %p181, %p182
    %s184 = ssub.s32 %s24, %s31
    %p185 = scmp.eq.s32.totalorder %s184, 0
    %s187 = sadd.s32 %s186, 1
    %s188 = scalar_select %p185, %s186, %s187
    %p191 = pneg %p185
    %p192 = scmp.eq.s32.totalorder %s24, 1
    %p193 = por %p191, %p192
    %p194 = scmp.ne.s32.totalorder %s186, %s189
    %p195 = scmp.eq.s32.totalorder %s24, 0
    %p196 = por %p194, %p195
    %p197 = scmp.ne.s32.totalorder %s186, %s189
    %p198 = scmp.eq.s32.totalorder %s29, 1
    %p199 = por %p197, %p198
    %p200 = scmp.ne.s32.totalorder %s189, %s190
    %p201 = scmp.eq.s32.totalorder %s29, 0
    %p202 = por %p200, %p201
    %p203 = scmp.ne.s32.totalorder %s189, %s190
    %p204 = scmp.eq.s32.totalorder %s30, 1
    %p205 = por %p203, %p204
    %p207 = scmp.ne.s32.totalorder %s190, %s206
    %p208 = scmp.eq.s32.totalorder %s30, 0
    %p209 = por %p207, %p208
    %s210 = ssub.s32 %s24, %s31
    %p211 = scmp.eq.s32.totalorder %s210, 0
    %s213 = sadd.s32 %s212, 1
    %s214 = scalar_select %p211, %s212, %s213
    %p217 = pneg %p211
    %p218 = scmp.eq.s32.totalorder %s24, 1
    %p219 = por %p217, %p218
    %p220 = scmp.ne.s32.totalorder %s212, %s215
    %p221 = scmp.eq.s32.totalorder %s24, 0
    %p222 = por %p220, %p221
    %p223 = scmp.ne.s32.totalorder %s212, %s215
    %p224 = scmp.eq.s32.totalorder %s29, 1
    %p225 = por %p223, %p224
    %p226 = scmp.ne.s32.totalorder %s215, %s216
    %p227 = scmp.eq.s32.totalorder %s29, 0
    %p228 = por %p226, %p227
    %p229 = scmp.ne.s32.totalorder %s215, %s216
    %p230 = scmp.eq.s32.totalorder %s30, 1
    %p231 = por %p229, %p230
    %p233 = scmp.ne.s32.totalorder %s216, %s232
    %p234 = scmp.eq.s32.totalorder %s30, 0
    %p235 = por %p233, %p234
    %s236 = ssub.s32 %s24, %s31
    %p237 = scmp.eq.s32.totalorder %s236, 0
    %s239 = sadd.s32 %s238, 1
    %s240 = scalar_select %p237, %s238, %s239
    %p243 = pneg %p237
    %p244 = scmp.eq.s32.totalorder %s24, 1
    %p245 = por %p243, %p244
    %p246 = scmp.ne.s32.totalorder %s238, %s241
    %p247 = scmp.eq.s32.totalorder %s24, 0
    %p248 = por %p246, %p247
    %p249 = scmp.ne.s32.totalorder %s238, %s241
    %p250 = scmp.eq.s32.totalorder %s29, 1
    %p251 = por %p249, %p250
    %p252 = scmp.ne.s32.totalorder %s241, %s242
    %p253 = scmp.eq.s32.totalorder %s29, 0
    %p254 = por %p252, %p253
    %p255 = scmp.ne.s32.totalorder %s241, %s242
    %p256 = scmp.eq.s32.totalorder %s30, 1
    %p257 = por %p255, %p256
    %p259 = scmp.ne.s32.totalorder %s242, %s258
    %p260 = scmp.eq.s32.totalorder %s30, 0
    %p261 = por %p259, %p260
    %s262 = ssub.s32 %s24, %s31
    %p263 = scmp.eq.s32.totalorder %s262, 0
    %s265 = sadd.s32 %s264, 1
    %s266 = scalar_select %p263, %s264, %s265
    %p269 = pneg %p263
    %p270 = scmp.eq.s32.totalorder %s24, 1
    %p271 = por %p269, %p270
    %p272 = scmp.ne.s32.totalorder %s264, %s267
    %p273 = scmp.eq.s32.totalorder %s24, 0
    %p274 = por %p272, %p273
    %p275 = scmp.ne.s32.totalorder %s264, %s267
    %p276 = scmp.eq.s32.totalorder %s29, 1
    %p277 = por %p275, %p276
    %p278 = scmp.ne.s32.totalorder %s267, %s268
    %p279 = scmp.eq.s32.totalorder %s29, 0
    %p280 = por %p278, %p279
    %p281 = scmp.ne.s32.totalorder %s267, %s268
    %p282 = scmp.eq.s32.totalorder %s30, 1
    %p283 = por %p281, %p282
    %p285 = scmp.ne.s32.totalorder %s268, %s284
    %p286 = scmp.eq.s32.totalorder %s30, 0
    %p287 = por %p285, %p286
    %s288 = ssub.s32 %s24, %s31
    %p289 = scmp.eq.s32.totalorder %s288, 0
    %s291 = sadd.s32 %s290, 1
    %s292 = scalar_select %p289, %s290, %s291
    %p295 = pneg %p289
    %p296 = scmp.eq.s32.totalorder %s24, 1
    %p297 = por %p295, %p296
    %p298 = scmp.ne.s32.totalorder %s290, %s293
    %p299 = scmp.eq.s32.totalorder %s24, 0
    %p300 = por %p298, %p299
    %p301 = scmp.ne.s32.totalorder %s290, %s293
    %p302 = scmp.eq.s32.totalorder %s29, 1
    %p303 = por %p301, %p302
    %p304 = scmp.ne.s32.totalorder %s293, %s294
    %p305 = scmp.eq.s32.totalorder %s29, 0
    %p306 = por %p304, %p305
    %p307 = scmp.ne.s32.totalorder %s293, %s294
    %p308 = scmp.eq.s32.totalorder %s30, 1
    %p309 = por %p307, %p308
    %p311 = scmp.ne.s32.totalorder %s294, %s310
    %p312 = scmp.eq.s32.totalorder %s30, 0
    %p313 = por %p311, %p312
    %s314 = ssub.s32 %s24, %s31
    %p315 = scmp.eq.s32.totalorder %s314, 0
    %s317 = sadd.s32 %s316, 1
    %s318 = scalar_select %p315, %s316, %s317
    %p321 = pneg %p315
    %p322 = scmp.eq.s32.totalorder %s24, 1
    %p323 = por %p321, %p322
    %p324 = scmp.ne.s32.totalorder %s316, %s319
    %p325 = scmp.eq.s32.totalorder %s24, 0
    %p326 = por %p324, %p325
    %p327 = scmp.ne.s32.totalorder %s316, %s319
    %p328 = scmp.eq.s32.totalorder %s29, 1
    %p329 = por %p327, %p328
    %p330 = scmp.ne.s32.totalorder %s319, %s320
    %p331 = scmp.eq.s32.totalorder %s29, 0
    %p332 = por %p330, %p331
    %p333 = scmp.ne.s32.totalorder %s319, %s320
    %p334 = scmp.eq.s32.totalorder %s30, 1
    %p335 = por %p333, %p334
    %p337 = scmp.ne.s32.totalorder %s320, %s336
    %p338 = scmp.eq.s32.totalorder %s30, 0
    %p339 = por %p337, %p338
    %s340 = ssub.s32 %s24, %s31
    %p341 = scmp.eq.s32.totalorder %s340, 0
    %s343 = sadd.s32 %s342, 1
    %s344 = scalar_select %p341, %s342, %s343
    %p347 = pneg %p341
    %p348 = scmp.eq.s32.totalorder %s24, 1
    %p349 = por %p347, %p348
    %p350 = scmp.ne.s32.totalorder %s342, %s345
    %p351 = scmp.eq.s32.totalorder %s24, 0
    %p352 = por %p350, %p351
    %p353 = scmp.ne.s32.totalorder %s342, %s345
    %p354 = scmp.eq.s32.totalorder %s29, 1
    %p355 = por %p353, %p354
    %p356 = scmp.ne.s32.totalorder %s345, %s346
    %p357 = scmp.eq.s32.totalorder %s29, 0
    %p358 = por %p356, %p357
    %p359 = scmp.ne.s32.totalorder %s345, %s346
    %p360 = scmp.eq.s32.totalorder %s30, 1
    %p361 = por %p359, %p360
    %p363 = scmp.ne.s32.totalorder %s346, %s362
    %p364 = scmp.eq.s32.totalorder %s30, 0
    %p365 = por %p363, %p364
    %s366 = ssub.s32 %s24, %s31
    %p367 = scmp.eq.s32.totalorder %s366, 0
    %s369 = sadd.s32 %s368, 1
    %s370 = scalar_select %p367, %s368, %s369
    %p373 = pneg %p367
    %p374 = scmp.eq.s32.totalorder %s24, 1
    %p375 = por %p373, %p374
    %p376 = scmp.ne.s32.totalorder %s368, %s371
    %p377 = scmp.eq.s32.totalorder %s24, 0
    %p378 = por %p376, %p377
    %p379 = scmp.ne.s32.totalorder %s368, %s371
    %p380 = scmp.eq.s32.totalorder %s29, 1
    %p381 = por %p379, %p380
    %p382 = scmp.ne.s32.totalorder %s371, %s372
    %p383 = scmp.eq.s32.totalorder %s29, 0
    %p384 = por %p382, %p383
    %p385 = scmp.ne.s32.totalorder %s371, %s372
    %p386 = scmp.eq.s32.totalorder %s30, 1
    %p387 = por %p385, %p386
    %p389 = scmp.ne.s32.totalorder %s372, %s388
    %p390 = scmp.eq.s32.totalorder %s30, 0
    %p391 = por %p389, %p390
    %s392 = ssub.s32 %s24, %s31
    %p393 = scmp.eq.s32.totalorder %s392, 0
    %s395 = sadd.s32 %s394, 1
    %s396 = scalar_select %p393, %s394, %s395
    %p399 = pneg %p393
    %p400 = scmp.eq.s32.totalorder %s24, 1
    %p401 = por %p399, %p400
    %p402 = scmp.ne.s32.totalorder %s394, %s397
    %p403 = scmp.eq.s32.totalorder %s24, 0
    %p404 = por %p402, %p403
    %p405 = scmp.ne.s32.totalorder %s394, %s397
    %p406 = scmp.eq.s32.totalorder %s29, 1
    %p407 = por %p405, %p406
    %p408 = scmp.ne.s32.totalorder %s397, %s398
    %p409 = scmp.eq.s32.totalorder %s29, 0
    %p410 = por %p408, %p409
    %p411 = scmp.ne.s32.totalorder %s397, %s398
    %p412 = scmp.eq.s32.totalorder %s30, 1
    %p413 = por %p411, %p412
    %p415 = scmp.ne.s32.totalorder %s398, %s414
    %p416 = scmp.eq.s32.totalorder %s30, 0
    %p417 = por %p415, %p416
    %s418 = ssub.s32 %s24, %s31
    %p419 = scmp.eq.s32.totalorder %s418, 0
    %s421 = sadd.s32 %s420, 1
    %s422 = scalar_select %p419, %s420, %s421
    %p425 = pneg %p419
    %p426 = scmp.eq.s32.totalorder %s24, 1
    %p427 = por %p425, %p426
    %p428 = scmp.ne.s32.totalorder %s420, %s423
    %p429 = scmp.eq.s32.totalorder %s24, 0
    %p430 = por %p428, %p429
    %p431 = scmp.ne.s32.totalorder %s420, %s423
    %p432 = scmp.eq.s32.totalorder %s29, 1
    %p433 = por %p431, %p432
    %p434 = scmp.ne.s32.totalorder %s423, %s424
    %p435 = scmp.eq.s32.totalorder %s29, 0
    %p436 = por %p434, %p435
    %p437 = scmp.ne.s32.totalorder %s423, %s424
    %p438 = scmp.eq.s32.totalorder %s30, 1
    %p439 = por %p437, %p438
    %p441 = scmp.ne.s32.totalorder %s424, %s440
    %p442 = scmp.eq.s32.totalorder %s30, 0
    %p443 = por %p441, %p442
    %s444 = ssub.s32 %s24, %s31
    %p445 = scmp.eq.s32.totalorder %s444, 0
    %s447 = sadd.s32 %s446, 1
    %s448 = scalar_select %p445, %s446, %s447
    %p451 = pneg %p445
    %p452 = scmp.eq.s32.totalorder %s24, 1
    %p453 = por %p451, %p452
    %p454 = scmp.ne.s32.totalorder %s446, %s449
    %p455 = scmp.eq.s32.totalorder %s24, 0
    %p456 = por %p454, %p455
    %p457 = scmp.ne.s32.totalorder %s446, %s449
    %p458 = scmp.eq.s32.totalorder %s29, 1
    %p459 = por %p457, %p458
    %p460 = scmp.ne.s32.totalorder %s449, %s450
    %p461 = scmp.eq.s32.totalorder %s29, 0
    %p462 = por %p460, %p461
    %p463 = scmp.ne.s32.totalorder %s449, %s450
    %p464 = scmp.eq.s32.totalorder %s30, 1
    %p465 = por %p463, %p464
    %p467 = scmp.ne.s32.totalorder %s450, %s466
    %p468 = scmp.eq.s32.totalorder %s30, 0
    %p469 = por %p467, %p468
    %s471 = sadd.s32 %s470, 1
    %p474 = scmp.eq.s32.totalorder %s24, 1
    %p475 = scmp.ne.s32.totalorder %s470, %s472
    %p476 = scmp.eq.s32.totalorder %s24, 0
    %p477 = por %p475, %p476
    %p478 = scmp.ne.s32.totalorder %s470, %s472
    %p479 = scmp.eq.s32.totalorder %s29, 1
    %p480 = por %p478, %p479
    %p481 = scmp.ne.s32.totalorder %s472, %s473
    %p482 = scmp.eq.s32.totalorder %s29, 0
    %p483 = por %p481, %p482
    %p484 = scmp.ne.s32.totalorder %s472, %s473
    %p485 = scmp.eq.s32.totalorder %s30, 1
    %p486 = por %p484, %p485
    %p488 = scmp.ne.s32.totalorder %s473, %s487
    %p489 = scmp.eq.s32.totalorder %s30, 0
    %p490 = por %p488, %p489
    %p491 = scmp.le.s32.totalorder 1, %s24
    %p492 = scmp.lt.s32.totalorder %s24, 3
    %p493 = pnand %p491, %p492
    %p494 = pneg %p493
    // Predicated region
    $region9: #{cnf_aag_encoder_forward.1} parent=5 // pred_check
      _
    $region10: #{cnf_aag_encoder_forward.1} parent=5 // pred_check_branch
      %496 = sbr.rel (%p493) target = $region12
    $region11: #{cnf_aag_encoder_forward.1} parent=5 // pred_region
      %s497 = ssub.s32 %s24, 1
      // Predicated region
      $region13: #{cnf_aag_encoder_forward.1} parent=11 // pred_check
        %p498 = pneg %p45
      $region14: #{cnf_aag_encoder_forward.1} parent=11 // pred_check_branch
        %500 = sbr.rel (%p498) target = $region16
      $region15: #{cnf_aag_encoder_forward.1} parent=11 // pred_region
        _
      $region16: #{cnf_aag_encoder_forward.1} parent=11 // pred_fallthru
        _
      // Predicated region
      $region17: #{cnf_aag_encoder_forward.1} parent=11 // pred_check
        %p501 = pneg %p66
      $region18: #{cnf_aag_encoder_forward.1} parent=11 // pred_check_branch
        %503 = sbr.rel (%p501) target = $region20
      $region19: #{cnf_aag_encoder_forward.1} parent=11 // pred_region
        _
      $region20: #{cnf_aag_encoder_forward.1} parent=11 // pred_fallthru
        _
      // Predicated region
      $region21: #{cnf_aag_encoder_forward.1} parent=11 // pred_check
        %p504 = pneg %p87
      $region22: #{cnf_aag_encoder_forward.1} parent=11 // pred_check_branch
        %506 = sbr.rel (%p504) target = $region24
      $region23: #{cnf_aag_encoder_forward.1} parent=11 // pred_region
        _
      $region24: #{cnf_aag_encoder_forward.1} parent=11 // pred_fallthru
        _
      // Predicated region
      $region25: #{cnf_aag_encoder_forward.1} parent=11 // pred_check
        %p507 = pneg %p108
      $region26: #{cnf_aag_encoder_forward.1} parent=11 // pred_check_branch
        %509 = sbr.rel (%p507) target = $region28
      $region27: #{cnf_aag_encoder_forward.1} parent=11 // pred_region
        _
      $region28: #{cnf_aag_encoder_forward.1} parent=11 // pred_fallthru
        _
      // Predicated region
      $region29: #{cnf_aag_encoder_forward.1} parent=11 // pred_check
        %p510 = pneg %p129
      $region30: #{cnf_aag_encoder_forward.1} parent=11 // pred_check_branch
        %512 = sbr.rel (%p510) target = $region32
      $region31: #{cnf_aag_encoder_forward.1} parent=11 // pred_region
        _
      $region32: #{cnf_aag_encoder_forward.1} parent=11 // pred_fallthru
        _
      // Predicated region
      $region33: #{cnf_aag_encoder_forward.1} parent=11 // pred_check
        %p513 = pneg %p150
      $region34: #{cnf_aag_encoder_forward.1} parent=11 // pred_check_branch
        %515 = sbr.rel (%p513) target = $region36
      $region35: #{cnf_aag_encoder_forward.1} parent=11 // pred_region
        _
      $region36: #{cnf_aag_encoder_forward.1} parent=11 // pred_fallthru
        _
    $region12: #{cnf_aag_encoder_forward.1} parent=5 // pred_fallthru
      _
    %p516 = scmp.lt.s32.totalorder %s24, 2
    // Predicated region
    $region37: #{cnf_aag_encoder_forward.1} parent=5 // pred_check
      %p517 = pneg %p516
    $region38: #{cnf_aag_encoder_forward.1} parent=5 // pred_check_branch
      %519 = sbr.rel (%p517) target = $region40
    $region39: #{cnf_aag_encoder_forward.1} parent=5 // pred_region
      // Predicated region
      $region41: #{cnf_aag_encoder_forward.1} parent=39 // pred_check
        %p520 = pneg %p170
      $region42: #{cnf_aag_encoder_forward.1} parent=39 // pred_check_branch
        %522 = sbr.rel (%p520) target = $region44
      $region43: #{cnf_aag_encoder_forward.1} parent=39 // pred_region
        %p523 = scmp.lt.s32.totalorder %s24, 1
        %s524 = scalar_select %p523, %s24, 1
        %s525 = smul.addr %s524, 16
        %s526 = smul.addr %s525, 4
        %s527 = scalar_lea.vmem %s6, %s526
      $region44: #{cnf_aag_encoder_forward.1} parent=39 // pred_fallthru
        _
      // Predicated region
      $region45: #{cnf_aag_encoder_forward.1} parent=39 // pred_check
        %p528 = pneg %p196
      $region46: #{cnf_aag_encoder_forward.1} parent=39 // pred_check_branch
        %530 = sbr.rel (%p528) target = $region48
      $region47: #{cnf_aag_encoder_forward.1} parent=39 // pred_region
        %p531 = scmp.lt.s32.totalorder %s24, 1
        %s532 = scalar_select %p531, %s24, 1
        %s533 = smul.addr %s532, 16
        %s534 = smul.addr %s533, 4
        %s535 = scalar_lea.vmem %s7, %s534
      $region48: #{cnf_aag_encoder_forward.1} parent=39 // pred_fallthru
        _
      // Predicated region
      $region49: #{cnf_aag_encoder_forward.1} parent=39 // pred_check
        %p536 = pneg %p222
      $region50: #{cnf_aag_encoder_forward.1} parent=39 // pred_check_branch
        %538 = sbr.rel (%p536) target = $region52
      $region51: #{cnf_aag_encoder_forward.1} parent=39 // pred_region
        %p539 = scmp.lt.s32.totalorder %s24, 1
        %s540 = scalar_select %p539, %s24, 1
        %s541 = scalar_lea.vmem %s8, %s540
      $region52: #{cnf_aag_encoder_forward.1} parent=39 // pred_fallthru
        _
      // Predicated region
      $region53: #{cnf_aag_encoder_forward.1} parent=39 // pred_check
        %p542 = pneg %p248
      $region54: #{cnf_aag_encoder_forward.1} parent=39 // pred_check_branch
        %544 = sbr.rel (%p542) target = $region56
      $region55: #{cnf_aag_encoder_forward.1} parent=39 // pred_region
        %p545 = scmp.lt.s32.totalorder %s24, 1
        %s546 = scalar_select %p545, %s24, 1
        %s547 = smul.addr %s546, 16
        %s548 = smul.addr %s547, 4
        %s549 = scalar_lea.vmem %s9, %s548
      $region56: #{cnf_aag_encoder_forward.1} parent=39 // pred_fallthru
        _
      // Predicated region
      $region57: #{cnf_aag_encoder_forward.1} parent=39 // pred_check
        %p550 = pneg %p274
      $region58: #{cnf_aag_encoder_forward.1} parent=39 // pred_check_branch
        %552 = sbr.rel (%p550) target = $region60
      $region59: #{cnf_aag_encoder_forward.1} parent=39 // pred_region
        %p553 = scmp.lt.s32.totalorder %s24, 1
        %s554 = scalar_select %p553, %s24, 1
        %s555 = smul.addr %s554, 4
        %s556 = scalar_lea.vmem %s10, %s555
      $region60: #{cnf_aag_encoder_forward.1} parent=39 // pred_fallthru
        _
      // Predicated region
      $region61: #{cnf_aag_encoder_forward.1} parent=39 // pred_check
        %p557 = pneg %p300
      $region62: #{cnf_aag_encoder_forward.1} parent=39 // pred_check_branch
        %559 = sbr.rel (%p557) target = $region64
      $region63: #{cnf_aag_encoder_forward.1} parent=39 // pred_region
        %p560 = scmp.lt.s32.totalorder %s24, 1
        %s561 = scalar_select %p560, %s24, 1
        %s562 = scalar_lea.vmem %s11, %s561
      $region64: #{cnf_aag_encoder_forward.1} parent=39 // pred_fallthru
        _
      // Predicated region
      $region65: #{cnf_aag_encoder_forward.1} parent=39 // pred_check
        %p563 = pneg %p326
      $region66: #{cnf_aag_encoder_forward.1} parent=39 // pred_check_branch
        %565 = sbr.rel (%p563) target = $region68
      $region67: #{cnf_aag_encoder_forward.1} parent=39 // pred_region
        %p566 = scmp.lt.s32.totalorder %s24, 1
        %s567 = scalar_select %p566, %s24, 1
        %s568 = smul.addr %s567, 16
        %s569 = smul.addr %s568, 4
        %s570 = scalar_lea.vmem %s12, %s569
      $region68: #{cnf_aag_encoder_forward.1} parent=39 // pred_fallthru
        _
      // Predicated region
      $region69: #{cnf_aag_encoder_forward.1} parent=39 // pred_check
        %p571 = pneg %p352
      $region70: #{cnf_aag_encoder_forward.1} parent=39 // pred_check_branch
        %573 = sbr.rel (%p571) target = $region72
      $region71: #{cnf_aag_encoder_forward.1} parent=39 // pred_region
        %p574 = scmp.lt.s32.totalorder %s24, 1
        %s575 = scalar_select %p574, %s24, 1
        %s576 = smul.addr %s575, 16
        %s577 = smul.addr %s576, 4
        %s578 = scalar_lea.vmem %s13, %s577
      $region72: #{cnf_aag_encoder_forward.1} parent=39 // pred_fallthru
        _
      // Predicated region
      $region73: #{cnf_aag_encoder_forward.1} parent=39 // pred_check
        %p579 = pneg %p378
      $region74: #{cnf_aag_encoder_forward.1} parent=39 // pred_check_branch
        %581 = sbr.rel (%p579) target = $region76
      $region75: #{cnf_aag_encoder_forward.1} parent=39 // pred_region
        %p582 = scmp.lt.s32.totalorder %s24, 1
        %s583 = scalar_select %p582, %s24, 1
        %s584 = scalar_lea.vmem %s14, %s583
      $region76: #{cnf_aag_encoder_forward.1} parent=39 // pred_fallthru
        _
      // Predicated region
      $region77: #{cnf_aag_encoder_forward.1} parent=39 // pred_check
        %p585 = pneg %p404
      $region78: #{cnf_aag_encoder_forward.1} parent=39 // pred_check_branch
        %587 = sbr.rel (%p585) target = $region80
      $region79: #{cnf_aag_encoder_forward.1} parent=39 // pred_region
        %p588 = scmp.lt.s32.totalorder %s24, 1
        %s589 = scalar_select %p588, %s24, 1
        %s590 = smul.addr %s589, 16
        %s591 = smul.addr %s590, 4
        %s592 = scalar_lea.vmem %s15, %s591
      $region80: #{cnf_aag_encoder_forward.1} parent=39 // pred_fallthru
        _
      // Predicated region
      $region81: #{cnf_aag_encoder_forward.1} parent=39 // pred_check
        %p593 = pneg %p430
      $region82: #{cnf_aag_encoder_forward.1} parent=39 // pred_check_branch
        %595 = sbr.rel (%p593) target = $region84
      $region83: #{cnf_aag_encoder_forward.1} parent=39 // pred_region
        %p596 = scmp.lt.s32.totalorder %s24, 1
        %s597 = scalar_select %p596, %s24, 1
        %s598 = smul.addr %s597, 16
        %s599 = smul.addr %s598, 4
        %s600 = scalar_lea.vmem %s16, %s599
      $region84: #{cnf_aag_encoder_forward.1} parent=39 // pred_fallthru
        _
      // Predicated region
      $region85: #{cnf_aag_encoder_forward.1} parent=39 // pred_check
        %p601 = pneg %p456
      $region86: #{cnf_aag_encoder_forward.1} parent=39 // pred_check_branch
        %603 = sbr.rel (%p601) target = $region88
      $region87: #{cnf_aag_encoder_forward.1} parent=39 // pred_region
        %p604 = scmp.lt.s32.totalorder %s24, 1
        %s605 = scalar_select %p604, %s24, 1
        %s606 = scalar_lea.vmem %s17, %s605
      $region88: #{cnf_aag_encoder_forward.1} parent=39 // pred_fallthru
        _
    $region40: #{cnf_aag_encoder_forward.1} parent=5 // pred_fallthru
      _
    %p607 = scmp.le.s32.totalorder 1, %s24
    %p608 = scmp.lt.s32.totalorder %s24, 3
    %p609 = pnand %p607, %p608
    %p610 = pneg %p609
    // Predicated region
    $region89: #{cnf_aag_encoder_forward.1} parent=5 // pred_check
      _
    $region90: #{cnf_aag_encoder_forward.1} parent=5 // pred_check_branch
      %612 = sbr.rel (%p609) target = $region92
    $region91: #{cnf_aag_encoder_forward.1} parent=5 // pred_region
      %s613 = ssub.s32 %s24, 1
      %p614 = pneg %p45
      %p615 = pneg %p42
      %p616 = pneg %p66
      %p617 = pneg %p63
      %p618 = pneg %p87
      %p619 = pneg %p84
      %p620 = pneg %p108
      %p621 = pneg %p105
      %p622 = pneg %p129
      %p623 = pneg %p126
      %p624 = pneg %p150
      %p625 = pneg %p147
      %p626 = scmp.lt.s32.totalorder %s29, 1
      %s627 = scalar_select %p626, %s29, 1
      %s628 = smul.addr %s627, 16
      %s629 = smul.addr %s628, 4
      %s630 = scalar_lea.vmem %s6, %s629
      %p631 = pneg %p176
      %p632 = pneg %p173
      %p633 = scmp.lt.s32.totalorder %s29, 1
      %s634 = scalar_select %p633, %s29, 1
      %s635 = smul.addr %s634, 16
      %s636 = smul.addr %s635, 4
      %s637 = scalar_lea.vmem %s7, %s636
      %p638 = pneg %p202
      %p639 = pneg %p199
      %p640 = scmp.lt.s32.totalorder %s29, 1
      %s641 = scalar_select %p640, %s29, 1
      %s642 = scalar_lea.vmem %s8, %s641
      %p643 = pneg %p228
      %p644 = pneg %p225
      %p645 = scmp.lt.s32.totalorder %s29, 1
      %s646 = scalar_select %p645, %s29, 1
      %s647 = smul.addr %s646, 16
      %s648 = smul.addr %s647, 4
      %s649 = scalar_lea.vmem %s9, %s648
      %p650 = pneg %p254
      %p651 = pneg %p251
      %p652 = scmp.lt.s32.totalorder %s29, 1
      %s653 = scalar_select %p652, %s29, 1
      %s654 = smul.addr %s653, 4
      %s655 = scalar_lea.vmem %s10, %s654
      %p656 = pneg %p280
      %p657 = pneg %p277
      %p658 = scmp.lt.s32.totalorder %s29, 1
      %s659 = scalar_select %p658, %s29, 1
      %s660 = scalar_lea.vmem %s11, %s659
      %p661 = pneg %p306
      %p662 = pneg %p303
      %p663 = scmp.lt.s32.totalorder %s29, 1
      %s664 = scalar_select %p663, %s29, 1
      %s665 = smul.addr %s664, 16
      %s666 = smul.addr %s665, 4
      %s667 = scalar_lea.vmem %s12, %s666
      %p668 = pneg %p332
      %p669 = pneg %p329
      %p670 = scmp.lt.s32.totalorder %s29, 1
      %s671 = scalar_select %p670, %s29, 1
      %s672 = smul.addr %s671, 16
      %s673 = smul.addr %s672, 4
      %s674 = scalar_lea.vmem %s13, %s673
      %p675 = pneg %p358
      %p676 = pneg %p355
      %p677 = scmp.lt.s32.totalorder %s29, 1
      %s678 = scalar_select %p677, %s29, 1
      %s679 = scalar_lea.vmem %s14, %s678
      %p680 = pneg %p384
      %p681 = pneg %p381
      %p682 = scmp.lt.s32.totalorder %s29, 1
      %s683 = scalar_select %p682, %s29, 1
      %s684 = smul.addr %s683, 16
      %s685 = smul.addr %s684, 4
      %s686 = scalar_lea.vmem %s15, %s685
      %p687 = pneg %p410
      %p688 = pneg %p407
      %p689 = scmp.lt.s32.totalorder %s29, 1
      %s690 = scalar_select %p689, %s29, 1
      %s691 = smul.addr %s690, 16
      %s692 = smul.addr %s691, 4
      %s693 = scalar_lea.vmem %s16, %s692
      %p694 = pneg %p436
      %p695 = pneg %p433
      %p696 = scmp.lt.s32.totalorder %s29, 1
      %s697 = scalar_select %p696, %s29, 1
      %s698 = scalar_lea.vmem %s17, %s697
      %p699 = pneg %p462
      %p700 = pneg %p459
      %p701 = pneg %p483
      %p702 = pneg %p480
      %p703 = scmp.lt.s32.totalorder %s29, 1
      %s704 = scalar_select %p703, %s29, 1
      %s705 = smul.addr %s704, 16
      %s706 = smul.addr %s705, 4
      %s707 = scalar_lea.vmem %s6, %s706
      %p708 = scmp.lt.s32.totalorder %s29, 1
      %s709 = scalar_select %p708, %s29, 1
      %s710 = smul.addr %s709, 16
      %s711 = smul.addr %s710, 4
      %s712 = scalar_lea.vmem %s7, %s711
      %p713 = scmp.lt.s32.totalorder %s29, 1
      %s714 = scalar_select %p713, %s29, 1
      %s715 = scalar_lea.vmem %s8, %s714
      %p716 = scmp.lt.s32.totalorder %s29, 1
      %s717 = scalar_select %p716, %s29, 1
      %s718 = smul.addr %s717, 16
      %s719 = smul.addr %s718, 4
      %s720 = scalar_lea.vmem %s9, %s719
      %p721 = scmp.lt.s32.totalorder %s29, 1
      %s722 = scalar_select %p721, %s29, 1
      %s723 = smul.addr %s722, 4
      %s724 = scalar_lea.vmem %s10, %s723
      %p725 = scmp.lt.s32.totalorder %s29, 1
      %s726 = scalar_select %p725, %s29, 1
      %s727 = scalar_lea.vmem %s11, %s726
      %p728 = scmp.lt.s32.totalorder %s29, 1
      %s729 = scalar_select %p728, %s29, 1
      %s730 = smul.addr %s729, 16
      %s731 = smul.addr %s730, 4
      %s732 = scalar_lea.vmem %s12, %s731
      %p733 = scmp.lt.s32.totalorder %s29, 1
      %s734 = scalar_select %p733, %s29, 1
      %s735 = smul.addr %s734, 16
      %s736 = smul.addr %s735, 4
      %s737 = scalar_lea.vmem %s13, %s736
      %p738 = scmp.lt.s32.totalorder %s29, 1
      %s739 = scalar_select %p738, %s29, 1
      %s740 = scalar_lea.vmem %s14, %s739
      %p741 = scmp.lt.s32.totalorder %s29, 1
      %s742 = scalar_select %p741, %s29, 1
      %s743 = smul.addr %s742, 16
      %s744 = smul.addr %s743, 4
      %s745 = scalar_lea.vmem %s15, %s744
      %p746 = scmp.lt.s32.totalorder %s29, 1
      %s747 = scalar_select %p746, %s29, 1
      %s748 = smul.addr %s747, 16
      %s749 = smul.addr %s748, 4
      %s750 = scalar_lea.vmem %s16, %s749
      %p751 = scmp.lt.s32.totalorder %s29, 1
      %s752 = scalar_select %p751, %s29, 1
      %s753 = scalar_lea.vmem %s17, %s752
      %p755 = scmp.eq.s32.totalorder %s29, 0
      // Predicated region
      $region93: #{cnf_aag_encoder_forward.1} parent=91 // pred_check
        %p756 = pneg %p755
      $region94: #{cnf_aag_encoder_forward.1} parent=91 // pred_check_branch
        %758 = sbr.rel (%p756) target = $region96
      $region95: #{cnf_aag_encoder_forward.1} parent=91 // pred_region
        %v759 = vld [vmem:[%s0] sm:$0xff]
        %v760 = vld [vmem:[%s0 + $0x8] sm:$0xff]
        %v761 = vld [vmem:[%s0 + $0x10] sm:$0xff]
        %v762 = vld [vmem:[%s0 + $0x18] sm:$0xff]
        %v763 = vld [vmem:[%s0 + $0x20] sm:$0xff]
        %v764 = vld [vmem:[%s0 + $0x28] sm:$0xff]
        %v765 = vld [vmem:[%s0 + $0x30] sm:$0xff]
        %v766 = vld [vmem:[%s0 + $0x38] sm:$0xff]
        %v767 = vld [vmem:[%s0 + $0x40] sm:$0xff]
        %v768 = vld [vmem:[%s0 + $0x48] sm:$0xff]
        %v769 = vld [vmem:[%s0 + $0x50] sm:$0xff]
        %v770 = vld [vmem:[%s0 + $0x58] sm:$0xff]
        %v771 = vld [vmem:[%s0 + $0x60] sm:$0xff]
        %v772 = vld [vmem:[%s0 + $0x68] sm:$0xff]
        %v773 = vld [vmem:[%s0 + $0x70] sm:$0xff]
        %v774 = vld [vmem:[%s0 + $0x78] sm:$0xff]
        %775 = vst [vmem:[#allocation2] sm:$0xff] %v759
        %776 = vst [vmem:[#allocation2 + $0x8] sm:$0xff] %v760
        %777 = vst [vmem:[#allocation2 + $0x10] sm:$0xff] %v761
        %778 = vst [vmem:[#allocation2 + $0x18] sm:$0xff] %v762
        %779 = vst [vmem:[#allocation2 + $0x20] sm:$0xff] %v763
        %780 = vst [vmem:[#allocation2 + $0x28] sm:$0xff] %v764
        %781 = vst [vmem:[#allocation2 + $0x30] sm:$0xff] %v765
        %782 = vst [vmem:[#allocation2 + $0x38] sm:$0xff] %v766
        %783 = vst [vmem:[#allocation2 + $0x40] sm:$0xff] %v767
        %784 = vst [vmem:[#allocation2 + $0x48] sm:$0xff] %v768
        %785 = vst [vmem:[#allocation2 + $0x50] sm:$0xff] %v769
        %786 = vst [vmem:[#allocation2 + $0x58] sm:$0xff] %v770
        %787 = vst [vmem:[#allocation2 + $0x60] sm:$0xff] %v771
        %788 = vst [vmem:[#allocation2 + $0x68] sm:$0xff] %v772
        %789 = vst [vmem:[#allocation2 + $0x70] sm:$0xff] %v773
        %790 = vst [vmem:[#allocation2 + $0x78] sm:$0xff] %v774
      $region96: #{cnf_aag_encoder_forward.1} parent=91 // pred_fallthru
        _
      %v791 = vld [vmem:[#allocation2] sm:$0xff]
      %v792 = vld [vmem:[#allocation2 + $0x8] sm:$0xff]
      %v793 = vld [vmem:[#allocation2 + $0x10] sm:$0xff]
      %v794 = vld [vmem:[#allocation2 + $0x18] sm:$0xff]
      %v795 = vld [vmem:[#allocation2 + $0x20] sm:$0xff]
      %v796 = vld [vmem:[#allocation2 + $0x28] sm:$0xff]
      %v797 = vld [vmem:[#allocation2 + $0x30] sm:$0xff]
      %v798 = vld [vmem:[#allocation2 + $0x38] sm:$0xff]
      %v799 = vld [vmem:[#allocation2 + $0x40] sm:$0xff]
      %v800 = vld [vmem:[#allocation2 + $0x48] sm:$0xff]
      %v801 = vld [vmem:[#allocation2 + $0x50] sm:$0xff]
      %v802 = vld [vmem:[#allocation2 + $0x58] sm:$0xff]
      %v803 = vld [vmem:[#allocation2 + $0x60] sm:$0xff]
      %v804 = vld [vmem:[#allocation2 + $0x68] sm:$0xff]
      %v805 = vld [vmem:[#allocation2 + $0x70] sm:$0xff]
      %v806 = vld [vmem:[#allocation2 + $0x78] sm:$0xff]
      %v807 = vpack.c.bf16 %v792, %v791
      %v808 = vpack.c.bf16 %v794, %v793
      %v809 = vpack.c.bf16 %v796, %v795
      %v810 = vpack.c.bf16 %v798, %v797
      %v811 = vpack.c.bf16 %v800, %v799
      %v812 = vpack.c.bf16 %v802, %v801
      %v813 = vpack.c.bf16 %v804, %v803
      %v814 = vpack.c.bf16 %v806, %v805
      %v815 = vld [vmem:[%s707] sm:$0xf]
      %v816 = vld [vmem:[%s707 + $0x4] sm:$0xf]
      %v817 = vld [vmem:[%s707 + $0x8] sm:$0xf]
      %v818 = vld [vmem:[%s707 + $0xc] sm:$0xf]
      %v819 = vld [vmem:[%s707 + $0x10] sm:$0xf]
      %v820 = vld [vmem:[%s707 + $0x14] sm:$0xf]
      %v821 = vld [vmem:[%s707 + $0x18] sm:$0xf]
      %v822 = vld [vmem:[%s707 + $0x1c] sm:$0xf]
      %v823 = vld [vmem:[%s707 + $0x20] sm:$0xf]
      %v824 = vld [vmem:[%s707 + $0x24] sm:$0xf]
      %v825 = vld [vmem:[%s707 + $0x28] sm:$0xf]
      %v826 = vld [vmem:[%s707 + $0x2c] sm:$0xf]
      %v827 = vld [vmem:[%s707 + $0x30] sm:$0xf]
      %v828 = vld [vmem:[%s707 + $0x34] sm:$0xf]
      %v829 = vld [vmem:[%s707 + $0x38] sm:$0xf]
      %v830 = vld [vmem:[%s707 + $0x3c] sm:$0xf]
      %v831 = vld [vmem:[%s712] sm:$0xf]
      %v832 = vld [vmem:[%s712 + $0x4] sm:$0xf]
      %v833 = vld [vmem:[%s712 + $0x8] sm:$0xf]
      %v834 = vld [vmem:[%s712 + $0xc] sm:$0xf]
      %v835 = vld [vmem:[%s712 + $0x10] sm:$0xf]
      %v836 = vld [vmem:[%s712 + $0x14] sm:$0xf]
      %v837 = vld [vmem:[%s712 + $0x18] sm:$0xf]
      %v838 = vld [vmem:[%s712 + $0x1c] sm:$0xf]
      %v839 = vld [vmem:[%s712 + $0x20] sm:$0xf]
      %v840 = vld [vmem:[%s712 + $0x24] sm:$0xf]
      %v841 = vld [vmem:[%s712 + $0x28] sm:$0xf]
      %v842 = vld [vmem:[%s712 + $0x2c] sm:$0xf]
      %v843 = vld [vmem:[%s712 + $0x30] sm:$0xf]
      %v844 = vld [vmem:[%s712 + $0x34] sm:$0xf]
      %v845 = vld [vmem:[%s712 + $0x38] sm:$0xf]
      %v846 = vld [vmem:[%s712 + $0x3c] sm:$0xf]
      %v863 = vunpack.c.l.b16 %v831
      %v864 = vunpack.c.l.b16 %v832
      %v865 = vunpack.c.l.b16 %v833
      %v866 = vunpack.c.l.b16 %v834
      %v867 = vunpack.c.l.b16 %v835
      %v868 = vunpack.c.l.b16 %v836
      %v869 = vunpack.c.l.b16 %v837
      %v870 = vunpack.c.l.b16 %v838
      %v871 = vunpack.c.l.b16 %v839
      %v872 = vunpack.c.l.b16 %v840
      %v873 = vunpack.c.l.b16 %v841
      %v874 = vunpack.c.l.b16 %v842
      %v875 = vunpack.c.l.b16 %v843
      %v876 = vunpack.c.l.b16 %v844
      %v877 = vunpack.c.l.b16 %v845
      %v878 = vunpack.c.l.b16 %v846
      %v879 = vpack.c.b16 %v864, %v863
      %v880 = vpack.c.b16 %v866, %v865
      %v881 = vpack.c.b16 %v868, %v867
      %v882 = vpack.c.b16 %v870, %v869
      %v883 = vpack.c.b16 %v872, %v871
      %v884 = vpack.c.b16 %v874, %v873
      %v885 = vpack.c.b16 %v876, %v875
      %v886 = vpack.c.b16 %v878, %v877
      %895 = vmatprep.subr.bf16.mxu0 0
      %896 = vmatpush1.bf16.msra.mxu0 %v886
      %897 = vmatprep.subr.bf16.mxu0 0
      %898 = vmatpush1.bf16.msra.mxu0 %v885
      %899 = vmatprep.subr.bf16.mxu0 0
      %900 = vmatpush1.bf16.msra.mxu0 %v884
      %901 = vmatprep.subr.bf16.mxu0 0
      %902 = vmatpush1.bf16.msra.mxu0 %v883
      %903 = vmatprep.subr.bf16.mxu0 0
      %904 = vmatpush1.bf16.msra.mxu0 %v882
      %905 = vmatprep.subr.bf16.mxu0 0
      %906 = vmatpush1.bf16.msra.mxu0 %v881
      %907 = vmatprep.subr.bf16.mxu0 0
      %908 = vmatpush1.bf16.msra.mxu0 %v880
      %909 = vmatprep.subr.bf16.mxu0 0
      %910 = vmatpush1.bf16.msra.mxu0 %v879
      %911 = vmatprep.subr.bf16.mxu0 0
      %912 = vmatpush2.bf16.msra.mxu0 0
      %913 = vmatprep.subr.bf16.mxu0 0
      %914 = vmatpush2.bf16.msra.mxu0 0
      %915 = vmatprep.subr.bf16.mxu0 0
      %916 = vmatpush2.bf16.msra.mxu0 0
      %917 = vmatprep.subr.bf16.mxu0 0
      %918 = vmatpush2.bf16.msra.mxu0 0
      %919 = vmatprep.subr.bf16.mxu0 0
      %920 = vmatpush2.bf16.msra.mxu0 0
      %921 = vmatprep.subr.bf16.mxu0 0
      %922 = vmatpush2.bf16.msra.mxu0 0
      %923 = vmatprep.subr.bf16.mxu0 0
      %924 = vmatpush2.bf16.msra.mxu0 0
      %925 = vmatprep.subr.bf16.mxu0 0
      %926 = vmatpush2.bf16.msra.mxu0 0
      %927 = vmatprep.mubr.bf16.mxu0 0
      %928 = vmatmul.mubr.bf16.gmra.mxu0 %v811
      %v929 = vpop.f32.mrf.mxu0
      %v930 = vadd.f32 0.0, %v929
      %v931 = vpop.f32.mrf.mxu0
      %v932 = vpop.f32.mrf.mxu0
      %v933 = vadd.f32 0.0, %v932
      %v934 = vpop.f32.mrf.mxu0
      %935 = vmatprep.mubr.bf16.mxu0 0
      %936 = vmatmul.mubr.bf16.gmra.mxu0 %v812
      %v937 = vpop.f32.mrf.mxu0
      %v938 = vadd.f32 0.0, %v937
      %v939 = vpop.f32.mrf.mxu0
      %v940 = vpop.f32.mrf.mxu0
      %v941 = vadd.f32 0.0, %v940
      %v942 = vpop.f32.mrf.mxu0
      %943 = vmatprep.mubr.bf16.mxu0 0
      %944 = vmatmul.mubr.bf16.gmra.mxu0 %v813
      %v945 = vpop.f32.mrf.mxu0
      %v946 = vadd.f32 0.0, %v945
      %v947 = vpop.f32.mrf.mxu0
      %v948 = vpop.f32.mrf.mxu0
      %v949 = vadd.f32 0.0, %v948
      %v950 = vpop.f32.mrf.mxu0
      %951 = vmatprep.mubr.bf16.mxu0 0
      %952 = vmatmul.mubr.bf16.gmra.mxu0 %v814
      %v953 = vpop.f32.mrf.mxu0
      %v954 = vadd.f32 0.0, %v953
      %v955 = vpop.f32.mrf.mxu0
      %v956 = vpop.f32.mrf.mxu0
      %v957 = vadd.f32 0.0, %v956
      %v958 = vpop.f32.mrf.mxu0
      %959 = vmatprep.mubr.bf16.mxu0 0
      %960 = vmatmul.mubr.bf16.gmra.mxu0 %v807
      %v961 = vpop.f32.mrf.mxu0
      %v962 = vadd.f32 0.0, %v961
      %v963 = vpop.f32.mrf.mxu0
      %v964 = vpop.f32.mrf.mxu0
      %v965 = vadd.f32 0.0, %v964
      %v966 = vpop.f32.mrf.mxu0
      %967 = vmatprep.mubr.bf16.mxu0 0
      %968 = vmatmul.mubr.bf16.gmra.mxu0 %v808
      %v969 = vpop.f32.mrf.mxu0
      %v970 = vadd.f32 0.0, %v969
      %v971 = vpop.f32.mrf.mxu0
      %v972 = vpop.f32.mrf.mxu0
      %v973 = vadd.f32 0.0, %v972
      %v974 = vpop.f32.mrf.mxu0
      %975 = vmatprep.mubr.bf16.mxu0 0
      %976 = vmatmul.mubr.bf16.gmra.mxu0 %v809
      %v977 = vpop.f32.mrf.mxu0
      %v978 = vadd.f32 0.0, %v977
      %v979 = vpop.f32.mrf.mxu0
      %v980 = vpop.f32.mrf.mxu0
      %v981 = vadd.f32 0.0, %v980
      %v982 = vpop.f32.mrf.mxu0
      %983 = vmatprep.mubr.bf16.mxu0 0
      %984 = vmatmul.mubr.bf16.gmra.mxu0 %v810
      %v985 = vpop.f32.mrf.mxu0
      %v986 = vadd.f32 0.0, %v985
      %v987 = vpop.f32.mrf.mxu0
      %v988 = vpop.f32.mrf.mxu0
      %v989 = vadd.f32 0.0, %v988
      %v990 = vpop.f32.mrf.mxu0
      %991 = vdwg.mxu0
      %v1008 = vunpack.c.l.b16 %v815
      %v1009 = vunpack.c.l.b16 %v816
      %v1010 = vunpack.c.l.b16 %v817
      %v1011 = vunpack.c.l.b16 %v818
      %v1012 = vunpack.c.l.b16 %v819
      %v1013 = vunpack.c.l.b16 %v820
      %v1014 = vunpack.c.l.b16 %v821
      %v1015 = vunpack.c.l.b16 %v822
      %v1016 = vunpack.c.l.b16 %v823
      %v1017 = vunpack.c.l.b16 %v824
      %v1018 = vunpack.c.l.b16 %v825
      %v1019 = vunpack.c.l.b16 %v826
      %v1020 = vunpack.c.l.b16 %v827
      %v1021 = vunpack.c.l.b16 %v828
      %v1022 = vunpack.c.l.b16 %v829
      %v1023 = vunpack.c.l.b16 %v830
      %v1024 = vpack.c.b16 %v1009, %v1008
      %v1025 = vpack.c.b16 %v1011, %v1010
      %v1026 = vpack.c.b16 %v1013, %v1012
      %v1027 = vpack.c.b16 %v1015, %v1014
      %v1028 = vpack.c.b16 %v1017, %v1016
      %v1029 = vpack.c.b16 %v1019, %v1018
      %v1030 = vpack.c.b16 %v1021, %v1020
      %v1031 = vpack.c.b16 %v1023, %v1022
      %1040 = vmatprep.subr.bf16.mxu0 0
      %1041 = vmatpush1.bf16.msra.mxu0 %v1031
      %1042 = vmatprep.subr.bf16.mxu0 0
      %1043 = vmatpush1.bf16.msra.mxu0 %v1030
      %1044 = vmatprep.subr.bf16.mxu0 0
      %1045 = vmatpush1.bf16.msra.mxu0 %v1029
      %1046 = vmatprep.subr.bf16.mxu0 0
      %1047 = vmatpush1.bf16.msra.mxu0 %v1028
      %1048 = vmatprep.subr.bf16.mxu0 0
      %1049 = vmatpush1.bf16.msra.mxu0 %v1027
      %1050 = vmatprep.subr.bf16.mxu0 0
      %1051 = vmatpush1.bf16.msra.mxu0 %v1026
      %1052 = vmatprep.subr.bf16.mxu0 0
      %1053 = vmatpush1.bf16.msra.mxu0 %v1025
      %1054 = vmatprep.subr.bf16.mxu0 0
      %1055 = vmatpush1.bf16.msra.mxu0 %v1024
      %1056 = vmatprep.subr.bf16.mxu0 0
      %1057 = vmatpush2.bf16.msra.mxu0 0
      %1058 = vmatprep.subr.bf16.mxu0 0
      %1059 = vmatpush2.bf16.msra.mxu0 0
      %1060 = vmatprep.subr.bf16.mxu0 0
      %1061 = vmatpush2.bf16.msra.mxu0 0
      %1062 = vmatprep.subr.bf16.mxu0 0
      %1063 = vmatpush2.bf16.msra.mxu0 0
      %1064 = vmatprep.subr.bf16.mxu0 0
      %1065 = vmatpush2.bf16.msra.mxu0 0
      %1066 = vmatprep.subr.bf16.mxu0 0
      %1067 = vmatpush2.bf16.msra.mxu0 0
      %1068 = vmatprep.subr.bf16.mxu0 0
      %1069 = vmatpush2.bf16.msra.mxu0 0
      %1070 = vmatprep.subr.bf16.mxu0 0
      %1071 = vmatpush2.bf16.msra.mxu0 0
      %1072 = vmatprep.mubr.bf16.mxu0 0
      %1073 = vmatmul.mubr.bf16.gmra.mxu0 %v807
      %v1074 = vpop.f32.mrf.mxu0
      %v1075 = vadd.f32 %v930, %v1074
      %v1076 = vpop.f32.mrf.mxu0
      %v1077 = vpop.f32.mrf.mxu0
      %v1078 = vadd.f32 %v933, %v1077
      %v1079 = vpop.f32.mrf.mxu0
      %1080 = vmatprep.mubr.bf16.mxu0 0
      %1081 = vmatmul.mubr.bf16.gmra.mxu0 %v808
      %v1082 = vpop.f32.mrf.mxu0
      %v1083 = vadd.f32 %v938, %v1082
      %v1084 = vpop.f32.mrf.mxu0
      %v1085 = vpop.f32.mrf.mxu0
      %v1086 = vadd.f32 %v941, %v1085
      %v1087 = vpop.f32.mrf.mxu0
      %1088 = vmatprep.mubr.bf16.mxu0 0
      %1089 = vmatmul.mubr.bf16.gmra.mxu0 %v809
      %v1090 = vpop.f32.mrf.mxu0
      %v1091 = vadd.f32 %v946, %v1090
      %v1092 = vpop.f32.mrf.mxu0
      %v1093 = vpop.f32.mrf.mxu0
      %v1094 = vadd.f32 %v949, %v1093
      %v1095 = vpop.f32.mrf.mxu0
      %1096 = vmatprep.mubr.bf16.mxu0 0
      %1097 = vmatmul.mubr.bf16.gmra.mxu0 %v810
      %v1098 = vpop.f32.mrf.mxu0
      %v1099 = vadd.f32 %v954, %v1098
      %v1100 = vpop.f32.mrf.mxu0
      %v1101 = vpop.f32.mrf.mxu0
      %v1102 = vadd.f32 %v957, %v1101
      %v1103 = vpop.f32.mrf.mxu0
      %1104 = vmatprep.mubr.bf16.mxu0 0
      %1105 = vmatmul.mubr.bf16.gmra.mxu0 %v811
      %v1106 = vpop.f32.mrf.mxu0
      %v1107 = vadd.f32 %v962, %v1106
      %v1108 = vpop.f32.mrf.mxu0
      %v1109 = vpop.f32.mrf.mxu0
      %v1110 = vadd.f32 %v965, %v1109
      %v1111 = vpop.f32.mrf.mxu0
      %1112 = vmatprep.mubr.bf16.mxu0 0
      %1113 = vmatmul.mubr.bf16.gmra.mxu0 %v812
      %v1114 = vpop.f32.mrf.mxu0
      %v1115 = vadd.f32 %v970, %v1114
      %v1116 = vpop.f32.mrf.mxu0
      %v1117 = vpop.f32.mrf.mxu0
      %v1118 = vadd.f32 %v973, %v1117
      %v1119 = vpop.f32.mrf.mxu0
      %1120 = vmatprep.mubr.bf16.mxu0 0
      %1121 = vmatmul.mubr.bf16.gmra.mxu0 %v813
      %v1122 = vpop.f32.mrf.mxu0
      %v1123 = vadd.f32 %v978, %v1122
      %v1124 = vpop.f32.mrf.mxu0
      %v1125 = vpop.f32.mrf.mxu0
      %v1126 = vadd.f32 %v981, %v1125
      %v1127 = vpop.f32.mrf.mxu0
      %1128 = vmatprep.mubr.bf16.mxu0 0
      %1129 = vmatmul.mubr.bf16.gmra.mxu0 %v814
      %v1130 = vpop.f32.mrf.mxu0
      %v1131 = vadd.f32 %v986, %v1130
      %v1132 = vpop.f32.mrf.mxu0
      %v1133 = vpop.f32.mrf.mxu0
      %v1134 = vadd.f32 %v989, %v1133
      %v1135 = vpop.f32.mrf.mxu0
      %1136 = vdwg.mxu0
      %v1137 = vld [vmem:[%s715] sm:$0x1]
      %v1139 = vlaneseq
      %v1140 = vshrl.u32 %v1139, 7
      %v1141 = vsub.s32 0, %v1140
      %v1142 = vrot.slane %v1137, %v1141
      %v1144 = vadd.f32 %v1075, %v1142
      %v1145 = vadd.f32 %v1078, %v1142
      %v1146 = vadd.f32 %v1083, %v1142
      %v1147 = vadd.f32 %v1086, %v1142
      %v1148 = vadd.f32 %v1091, %v1142
      %v1149 = vadd.f32 %v1094, %v1142
      %v1150 = vadd.f32 %v1099, %v1142
      %v1151 = vadd.f32 %v1102, %v1142
      %v1152 = vadd.f32 %v1107, %v1142
      %v1153 = vadd.f32 %v1110, %v1142
      %v1154 = vadd.f32 %v1115, %v1142
      %v1155 = vadd.f32 %v1118, %v1142
      %v1156 = vadd.f32 %v1123, %v1142
      %v1157 = vadd.f32 %v1126, %v1142
      %v1158 = vadd.f32 %v1131, %v1142
      %v1159 = vadd.f32 %v1134, %v1142
      %v1160 = vld [vmem:[%s2] sm:$0xf]
      %v1161 = vld [vmem:[%s2 + $0x4] sm:$0xf]
      %v1162 = vld [vmem:[%s2 + $0x8] sm:$0xf]
      %v1163 = vld [vmem:[%s2 + $0xc] sm:$0xf]
      %v1164 = vld [vmem:[%s2 + $0x10] sm:$0xf]
      %v1165 = vld [vmem:[%s2 + $0x14] sm:$0xf]
      %v1166 = vld [vmem:[%s2 + $0x18] sm:$0xf]
      %v1167 = vld [vmem:[%s2 + $0x1c] sm:$0xf]
      %v1168 = vld [vmem:[%s2 + $0x20] sm:$0xf]
      %v1169 = vld [vmem:[%s2 + $0x24] sm:$0xf]
      %v1170 = vld [vmem:[%s2 + $0x28] sm:$0xf]
      %v1171 = vld [vmem:[%s2 + $0x2c] sm:$0xf]
      %v1172 = vld [vmem:[%s2 + $0x30] sm:$0xf]
      %v1173 = vld [vmem:[%s2 + $0x34] sm:$0xf]
      %v1174 = vld [vmem:[%s2 + $0x38] sm:$0xf]
      %v1175 = vld [vmem:[%s2 + $0x3c] sm:$0xf]
      %v1176 = vpack.c.bf16 %v1145, %v1144
      %v1177 = vpack.c.bf16 %v1147, %v1146
      %v1178 = vpack.c.bf16 %v1149, %v1148
      %v1179 = vpack.c.bf16 %v1151, %v1150
      %v1180 = vpack.c.bf16 %v1153, %v1152
      %v1181 = vpack.c.bf16 %v1155, %v1154
      %v1182 = vpack.c.bf16 %v1157, %v1156
      %v1183 = vpack.c.bf16 %v1159, %v1158
      %v1200 = vunpack.c.l.b16 %v1160
      %v1201 = vunpack.c.l.b16 %v1161
      %v1202 = vunpack.c.l.b16 %v1162
      %v1203 = vunpack.c.l.b16 %v1163
      %v1204 = vunpack.c.l.b16 %v1164
      %v1205 = vunpack.c.l.b16 %v1165
      %v1206 = vunpack.c.l.b16 %v1166
      %v1207 = vunpack.c.l.b16 %v1167
      %v1208 = vunpack.c.l.b16 %v1168
      %v1209 = vunpack.c.l.b16 %v1169
      %v1210 = vunpack.c.l.b16 %v1170
      %v1211 = vunpack.c.l.b16 %v1171
      %v1212 = vunpack.c.l.b16 %v1172
      %v1213 = vunpack.c.l.b16 %v1173
      %v1214 = vunpack.c.l.b16 %v1174
      %v1215 = vunpack.c.l.b16 %v1175
      %v1216 = vpack.c.b16 %v1201, %v1200
      %v1217 = vpack.c.b16 %v1203, %v1202
      %v1218 = vpack.c.b16 %v1205, %v1204
      %v1219 = vpack.c.b16 %v1207, %v1206
      %v1220 = vpack.c.b16 %v1209, %v1208
      %v1221 = vpack.c.b16 %v1211, %v1210
      %v1222 = vpack.c.b16 %v1213, %v1212
      %v1223 = vpack.c.b16 %v1215, %v1214
      %1232 = vmatprep.subr.bf16.mxu0 0
      %1233 = vmatpush1.bf16.msra.mxu0 %v1183
      %1234 = vmatprep.subr.bf16.mxu0 0
      %1235 = vmatpush1.bf16.msra.mxu0 %v1182
      %1236 = vmatprep.subr.bf16.mxu0 0
      %1237 = vmatpush1.bf16.msra.mxu0 %v1181
      %1238 = vmatprep.subr.bf16.mxu0 0
      %1239 = vmatpush1.bf16.msra.mxu0 %v1180
      %1240 = vmatprep.subr.bf16.mxu0 0
      %1241 = vmatpush1.bf16.msra.mxu0 %v1179
      %1242 = vmatprep.subr.bf16.mxu0 0
      %1243 = vmatpush1.bf16.msra.mxu0 %v1178
      %1244 = vmatprep.subr.bf16.mxu0 0
      %1245 = vmatpush1.bf16.msra.mxu0 %v1177
      %1246 = vmatprep.subr.bf16.mxu0 0
      %1247 = vmatpush1.bf16.msra.mxu0 %v1176
      %1248 = vmatprep.subr.bf16.mxu0 0
      %1249 = vmatpush2.bf16.msra.mxu0 0
      %1250 = vmatprep.subr.bf16.mxu0 0
      %1251 = vmatpush2.bf16.msra.mxu0 0
      %1252 = vmatprep.subr.bf16.mxu0 0
      %1253 = vmatpush2.bf16.msra.mxu0 0
      %1254 = vmatprep.subr.bf16.mxu0 0
      %1255 = vmatpush2.bf16.msra.mxu0 0
      %1256 = vmatprep.subr.bf16.mxu0 0
      %1257 = vmatpush2.bf16.msra.mxu0 0
      %1258 = vmatprep.subr.bf16.mxu0 0
      %1259 = vmatpush2.bf16.msra.mxu0 0
      %1260 = vmatprep.subr.bf16.mxu0 0
      %1261 = vmatpush2.bf16.msra.mxu0 0
      %1262 = vmatprep.subr.bf16.mxu0 0
      %1263 = vmatpush2.bf16.msra.mxu0 0
      %1264 = vmatprep.mubr.bf16.mxu0 0
      %1265 = vmatmul.mubr.bf16.gmra.mxu0 %v1216
      %v1266 = vpop.f32.mrf.mxu0
      %v1267 = vadd.f32 0.0, %v1266
      %v1268 = vpop.f32.mrf.mxu0
      %v1269 = vpop.f32.mrf.mxu0
      %v1270 = vadd.f32 0.0, %v1269
      %v1271 = vpop.f32.mrf.mxu0
      %1272 = vmatprep.mubr.bf16.mxu0 0
      %1273 = vmatmul.mubr.bf16.gmra.mxu0 %v1217
      %v1274 = vpop.f32.mrf.mxu0
      %v1275 = vadd.f32 0.0, %v1274
      %v1276 = vpop.f32.mrf.mxu0
      %v1277 = vpop.f32.mrf.mxu0
      %v1278 = vadd.f32 0.0, %v1277
      %v1279 = vpop.f32.mrf.mxu0
      %1280 = vmatprep.mubr.bf16.mxu0 0
      %1281 = vmatmul.mubr.bf16.gmra.mxu0 %v1218
      %v1282 = vpop.f32.mrf.mxu0
      %v1283 = vadd.f32 0.0, %v1282
      %v1284 = vpop.f32.mrf.mxu0
      %v1285 = vpop.f32.mrf.mxu0
      %v1286 = vadd.f32 0.0, %v1285
      %v1287 = vpop.f32.mrf.mxu0
      %1288 = vmatprep.mubr.bf16.mxu0 0
      %1289 = vmatmul.mubr.bf16.gmra.mxu0 %v1219
      %v1290 = vpop.f32.mrf.mxu0
      %v1291 = vadd.f32 0.0, %v1290
      %v1292 = vpop.f32.mrf.mxu0
      %v1293 = vpop.f32.mrf.mxu0
      %v1294 = vadd.f32 0.0, %v1293
      %v1295 = vpop.f32.mrf.mxu0
      %1296 = vmatprep.mubr.bf16.mxu0 0
      %1297 = vmatmul.mubr.bf16.gmra.mxu0 %v1220
      %v1298 = vpop.f32.mrf.mxu0
      %v1299 = vadd.f32 0.0, %v1298
      %v1300 = vpop.f32.mrf.mxu0
      %v1301 = vpop.f32.mrf.mxu0
      %v1302 = vadd.f32 0.0, %v1301
      %v1303 = vpop.f32.mrf.mxu0
      %1304 = vmatprep.mubr.bf16.mxu0 0
      %1305 = vmatmul.mubr.bf16.gmra.mxu0 %v1221
      %v1306 = vpop.f32.mrf.mxu0
      %v1307 = vadd.f32 0.0, %v1306
      %v1308 = vpop.f32.mrf.mxu0
      %v1309 = vpop.f32.mrf.mxu0
      %v1310 = vadd.f32 0.0, %v1309
      %v1311 = vpop.f32.mrf.mxu0
      %1312 = vmatprep.mubr.bf16.mxu0 0
      %1313 = vmatmul.mubr.bf16.gmra.mxu0 %v1222
      %v1314 = vpop.f32.mrf.mxu0
      %v1315 = vadd.f32 0.0, %v1314
      %v1316 = vpop.f32.mrf.mxu0
      %v1317 = vpop.f32.mrf.mxu0
      %v1318 = vadd.f32 0.0, %v1317
      %v1319 = vpop.f32.mrf.mxu0
      %1320 = vmatprep.mubr.bf16.mxu0 0
      %1321 = vmatmul.mubr.bf16.gmra.mxu0 %v1223
      %v1322 = vpop.f32.mrf.mxu0
      %v1323 = vadd.f32 0.0, %v1322
      %v1324 = vpop.f32.mrf.mxu0
      %v1325 = vpop.f32.mrf.mxu0
      %v1326 = vadd.f32 0.0, %v1325
      %v1327 = vpop.f32.mrf.mxu0
      %1328 = vdwg.mxu0
      %v1329 = vmax.f32 %v1267, 0.0
      %v1330 = vmax.f32 %v1270, 0.0
      %v1331 = vmax.f32 %v1275, 0.0
      %v1332 = vmax.f32 %v1278, 0.0
      %v1333 = vmax.f32 %v1283, 0.0
      %v1334 = vmax.f32 %v1286, 0.0
      %v1335 = vmax.f32 %v1291, 0.0
      %v1336 = vmax.f32 %v1294, 0.0
      %v1337 = vmax.f32 %v1299, 0.0
      %v1338 = vmax.f32 %v1302, 0.0
      %v1339 = vmax.f32 %v1307, 0.0
      %v1340 = vmax.f32 %v1310, 0.0
      %v1341 = vmax.f32 %v1315, 0.0
      %v1342 = vmax.f32 %v1318, 0.0
      %v1343 = vmax.f32 %v1323, 0.0
      %v1344 = vmax.f32 %v1326, 0.0
      %v1345 = vpack.c.bf16 %v1330, %v1329
      %v1346 = vpack.c.bf16 %v1332, %v1331
      %v1347 = vpack.c.bf16 %v1334, %v1333
      %v1348 = vpack.c.bf16 %v1336, %v1335
      %v1349 = vpack.c.bf16 %v1338, %v1337
      %v1350 = vpack.c.bf16 %v1340, %v1339
      %v1351 = vpack.c.bf16 %v1342, %v1341
      %v1352 = vpack.c.bf16 %v1344, %v1343
      %v1353 = vld [vmem:[%s720] sm:$0xf]
      %v1354 = vld [vmem:[%s720 + $0x4] sm:$0xf]
      %v1355 = vld [vmem:[%s720 + $0x8] sm:$0xf]
      %v1356 = vld [vmem:[%s720 + $0xc] sm:$0xf]
      %v1357 = vld [vmem:[%s720 + $0x10] sm:$0xf]
      %v1358 = vld [vmem:[%s720 + $0x14] sm:$0xf]
      %v1359 = vld [vmem:[%s720 + $0x18] sm:$0xf]
      %v1360 = vld [vmem:[%s720 + $0x1c] sm:$0xf]
      %v1361 = vld [vmem:[%s720 + $0x20] sm:$0xf]
      %v1362 = vld [vmem:[%s720 + $0x24] sm:$0xf]
      %v1363 = vld [vmem:[%s720 + $0x28] sm:$0xf]
      %v1364 = vld [vmem:[%s720 + $0x2c] sm:$0xf]
      %v1365 = vld [vmem:[%s720 + $0x30] sm:$0xf]
      %v1366 = vld [vmem:[%s720 + $0x34] sm:$0xf]
      %v1367 = vld [vmem:[%s720 + $0x38] sm:$0xf]
      %v1368 = vld [vmem:[%s720 + $0x3c] sm:$0xf]
      %v1369 = vld [vmem:[%s1] sm:$0xf]
      %v1370 = vld [vmem:[%s1 + $0x4] sm:$0xf]
      %v1371 = vld [vmem:[%s1 + $0x8] sm:$0xf]
      %v1372 = vld [vmem:[%s1 + $0xc] sm:$0xf]
      %v1373 = vld [vmem:[%s1 + $0x10] sm:$0xf]
      %v1374 = vld [vmem:[%s1 + $0x14] sm:$0xf]
      %v1375 = vld [vmem:[%s1 + $0x18] sm:$0xf]
      %v1376 = vld [vmem:[%s1 + $0x1c] sm:$0xf]
      %v1377 = vld [vmem:[%s1 + $0x20] sm:$0xf]
      %v1378 = vld [vmem:[%s1 + $0x24] sm:$0xf]
      %v1379 = vld [vmem:[%s1 + $0x28] sm:$0xf]
      %v1380 = vld [vmem:[%s1 + $0x2c] sm:$0xf]
      %v1381 = vld [vmem:[%s1 + $0x30] sm:$0xf]
      %v1382 = vld [vmem:[%s1 + $0x34] sm:$0xf]
      %v1383 = vld [vmem:[%s1 + $0x38] sm:$0xf]
      %v1384 = vld [vmem:[%s1 + $0x3c] sm:$0xf]
      %v1385 = vld [vmem:[%s724] sm:$0xf]
      %v1402 = vunpack.c.l.b16 %v1369
      %v1403 = vunpack.c.l.b16 %v1370
      %v1404 = vunpack.c.l.b16 %v1371
      %v1405 = vunpack.c.l.b16 %v1372
      %v1406 = vunpack.c.l.b16 %v1373
      %v1407 = vunpack.c.l.b16 %v1374
      %v1408 = vunpack.c.l.b16 %v1375
      %v1409 = vunpack.c.l.b16 %v1376
      %v1410 = vunpack.c.l.b16 %v1377
      %v1411 = vunpack.c.l.b16 %v1378
      %v1412 = vunpack.c.l.b16 %v1379
      %v1413 = vunpack.c.l.b16 %v1380
      %v1414 = vunpack.c.l.b16 %v1381
      %v1415 = vunpack.c.l.b16 %v1382
      %v1416 = vunpack.c.l.b16 %v1383
      %v1417 = vunpack.c.l.b16 %v1384
      %v1418 = vpack.c.b16 %v1403, %v1402
      %v1419 = vpack.c.b16 %v1405, %v1404
      %v1420 = vpack.c.b16 %v1407, %v1406
      %v1421 = vpack.c.b16 %v1409, %v1408
      %v1422 = vpack.c.b16 %v1411, %v1410
      %v1423 = vpack.c.b16 %v1413, %v1412
      %v1424 = vpack.c.b16 %v1415, %v1414
      %v1425 = vpack.c.b16 %v1417, %v1416
      %vm1426 = vcmask 64512
      %v1428 = vsel %vm1426, %v1418, 0
      %v1431 = vsel %vm1426, %v1419, 0
      %v1434 = vsel %vm1426, %v1420, 0
      %v1437 = vsel %vm1426, %v1421, 0
      %v1440 = vsel %vm1426, %v1422, 0
      %v1443 = vsel %vm1426, %v1423, 0
      %v1446 = vsel %vm1426, %v1424, 0
      %v1449 = vsel %vm1426, %v1425, 0
      %vm1451 = vcmask 1043456
      %v1453 = vsel %vm1451, %v1385, 0
      %1455 = vmatprep.subr.bf16.mxu0 0
      %1456 = vmatpush1.bf16.msra.mxu0 0
      %1457 = vmatprep.subr.bf16.mxu0 0
      %1458 = vmatpush1.bf16.msra.mxu0 0
      %1459 = vmatprep.subr.bf16.mxu0 0
      %1460 = vmatpush1.bf16.msra.mxu0 0
      %1461 = vmatprep.subr.bf16.mxu0 0
      %1462 = vmatpush1.bf16.msra.mxu0 0
      %1463 = vmatprep.subr.bf16.mxu0 0
      %1464 = vmatpush1.bf16.msra.mxu0 0
      %1465 = vmatprep.subr.bf16.mxu0 0
      %1466 = vmatpush1.bf16.msra.mxu0 0
      %1467 = vmatprep.subr.bf16.mxu0 0
      %1468 = vmatpush1.bf16.msra.mxu0 0
      %1469 = vmatprep.subr.bf16.mxu0 0
      %1470 = vmatpush1.bf16.msra.mxu0 %v1453
      %1471 = vmatprep.subr.bf16.mxu0 0
      %1472 = vmatpush2.bf16.msra.mxu0 0
      %1473 = vmatprep.subr.bf16.mxu0 0
      %1474 = vmatpush2.bf16.msra.mxu0 0
      %1475 = vmatprep.subr.bf16.mxu0 0
      %1476 = vmatpush2.bf16.msra.mxu0 0
      %1477 = vmatprep.subr.bf16.mxu0 0
      %1478 = vmatpush2.bf16.msra.mxu0 0
      %1479 = vmatprep.subr.bf16.mxu0 0
      %1480 = vmatpush2.bf16.msra.mxu0 0
      %1481 = vmatprep.subr.bf16.mxu0 0
      %1482 = vmatpush2.bf16.msra.mxu0 0
      %1483 = vmatprep.subr.bf16.mxu0 0
      %1484 = vmatpush2.bf16.msra.mxu0 0
      %1485 = vmatprep.subr.bf16.mxu0 0
      %1486 = vmatpush2.bf16.msra.mxu0 0
      %1487 = vmatprep.mubr.bf16.mxu0 0
      %1488 = vmatmul.mubr.bf16.gmra.mxu0 %v1428
      %v1489 = vpop.f32.mrf.mxu0
      %v1490 = vadd.f32 0.0, %v1489
      %v1491 = vpop.f32.mrf.mxu0
      %v1492 = vpop.f32.mrf.mxu0
      %v1493 = vadd.f32 0.0, %v1492
      %v1494 = vpop.f32.mrf.mxu0
      %1495 = vmatprep.mubr.bf16.mxu0 0
      %1496 = vmatmul.mubr.bf16.gmra.mxu0 %v1431
      %v1497 = vpop.f32.mrf.mxu0
      %v1498 = vadd.f32 0.0, %v1497
      %v1499 = vpop.f32.mrf.mxu0
      %v1500 = vpop.f32.mrf.mxu0
      %v1501 = vadd.f32 0.0, %v1500
      %v1502 = vpop.f32.mrf.mxu0
      %1503 = vmatprep.mubr.bf16.mxu0 0
      %1504 = vmatmul.mubr.bf16.gmra.mxu0 %v1434
      %v1505 = vpop.f32.mrf.mxu0
      %v1506 = vadd.f32 0.0, %v1505
      %v1507 = vpop.f32.mrf.mxu0
      %v1508 = vpop.f32.mrf.mxu0
      %v1509 = vadd.f32 0.0, %v1508
      %v1510 = vpop.f32.mrf.mxu0
      %1511 = vmatprep.mubr.bf16.mxu0 0
      %1512 = vmatmul.mubr.bf16.gmra.mxu0 %v1437
      %v1513 = vpop.f32.mrf.mxu0
      %v1514 = vadd.f32 0.0, %v1513
      %v1515 = vpop.f32.mrf.mxu0
      %v1516 = vpop.f32.mrf.mxu0
      %v1517 = vadd.f32 0.0, %v1516
      %v1518 = vpop.f32.mrf.mxu0
      %1519 = vmatprep.mubr.bf16.mxu0 0
      %1520 = vmatmul.mubr.bf16.gmra.mxu0 %v1440
      %v1521 = vpop.f32.mrf.mxu0
      %v1522 = vadd.f32 0.0, %v1521
      %v1523 = vpop.f32.mrf.mxu0
      %v1524 = vpop.f32.mrf.mxu0
      %v1525 = vadd.f32 0.0, %v1524
      %v1526 = vpop.f32.mrf.mxu0
      %1527 = vmatprep.mubr.bf16.mxu0 0
      %1528 = vmatmul.mubr.bf16.gmra.mxu0 %v1443
      %v1529 = vpop.f32.mrf.mxu0
      %v1530 = vadd.f32 0.0, %v1529
      %v1531 = vpop.f32.mrf.mxu0
      %v1532 = vpop.f32.mrf.mxu0
      %v1533 = vadd.f32 0.0, %v1532
      %v1534 = vpop.f32.mrf.mxu0
      %1535 = vmatprep.mubr.bf16.mxu0 0
      %1536 = vmatmul.mubr.bf16.gmra.mxu0 %v1446
      %v1537 = vpop.f32.mrf.mxu0
      %v1538 = vadd.f32 0.0, %v1537
      %v1539 = vpop.f32.mrf.mxu0
      %v1540 = vpop.f32.mrf.mxu0
      %v1541 = vadd.f32 0.0, %v1540
      %v1542 = vpop.f32.mrf.mxu0
      %1543 = vmatprep.mubr.bf16.mxu0 0
      %1544 = vmatmul.mubr.bf16.gmra.mxu0 %v1449
      %v1545 = vpop.f32.mrf.mxu0
      %v1546 = vadd.f32 0.0, %v1545
      %v1547 = vpop.f32.mrf.mxu0
      %v1548 = vpop.f32.mrf.mxu0
      %v1549 = vadd.f32 0.0, %v1548
      %v1550 = vpop.f32.mrf.mxu0
      %1551 = vdwg.mxu0
      %v1568 = vunpack.c.l.b16 %v1353
      %v1569 = vunpack.c.l.b16 %v1354
      %v1570 = vunpack.c.l.b16 %v1355
      %v1571 = vunpack.c.l.b16 %v1356
      %v1572 = vunpack.c.l.b16 %v1357
      %v1573 = vunpack.c.l.b16 %v1358
      %v1574 = vunpack.c.l.b16 %v1359
      %v1575 = vunpack.c.l.b16 %v1360
      %v1576 = vunpack.c.l.b16 %v1361
      %v1577 = vunpack.c.l.b16 %v1362
      %v1578 = vunpack.c.l.b16 %v1363
      %v1579 = vunpack.c.l.b16 %v1364
      %v1580 = vunpack.c.l.b16 %v1365
      %v1581 = vunpack.c.l.b16 %v1366
      %v1582 = vunpack.c.l.b16 %v1367
      %v1583 = vunpack.c.l.b16 %v1368
      %v1584 = vpack.c.b16 %v1569, %v1568
      %v1585 = vpack.c.b16 %v1571, %v1570
      %v1586 = vpack.c.b16 %v1573, %v1572
      %v1587 = vpack.c.b16 %v1575, %v1574
      %v1588 = vpack.c.b16 %v1577, %v1576
      %v1589 = vpack.c.b16 %v1579, %v1578
      %v1590 = vpack.c.b16 %v1581, %v1580
      %v1591 = vpack.c.b16 %v1583, %v1582
      %1600 = vmatprep.subr.bf16.mxu0 0
      %1601 = vmatpush1.bf16.msra.mxu0 %v1591
      %1602 = vmatprep.subr.bf16.mxu0 0
      %1603 = vmatpush1.bf16.msra.mxu0 %v1590
      %1604 = vmatprep.subr.bf16.mxu0 0
      %1605 = vmatpush1.bf16.msra.mxu0 %v1589
      %1606 = vmatprep.subr.bf16.mxu0 0
      %1607 = vmatpush1.bf16.msra.mxu0 %v1588
      %1608 = vmatprep.subr.bf16.mxu0 0
      %1609 = vmatpush1.bf16.msra.mxu0 %v1587
      %1610 = vmatprep.subr.bf16.mxu0 0
      %1611 = vmatpush1.bf16.msra.mxu0 %v1586
      %1612 = vmatprep.subr.bf16.mxu0 0
      %1613 = vmatpush1.bf16.msra.mxu0 %v1585
      %1614 = vmatprep.subr.bf16.mxu0 0
      %1615 = vmatpush1.bf16.msra.mxu0 %v1584
      %1616 = vmatprep.subr.bf16.mxu0 0
      %1617 = vmatpush2.bf16.msra.mxu0 0
      %1618 = vmatprep.subr.bf16.mxu0 0
      %1619 = vmatpush2.bf16.msra.mxu0 0
      %1620 = vmatprep.subr.bf16.mxu0 0
      %1621 = vmatpush2.bf16.msra.mxu0 0
      %1622 = vmatprep.subr.bf16.mxu0 0
      %1623 = vmatpush2.bf16.msra.mxu0 0
      %1624 = vmatprep.subr.bf16.mxu0 0
      %1625 = vmatpush2.bf16.msra.mxu0 0
      %1626 = vmatprep.subr.bf16.mxu0 0
      %1627 = vmatpush2.bf16.msra.mxu0 0
      %1628 = vmatprep.subr.bf16.mxu0 0
      %1629 = vmatpush2.bf16.msra.mxu0 0
      %1630 = vmatprep.subr.bf16.mxu0 0
      %1631 = vmatpush2.bf16.msra.mxu0 0
      %1632 = vmatprep.mubr.bf16.mxu0 0
      %1633 = vmatmul.mubr.bf16.gmra.mxu0 %v1345
      %v1634 = vpop.f32.mrf.mxu0
      %v1635 = vadd.f32 %v1490, %v1634
      %v1636 = vpop.f32.mrf.mxu0
      %v1637 = vpop.f32.mrf.mxu0
      %v1638 = vadd.f32 %v1493, %v1637
      %v1639 = vpop.f32.mrf.mxu0
      %1640 = vmatprep.mubr.bf16.mxu0 0
      %1641 = vmatmul.mubr.bf16.gmra.mxu0 %v1346
      %v1642 = vpop.f32.mrf.mxu0
      %v1643 = vadd.f32 %v1498, %v1642
      %v1644 = vpop.f32.mrf.mxu0
      %v1645 = vpop.f32.mrf.mxu0
      %v1646 = vadd.f32 %v1501, %v1645
      %v1647 = vpop.f32.mrf.mxu0
      %1648 = vmatprep.mubr.bf16.mxu0 0
      %1649 = vmatmul.mubr.bf16.gmra.mxu0 %v1347
      %v1650 = vpop.f32.mrf.mxu0
      %v1651 = vadd.f32 %v1506, %v1650
      %v1652 = vpop.f32.mrf.mxu0
      %v1653 = vpop.f32.mrf.mxu0
      %v1654 = vadd.f32 %v1509, %v1653
      %v1655 = vpop.f32.mrf.mxu0
      %1656 = vmatprep.mubr.bf16.mxu0 0
      %1657 = vmatmul.mubr.bf16.gmra.mxu0 %v1348
      %v1658 = vpop.f32.mrf.mxu0
      %v1659 = vadd.f32 %v1514, %v1658
      %v1660 = vpop.f32.mrf.mxu0
      %v1661 = vpop.f32.mrf.mxu0
      %v1662 = vadd.f32 %v1517, %v1661
      %v1663 = vpop.f32.mrf.mxu0
      %1664 = vmatprep.mubr.bf16.mxu0 0
      %1665 = vmatmul.mubr.bf16.gmra.mxu0 %v1349
      %v1666 = vpop.f32.mrf.mxu0
      %v1667 = vadd.f32 %v1522, %v1666
      %v1668 = vpop.f32.mrf.mxu0
      %v1669 = vpop.f32.mrf.mxu0
      %v1670 = vadd.f32 %v1525, %v1669
      %v1671 = vpop.f32.mrf.mxu0
      %1672 = vmatprep.mubr.bf16.mxu0 0
      %1673 = vmatmul.mubr.bf16.gmra.mxu0 %v1350
      %v1674 = vpop.f32.mrf.mxu0
      %v1675 = vadd.f32 %v1530, %v1674
      %v1676 = vpop.f32.mrf.mxu0
      %v1677 = vpop.f32.mrf.mxu0
      %v1678 = vadd.f32 %v1533, %v1677
      %v1679 = vpop.f32.mrf.mxu0
      %1680 = vmatprep.mubr.bf16.mxu0 0
      %1681 = vmatmul.mubr.bf16.gmra.mxu0 %v1351
      %v1682 = vpop.f32.mrf.mxu0
      %v1683 = vadd.f32 %v1538, %v1682
      %v1684 = vpop.f32.mrf.mxu0
      %v1685 = vpop.f32.mrf.mxu0
      %v1686 = vadd.f32 %v1541, %v1685
      %v1687 = vpop.f32.mrf.mxu0
      %1688 = vmatprep.mubr.bf16.mxu0 0
      %1689 = vmatmul.mubr.bf16.gmra.mxu0 %v1352
      %v1690 = vpop.f32.mrf.mxu0
      %v1691 = vadd.f32 %v1546, %v1690
      %v1692 = vpop.f32.mrf.mxu0
      %v1693 = vpop.f32.mrf.mxu0
      %v1694 = vadd.f32 %v1549, %v1693
      %v1695 = vpop.f32.mrf.mxu0
      %1696 = vdwg.mxu0
      %v1697 = vld [vmem:[%s727] sm:$0x1]
      %v1699 = vlaneseq
      %v1700 = vshrl.u32 %v1699, 7
      %v1701 = vsub.s32 0, %v1700
      %v1702 = vrot.slane %v1697, %v1701
      %v1704 = vadd.f32 %v1635, %v1702
      %v1705 = vadd.f32 %v1638, %v1702
      %v1706 = vadd.f32 %v1643, %v1702
      %v1707 = vadd.f32 %v1646, %v1702
      %v1708 = vadd.f32 %v1651, %v1702
      %v1709 = vadd.f32 %v1654, %v1702
      %v1710 = vadd.f32 %v1659, %v1702
      %v1711 = vadd.f32 %v1662, %v1702
      %v1712 = vadd.f32 %v1667, %v1702
      %v1713 = vadd.f32 %v1670, %v1702
      %v1714 = vadd.f32 %v1675, %v1702
      %v1715 = vadd.f32 %v1678, %v1702
      %v1716 = vadd.f32 %v1683, %v1702
      %v1717 = vadd.f32 %v1686, %v1702
      %v1718 = vadd.f32 %v1691, %v1702
      %v1719 = vadd.f32 %v1694, %v1702
      %v1720 = vld [vmem:[%s3] sm:$0xf]
      %v1721 = vld [vmem:[%s3 + $0x4] sm:$0xf]
      %v1722 = vld [vmem:[%s3 + $0x8] sm:$0xf]
      %v1723 = vld [vmem:[%s3 + $0xc] sm:$0xf]
      %v1724 = vld [vmem:[%s3 + $0x10] sm:$0xf]
      %v1725 = vld [vmem:[%s3 + $0x14] sm:$0xf]
      %v1726 = vld [vmem:[%s3 + $0x18] sm:$0xf]
      %v1727 = vld [vmem:[%s3 + $0x1c] sm:$0xf]
      %v1728 = vld [vmem:[%s3 + $0x20] sm:$0xf]
      %v1729 = vld [vmem:[%s3 + $0x24] sm:$0xf]
      %v1730 = vld [vmem:[%s3 + $0x28] sm:$0xf]
      %v1731 = vld [vmem:[%s3 + $0x2c] sm:$0xf]
      %v1732 = vld [vmem:[%s3 + $0x30] sm:$0xf]
      %v1733 = vld [vmem:[%s3 + $0x34] sm:$0xf]
      %v1734 = vld [vmem:[%s3 + $0x38] sm:$0xf]
      %v1735 = vld [vmem:[%s3 + $0x3c] sm:$0xf]
      %v1736 = vpack.c.bf16 %v1705, %v1704
      %v1737 = vpack.c.bf16 %v1707, %v1706
      %v1738 = vpack.c.bf16 %v1709, %v1708
      %v1739 = vpack.c.bf16 %v1711, %v1710
      %v1740 = vpack.c.bf16 %v1713, %v1712
      %v1741 = vpack.c.bf16 %v1715, %v1714
      %v1742 = vpack.c.bf16 %v1717, %v1716
      %v1743 = vpack.c.bf16 %v1719, %v1718
      %v1760 = vunpack.c.l.b16 %v1720
      %v1761 = vunpack.c.l.b16 %v1721
      %v1762 = vunpack.c.l.b16 %v1722
      %v1763 = vunpack.c.l.b16 %v1723
      %v1764 = vunpack.c.l.b16 %v1724
      %v1765 = vunpack.c.l.b16 %v1725
      %v1766 = vunpack.c.l.b16 %v1726
      %v1767 = vunpack.c.l.b16 %v1727
      %v1768 = vunpack.c.l.b16 %v1728
      %v1769 = vunpack.c.l.b16 %v1729
      %v1770 = vunpack.c.l.b16 %v1730
      %v1771 = vunpack.c.l.b16 %v1731
      %v1772 = vunpack.c.l.b16 %v1732
      %v1773 = vunpack.c.l.b16 %v1733
      %v1774 = vunpack.c.l.b16 %v1734
      %v1775 = vunpack.c.l.b16 %v1735
      %v1776 = vpack.c.b16 %v1761, %v1760
      %v1777 = vpack.c.b16 %v1763, %v1762
      %v1778 = vpack.c.b16 %v1765, %v1764
      %v1779 = vpack.c.b16 %v1767, %v1766
      %v1780 = vpack.c.b16 %v1769, %v1768
      %v1781 = vpack.c.b16 %v1771, %v1770
      %v1782 = vpack.c.b16 %v1773, %v1772
      %v1783 = vpack.c.b16 %v1775, %v1774
      %1792 = vmatprep.subr.bf16.mxu0 0
      %1793 = vmatpush1.bf16.msra.mxu0 %v1743
      %1794 = vmatprep.subr.bf16.mxu0 0
      %1795 = vmatpush1.bf16.msra.mxu0 %v1742
      %1796 = vmatprep.subr.bf16.mxu0 0
      %1797 = vmatpush1.bf16.msra.mxu0 %v1741
      %1798 = vmatprep.subr.bf16.mxu0 0
      %1799 = vmatpush1.bf16.msra.mxu0 %v1740
      %1800 = vmatprep.subr.bf16.mxu0 0
      %1801 = vmatpush1.bf16.msra.mxu0 %v1739
      %1802 = vmatprep.subr.bf16.mxu0 0
      %1803 = vmatpush1.bf16.msra.mxu0 %v1738
      %1804 = vmatprep.subr.bf16.mxu0 0
      %1805 = vmatpush1.bf16.msra.mxu0 %v1737
      %1806 = vmatprep.subr.bf16.mxu0 0
      %1807 = vmatpush1.bf16.msra.mxu0 %v1736
      %1808 = vmatprep.subr.bf16.mxu0 0
      %1809 = vmatpush2.bf16.msra.mxu0 0
      %1810 = vmatprep.subr.bf16.mxu0 0
      %1811 = vmatpush2.bf16.msra.mxu0 0
      %1812 = vmatprep.subr.bf16.mxu0 0
      %1813 = vmatpush2.bf16.msra.mxu0 0
      %1814 = vmatprep.subr.bf16.mxu0 0
      %1815 = vmatpush2.bf16.msra.mxu0 0
      %1816 = vmatprep.subr.bf16.mxu0 0
      %1817 = vmatpush2.bf16.msra.mxu0 0
      %1818 = vmatprep.subr.bf16.mxu0 0
      %1819 = vmatpush2.bf16.msra.mxu0 0
      %1820 = vmatprep.subr.bf16.mxu0 0
      %1821 = vmatpush2.bf16.msra.mxu0 0
      %1822 = vmatprep.subr.bf16.mxu0 0
      %1823 = vmatpush2.bf16.msra.mxu0 0
      %1824 = vmatprep.mubr.bf16.mxu0 0
      %1825 = vmatmul.mubr.bf16.gmra.mxu0 %v1776
      %v1826 = vpop.f32.mrf.mxu0
      %v1827 = vadd.f32 0.0, %v1826
      %v1828 = vpop.f32.mrf.mxu0
      %v1829 = vpop.f32.mrf.mxu0
      %v1830 = vadd.f32 0.0, %v1829
      %v1831 = vpop.f32.mrf.mxu0
      %1832 = vmatprep.mubr.bf16.mxu0 0
      %1833 = vmatmul.mubr.bf16.gmra.mxu0 %v1777
      %v1834 = vpop.f32.mrf.mxu0
      %v1835 = vadd.f32 0.0, %v1834
      %v1836 = vpop.f32.mrf.mxu0
      %v1837 = vpop.f32.mrf.mxu0
      %v1838 = vadd.f32 0.0, %v1837
      %v1839 = vpop.f32.mrf.mxu0
      %1840 = vmatprep.mubr.bf16.mxu0 0
      %1841 = vmatmul.mubr.bf16.gmra.mxu0 %v1778
      %v1842 = vpop.f32.mrf.mxu0
      %v1843 = vadd.f32 0.0, %v1842
      %v1844 = vpop.f32.mrf.mxu0
      %v1845 = vpop.f32.mrf.mxu0
      %v1846 = vadd.f32 0.0, %v1845
      %v1847 = vpop.f32.mrf.mxu0
      %1848 = vmatprep.mubr.bf16.mxu0 0
      %1849 = vmatmul.mubr.bf16.gmra.mxu0 %v1779
      %v1850 = vpop.f32.mrf.mxu0
      %v1851 = vadd.f32 0.0, %v1850
      %v1852 = vpop.f32.mrf.mxu0
      %v1853 = vpop.f32.mrf.mxu0
      %v1854 = vadd.f32 0.0, %v1853
      %v1855 = vpop.f32.mrf.mxu0
      %1856 = vmatprep.mubr.bf16.mxu0 0
      %1857 = vmatmul.mubr.bf16.gmra.mxu0 %v1780
      %v1858 = vpop.f32.mrf.mxu0
      %v1859 = vadd.f32 0.0, %v1858
      %v1860 = vpop.f32.mrf.mxu0
      %v1861 = vpop.f32.mrf.mxu0
      %v1862 = vadd.f32 0.0, %v1861
      %v1863 = vpop.f32.mrf.mxu0
      %1864 = vmatprep.mubr.bf16.mxu0 0
      %1865 = vmatmul.mubr.bf16.gmra.mxu0 %v1781
      %v1866 = vpop.f32.mrf.mxu0
      %v1867 = vadd.f32 0.0, %v1866
      %v1868 = vpop.f32.mrf.mxu0
      %v1869 = vpop.f32.mrf.mxu0
      %v1870 = vadd.f32 0.0, %v1869
      %v1871 = vpop.f32.mrf.mxu0
      %1872 = vmatprep.mubr.bf16.mxu0 0
      %1873 = vmatmul.mubr.bf16.gmra.mxu0 %v1782
      %v1874 = vpop.f32.mrf.mxu0
      %v1875 = vadd.f32 0.0, %v1874
      %v1876 = vpop.f32.mrf.mxu0
      %v1877 = vpop.f32.mrf.mxu0
      %v1878 = vadd.f32 0.0, %v1877
      %v1879 = vpop.f32.mrf.mxu0
      %1880 = vmatprep.mubr.bf16.mxu0 0
      %1881 = vmatmul.mubr.bf16.gmra.mxu0 %v1783
      %v1882 = vpop.f32.mrf.mxu0
      %v1883 = vadd.f32 0.0, %v1882
      %v1884 = vpop.f32.mrf.mxu0
      %v1885 = vpop.f32.mrf.mxu0
      %v1886 = vadd.f32 0.0, %v1885
      %v1887 = vpop.f32.mrf.mxu0
      %1888 = vdwg.mxu0
      %v1889 = vmax.f32 %v1827, 0.0
      %v1890 = vmax.f32 %v1830, 0.0
      %v1891 = vmax.f32 %v1835, 0.0
      %v1892 = vmax.f32 %v1838, 0.0
      %v1893 = vmax.f32 %v1843, 0.0
      %v1894 = vmax.f32 %v1846, 0.0
      %v1895 = vmax.f32 %v1851, 0.0
      %v1896 = vmax.f32 %v1854, 0.0
      %v1897 = vmax.f32 %v1859, 0.0
      %v1898 = vmax.f32 %v1862, 0.0
      %v1899 = vmax.f32 %v1867, 0.0
      %v1900 = vmax.f32 %v1870, 0.0
      %v1901 = vmax.f32 %v1875, 0.0
      %v1902 = vmax.f32 %v1878, 0.0
      %v1903 = vmax.f32 %v1883, 0.0
      %v1904 = vmax.f32 %v1886, 0.0
      %v1905 = vpack.c.bf16 %v1890, %v1889
      %v1906 = vpack.c.bf16 %v1892, %v1891
      %v1907 = vpack.c.bf16 %v1894, %v1893
      %v1908 = vpack.c.bf16 %v1896, %v1895
      %v1909 = vpack.c.bf16 %v1898, %v1897
      %v1910 = vpack.c.bf16 %v1900, %v1899
      %v1911 = vpack.c.bf16 %v1902, %v1901
      %v1912 = vpack.c.bf16 %v1904, %v1903
      %v1913 = vld [vmem:[%s732] sm:$0xf]
      %v1914 = vld [vmem:[%s732 + $0x4] sm:$0xf]
      %v1915 = vld [vmem:[%s732 + $0x8] sm:$0xf]
      %v1916 = vld [vmem:[%s732 + $0xc] sm:$0xf]
      %v1917 = vld [vmem:[%s732 + $0x10] sm:$0xf]
      %v1918 = vld [vmem:[%s732 + $0x14] sm:$0xf]
      %v1919 = vld [vmem:[%s732 + $0x18] sm:$0xf]
      %v1920 = vld [vmem:[%s732 + $0x1c] sm:$0xf]
      %v1921 = vld [vmem:[%s732 + $0x20] sm:$0xf]
      %v1922 = vld [vmem:[%s732 + $0x24] sm:$0xf]
      %v1923 = vld [vmem:[%s732 + $0x28] sm:$0xf]
      %v1924 = vld [vmem:[%s732 + $0x2c] sm:$0xf]
      %v1925 = vld [vmem:[%s732 + $0x30] sm:$0xf]
      %v1926 = vld [vmem:[%s732 + $0x34] sm:$0xf]
      %v1927 = vld [vmem:[%s732 + $0x38] sm:$0xf]
      %v1928 = vld [vmem:[%s732 + $0x3c] sm:$0xf]
      %v1929 = vld [vmem:[%s737] sm:$0xf]
      %v1930 = vld [vmem:[%s737 + $0x4] sm:$0xf]
      %v1931 = vld [vmem:[%s737 + $0x8] sm:$0xf]
      %v1932 = vld [vmem:[%s737 + $0xc] sm:$0xf]
      %v1933 = vld [vmem:[%s737 + $0x10] sm:$0xf]
      %v1934 = vld [vmem:[%s737 + $0x14] sm:$0xf]
      %v1935 = vld [vmem:[%s737 + $0x18] sm:$0xf]
      %v1936 = vld [vmem:[%s737 + $0x1c] sm:$0xf]
      %v1937 = vld [vmem:[%s737 + $0x20] sm:$0xf]
      %v1938 = vld [vmem:[%s737 + $0x24] sm:$0xf]
      %v1939 = vld [vmem:[%s737 + $0x28] sm:$0xf]
      %v1940 = vld [vmem:[%s737 + $0x2c] sm:$0xf]
      %v1941 = vld [vmem:[%s737 + $0x30] sm:$0xf]
      %v1942 = vld [vmem:[%s737 + $0x34] sm:$0xf]
      %v1943 = vld [vmem:[%s737 + $0x38] sm:$0xf]
      %v1944 = vld [vmem:[%s737 + $0x3c] sm:$0xf]
      %v1961 = vunpack.c.l.b16 %v1929
      %v1962 = vunpack.c.l.b16 %v1930
      %v1963 = vunpack.c.l.b16 %v1931
      %v1964 = vunpack.c.l.b16 %v1932
      %v1965 = vunpack.c.l.b16 %v1933
      %v1966 = vunpack.c.l.b16 %v1934
      %v1967 = vunpack.c.l.b16 %v1935
      %v1968 = vunpack.c.l.b16 %v1936
      %v1969 = vunpack.c.l.b16 %v1937
      %v1970 = vunpack.c.l.b16 %v1938
      %v1971 = vunpack.c.l.b16 %v1939
      %v1972 = vunpack.c.l.b16 %v1940
      %v1973 = vunpack.c.l.b16 %v1941
      %v1974 = vunpack.c.l.b16 %v1942
      %v1975 = vunpack.c.l.b16 %v1943
      %v1976 = vunpack.c.l.b16 %v1944
      %v1977 = vpack.c.b16 %v1962, %v1961
      %v1978 = vpack.c.b16 %v1964, %v1963
      %v1979 = vpack.c.b16 %v1966, %v1965
      %v1980 = vpack.c.b16 %v1968, %v1967
      %v1981 = vpack.c.b16 %v1970, %v1969
      %v1982 = vpack.c.b16 %v1972, %v1971
      %v1983 = vpack.c.b16 %v1974, %v1973
      %v1984 = vpack.c.b16 %v1976, %v1975
      %1993 = vmatprep.subr.bf16.mxu0 0
      %1994 = vmatpush1.bf16.msra.mxu0 %v1984
      %1995 = vmatprep.subr.bf16.mxu0 0
      %1996 = vmatpush1.bf16.msra.mxu0 %v1983
      %1997 = vmatprep.subr.bf16.mxu0 0
      %1998 = vmatpush1.bf16.msra.mxu0 %v1982
      %1999 = vmatprep.subr.bf16.mxu0 0
      %2000 = vmatpush1.bf16.msra.mxu0 %v1981
      %2001 = vmatprep.subr.bf16.mxu0 0
      %2002 = vmatpush1.bf16.msra.mxu0 %v1980
      %2003 = vmatprep.subr.bf16.mxu0 0
      %2004 = vmatpush1.bf16.msra.mxu0 %v1979
      %2005 = vmatprep.subr.bf16.mxu0 0
      %2006 = vmatpush1.bf16.msra.mxu0 %v1978
      %2007 = vmatprep.subr.bf16.mxu0 0
      %2008 = vmatpush1.bf16.msra.mxu0 %v1977
      %2009 = vmatprep.subr.bf16.mxu0 0
      %2010 = vmatpush2.bf16.msra.mxu0 0
      %2011 = vmatprep.subr.bf16.mxu0 0
      %2012 = vmatpush2.bf16.msra.mxu0 0
      %2013 = vmatprep.subr.bf16.mxu0 0
      %2014 = vmatpush2.bf16.msra.mxu0 0
      %2015 = vmatprep.subr.bf16.mxu0 0
      %2016 = vmatpush2.bf16.msra.mxu0 0
      %2017 = vmatprep.subr.bf16.mxu0 0
      %2018 = vmatpush2.bf16.msra.mxu0 0
      %2019 = vmatprep.subr.bf16.mxu0 0
      %2020 = vmatpush2.bf16.msra.mxu0 0
      %2021 = vmatprep.subr.bf16.mxu0 0
      %2022 = vmatpush2.bf16.msra.mxu0 0
      %2023 = vmatprep.subr.bf16.mxu0 0
      %2024 = vmatpush2.bf16.msra.mxu0 0
      %2025 = vmatprep.mubr.bf16.mxu0 0
      %2026 = vmatmul.mubr.bf16.gmra.mxu0 %v1909
      %v2027 = vpop.f32.mrf.mxu0
      %v2028 = vadd.f32 0.0, %v2027
      %v2029 = vpop.f32.mrf.mxu0
      %v2030 = vpop.f32.mrf.mxu0
      %v2031 = vadd.f32 0.0, %v2030
      %v2032 = vpop.f32.mrf.mxu0
      %2033 = vmatprep.mubr.bf16.mxu0 0
      %2034 = vmatmul.mubr.bf16.gmra.mxu0 %v1910
      %v2035 = vpop.f32.mrf.mxu0
      %v2036 = vadd.f32 0.0, %v2035
      %v2037 = vpop.f32.mrf.mxu0
      %v2038 = vpop.f32.mrf.mxu0
      %v2039 = vadd.f32 0.0, %v2038
      %v2040 = vpop.f32.mrf.mxu0
      %2041 = vmatprep.mubr.bf16.mxu0 0
      %2042 = vmatmul.mubr.bf16.gmra.mxu0 %v1911
      %v2043 = vpop.f32.mrf.mxu0
      %v2044 = vadd.f32 0.0, %v2043
      %v2045 = vpop.f32.mrf.mxu0
      %v2046 = vpop.f32.mrf.mxu0
      %v2047 = vadd.f32 0.0, %v2046
      %v2048 = vpop.f32.mrf.mxu0
      %2049 = vmatprep.mubr.bf16.mxu0 0
      %2050 = vmatmul.mubr.bf16.gmra.mxu0 %v1912
      %v2051 = vpop.f32.mrf.mxu0
      %v2052 = vadd.f32 0.0, %v2051
      %v2053 = vpop.f32.mrf.mxu0
      %v2054 = vpop.f32.mrf.mxu0
      %v2055 = vadd.f32 0.0, %v2054
      %v2056 = vpop.f32.mrf.mxu0
      %2057 = vmatprep.mubr.bf16.mxu0 0
      %2058 = vmatmul.mubr.bf16.gmra.mxu0 %v1905
      %v2059 = vpop.f32.mrf.mxu0
      %v2060 = vadd.f32 0.0, %v2059
      %v2061 = vpop.f32.mrf.mxu0
      %v2062 = vpop.f32.mrf.mxu0
      %v2063 = vadd.f32 0.0, %v2062
      %v2064 = vpop.f32.mrf.mxu0
      %2065 = vmatprep.mubr.bf16.mxu0 0
      %2066 = vmatmul.mubr.bf16.gmra.mxu0 %v1906
      %v2067 = vpop.f32.mrf.mxu0
      %v2068 = vadd.f32 0.0, %v2067
      %v2069 = vpop.f32.mrf.mxu0
      %v2070 = vpop.f32.mrf.mxu0
      %v2071 = vadd.f32 0.0, %v2070
      %v2072 = vpop.f32.mrf.mxu0
      %2073 = vmatprep.mubr.bf16.mxu0 0
      %2074 = vmatmul.mubr.bf16.gmra.mxu0 %v1907
      %v2075 = vpop.f32.mrf.mxu0
      %v2076 = vadd.f32 0.0, %v2075
      %v2077 = vpop.f32.mrf.mxu0
      %v2078 = vpop.f32.mrf.mxu0
      %v2079 = vadd.f32 0.0, %v2078
      %v2080 = vpop.f32.mrf.mxu0
      %2081 = vmatprep.mubr.bf16.mxu0 0
      %2082 = vmatmul.mubr.bf16.gmra.mxu0 %v1908
      %v2083 = vpop.f32.mrf.mxu0
      %v2084 = vadd.f32 0.0, %v2083
      %v2085 = vpop.f32.mrf.mxu0
      %v2086 = vpop.f32.mrf.mxu0
      %v2087 = vadd.f32 0.0, %v2086
      %v2088 = vpop.f32.mrf.mxu0
      %2089 = vdwg.mxu0
      %v2106 = vunpack.c.l.b16 %v1913
      %v2107 = vunpack.c.l.b16 %v1914
      %v2108 = vunpack.c.l.b16 %v1915
      %v2109 = vunpack.c.l.b16 %v1916
      %v2110 = vunpack.c.l.b16 %v1917
      %v2111 = vunpack.c.l.b16 %v1918
      %v2112 = vunpack.c.l.b16 %v1919
      %v2113 = vunpack.c.l.b16 %v1920
      %v2114 = vunpack.c.l.b16 %v1921
      %v2115 = vunpack.c.l.b16 %v1922
      %v2116 = vunpack.c.l.b16 %v1923
      %v2117 = vunpack.c.l.b16 %v1924
      %v2118 = vunpack.c.l.b16 %v1925
      %v2119 = vunpack.c.l.b16 %v1926
      %v2120 = vunpack.c.l.b16 %v1927
      %v2121 = vunpack.c.l.b16 %v1928
      %v2122 = vpack.c.b16 %v2107, %v2106
      %v2123 = vpack.c.b16 %v2109, %v2108
      %v2124 = vpack.c.b16 %v2111, %v2110
      %v2125 = vpack.c.b16 %v2113, %v2112
      %v2126 = vpack.c.b16 %v2115, %v2114
      %v2127 = vpack.c.b16 %v2117, %v2116
      %v2128 = vpack.c.b16 %v2119, %v2118
      %v2129 = vpack.c.b16 %v2121, %v2120
      %2138 = vmatprep.subr.bf16.mxu0 0
      %2139 = vmatpush1.bf16.msra.mxu0 %v2129
      %2140 = vmatprep.subr.bf16.mxu0 0
      %2141 = vmatpush1.bf16.msra.mxu0 %v2128
      %2142 = vmatprep.subr.bf16.mxu0 0
      %2143 = vmatpush1.bf16.msra.mxu0 %v2127
      %2144 = vmatprep.subr.bf16.mxu0 0
      %2145 = vmatpush1.bf16.msra.mxu0 %v2126
      %2146 = vmatprep.subr.bf16.mxu0 0
      %2147 = vmatpush1.bf16.msra.mxu0 %v2125
      %2148 = vmatprep.subr.bf16.mxu0 0
      %2149 = vmatpush1.bf16.msra.mxu0 %v2124
      %2150 = vmatprep.subr.bf16.mxu0 0
      %2151 = vmatpush1.bf16.msra.mxu0 %v2123
      %2152 = vmatprep.subr.bf16.mxu0 0
      %2153 = vmatpush1.bf16.msra.mxu0 %v2122
      %2154 = vmatprep.subr.bf16.mxu0 0
      %2155 = vmatpush2.bf16.msra.mxu0 0
      %2156 = vmatprep.subr.bf16.mxu0 0
      %2157 = vmatpush2.bf16.msra.mxu0 0
      %2158 = vmatprep.subr.bf16.mxu0 0
      %2159 = vmatpush2.bf16.msra.mxu0 0
      %2160 = vmatprep.subr.bf16.mxu0 0
      %2161 = vmatpush2.bf16.msra.mxu0 0
      %2162 = vmatprep.subr.bf16.mxu0 0
      %2163 = vmatpush2.bf16.msra.mxu0 0
      %2164 = vmatprep.subr.bf16.mxu0 0
      %2165 = vmatpush2.bf16.msra.mxu0 0
      %2166 = vmatprep.subr.bf16.mxu0 0
      %2167 = vmatpush2.bf16.msra.mxu0 0
      %2168 = vmatprep.subr.bf16.mxu0 0
      %2169 = vmatpush2.bf16.msra.mxu0 0
      %2170 = vmatprep.mubr.bf16.mxu0 0
      %2171 = vmatmul.mubr.bf16.gmra.mxu0 %v1905
      %v2172 = vpop.f32.mrf.mxu0
      %v2173 = vadd.f32 %v2028, %v2172
      %v2174 = vpop.f32.mrf.mxu0
      %v2175 = vpop.f32.mrf.mxu0
      %v2176 = vadd.f32 %v2031, %v2175
      %v2177 = vpop.f32.mrf.mxu0
      %2178 = vmatprep.mubr.bf16.mxu0 0
      %2179 = vmatmul.mubr.bf16.gmra.mxu0 %v1906
      %v2180 = vpop.f32.mrf.mxu0
      %v2181 = vadd.f32 %v2036, %v2180
      %v2182 = vpop.f32.mrf.mxu0
      %v2183 = vpop.f32.mrf.mxu0
      %v2184 = vadd.f32 %v2039, %v2183
      %v2185 = vpop.f32.mrf.mxu0
      %2186 = vmatprep.mubr.bf16.mxu0 0
      %2187 = vmatmul.mubr.bf16.gmra.mxu0 %v1907
      %v2188 = vpop.f32.mrf.mxu0
      %v2189 = vadd.f32 %v2044, %v2188
      %v2190 = vpop.f32.mrf.mxu0
      %v2191 = vpop.f32.mrf.mxu0
      %v2192 = vadd.f32 %v2047, %v2191
      %v2193 = vpop.f32.mrf.mxu0
      %2194 = vmatprep.mubr.bf16.mxu0 0
      %2195 = vmatmul.mubr.bf16.gmra.mxu0 %v1908
      %v2196 = vpop.f32.mrf.mxu0
      %v2197 = vadd.f32 %v2052, %v2196
      %v2198 = vpop.f32.mrf.mxu0
      %v2199 = vpop.f32.mrf.mxu0
      %v2200 = vadd.f32 %v2055, %v2199
      %v2201 = vpop.f32.mrf.mxu0
      %2202 = vmatprep.mubr.bf16.mxu0 0
      %2203 = vmatmul.mubr.bf16.gmra.mxu0 %v1909
      %v2204 = vpop.f32.mrf.mxu0
      %v2205 = vadd.f32 %v2060, %v2204
      %v2206 = vpop.f32.mrf.mxu0
      %v2207 = vpop.f32.mrf.mxu0
      %v2208 = vadd.f32 %v2063, %v2207
      %v2209 = vpop.f32.mrf.mxu0
      %2210 = vmatprep.mubr.bf16.mxu0 0
      %2211 = vmatmul.mubr.bf16.gmra.mxu0 %v1910
      %v2212 = vpop.f32.mrf.mxu0
      %v2213 = vadd.f32 %v2068, %v2212
      %v2214 = vpop.f32.mrf.mxu0
      %v2215 = vpop.f32.mrf.mxu0
      %v2216 = vadd.f32 %v2071, %v2215
      %v2217 = vpop.f32.mrf.mxu0
      %2218 = vmatprep.mubr.bf16.mxu0 0
      %2219 = vmatmul.mubr.bf16.gmra.mxu0 %v1911
      %v2220 = vpop.f32.mrf.mxu0
      %v2221 = vadd.f32 %v2076, %v2220
      %v2222 = vpop.f32.mrf.mxu0
      %v2223 = vpop.f32.mrf.mxu0
      %v2224 = vadd.f32 %v2079, %v2223
      %v2225 = vpop.f32.mrf.mxu0
      %2226 = vmatprep.mubr.bf16.mxu0 0
      %2227 = vmatmul.mubr.bf16.gmra.mxu0 %v1912
      %v2228 = vpop.f32.mrf.mxu0
      %v2229 = vadd.f32 %v2084, %v2228
      %v2230 = vpop.f32.mrf.mxu0
      %v2231 = vpop.f32.mrf.mxu0
      %v2232 = vadd.f32 %v2087, %v2231
      %v2233 = vpop.f32.mrf.mxu0
      %2234 = vdwg.mxu0
      %v2235 = vld [vmem:[%s740] sm:$0x1]
      %v2237 = vlaneseq
      %v2238 = vshrl.u32 %v2237, 7
      %v2239 = vsub.s32 0, %v2238
      %v2240 = vrot.slane %v2235, %v2239
      %v2242 = vadd.f32 %v2173, %v2240
      %v2243 = vadd.f32 %v2176, %v2240
      %v2244 = vadd.f32 %v2181, %v2240
      %v2245 = vadd.f32 %v2184, %v2240
      %v2246 = vadd.f32 %v2189, %v2240
      %v2247 = vadd.f32 %v2192, %v2240
      %v2248 = vadd.f32 %v2197, %v2240
      %v2249 = vadd.f32 %v2200, %v2240
      %v2250 = vadd.f32 %v2205, %v2240
      %v2251 = vadd.f32 %v2208, %v2240
      %v2252 = vadd.f32 %v2213, %v2240
      %v2253 = vadd.f32 %v2216, %v2240
      %v2254 = vadd.f32 %v2221, %v2240
      %v2255 = vadd.f32 %v2224, %v2240
      %v2256 = vadd.f32 %v2229, %v2240
      %v2257 = vadd.f32 %v2232, %v2240
      %v2258 = vld [vmem:[%s745] sm:$0xf]
      %v2259 = vld [vmem:[%s745 + $0x4] sm:$0xf]
      %v2260 = vld [vmem:[%s745 + $0x8] sm:$0xf]
      %v2261 = vld [vmem:[%s745 + $0xc] sm:$0xf]
      %v2262 = vld [vmem:[%s745 + $0x10] sm:$0xf]
      %v2263 = vld [vmem:[%s745 + $0x14] sm:$0xf]
      %v2264 = vld [vmem:[%s745 + $0x18] sm:$0xf]
      %v2265 = vld [vmem:[%s745 + $0x1c] sm:$0xf]
      %v2266 = vld [vmem:[%s745 + $0x20] sm:$0xf]
      %v2267 = vld [vmem:[%s745 + $0x24] sm:$0xf]
      %v2268 = vld [vmem:[%s745 + $0x28] sm:$0xf]
      %v2269 = vld [vmem:[%s745 + $0x2c] sm:$0xf]
      %v2270 = vld [vmem:[%s745 + $0x30] sm:$0xf]
      %v2271 = vld [vmem:[%s745 + $0x34] sm:$0xf]
      %v2272 = vld [vmem:[%s745 + $0x38] sm:$0xf]
      %v2273 = vld [vmem:[%s745 + $0x3c] sm:$0xf]
      %v2274 = vld [vmem:[%s750] sm:$0xf]
      %v2275 = vld [vmem:[%s750 + $0x4] sm:$0xf]
      %v2276 = vld [vmem:[%s750 + $0x8] sm:$0xf]
      %v2277 = vld [vmem:[%s750 + $0xc] sm:$0xf]
      %v2278 = vld [vmem:[%s750 + $0x10] sm:$0xf]
      %v2279 = vld [vmem:[%s750 + $0x14] sm:$0xf]
      %v2280 = vld [vmem:[%s750 + $0x18] sm:$0xf]
      %v2281 = vld [vmem:[%s750 + $0x1c] sm:$0xf]
      %v2282 = vld [vmem:[%s750 + $0x20] sm:$0xf]
      %v2283 = vld [vmem:[%s750 + $0x24] sm:$0xf]
      %v2284 = vld [vmem:[%s750 + $0x28] sm:$0xf]
      %v2285 = vld [vmem:[%s750 + $0x2c] sm:$0xf]
      %v2286 = vld [vmem:[%s750 + $0x30] sm:$0xf]
      %v2287 = vld [vmem:[%s750 + $0x34] sm:$0xf]
      %v2288 = vld [vmem:[%s750 + $0x38] sm:$0xf]
      %v2289 = vld [vmem:[%s750 + $0x3c] sm:$0xf]
      %v2306 = vunpack.c.l.b16 %v2274
      %v2307 = vunpack.c.l.b16 %v2275
      %v2308 = vunpack.c.l.b16 %v2276
      %v2309 = vunpack.c.l.b16 %v2277
      %v2310 = vunpack.c.l.b16 %v2278
      %v2311 = vunpack.c.l.b16 %v2279
      %v2312 = vunpack.c.l.b16 %v2280
      %v2313 = vunpack.c.l.b16 %v2281
      %v2314 = vunpack.c.l.b16 %v2282
      %v2315 = vunpack.c.l.b16 %v2283
      %v2316 = vunpack.c.l.b16 %v2284
      %v2317 = vunpack.c.l.b16 %v2285
      %v2318 = vunpack.c.l.b16 %v2286
      %v2319 = vunpack.c.l.b16 %v2287
      %v2320 = vunpack.c.l.b16 %v2288
      %v2321 = vunpack.c.l.b16 %v2289
      %v2322 = vpack.c.b16 %v2307, %v2306
      %v2323 = vpack.c.b16 %v2309, %v2308
      %v2324 = vpack.c.b16 %v2311, %v2310
      %v2325 = vpack.c.b16 %v2313, %v2312
      %v2326 = vpack.c.b16 %v2315, %v2314
      %v2327 = vpack.c.b16 %v2317, %v2316
      %v2328 = vpack.c.b16 %v2319, %v2318
      %v2329 = vpack.c.b16 %v2321, %v2320
      %2338 = vmatprep.subr.bf16.mxu0 0
      %2339 = vmatpush1.bf16.msra.mxu0 %v2329
      %2340 = vmatprep.subr.bf16.mxu0 0
      %2341 = vmatpush1.bf16.msra.mxu0 %v2328
      %2342 = vmatprep.subr.bf16.mxu0 0
      %2343 = vmatpush1.bf16.msra.mxu0 %v2327
      %2344 = vmatprep.subr.bf16.mxu0 0
      %2345 = vmatpush1.bf16.msra.mxu0 %v2326
      %2346 = vmatprep.subr.bf16.mxu0 0
      %2347 = vmatpush1.bf16.msra.mxu0 %v2325
      %2348 = vmatprep.subr.bf16.mxu0 0
      %2349 = vmatpush1.bf16.msra.mxu0 %v2324
      %2350 = vmatprep.subr.bf16.mxu0 0
      %2351 = vmatpush1.bf16.msra.mxu0 %v2323
      %2352 = vmatprep.subr.bf16.mxu0 0
      %2353 = vmatpush1.bf16.msra.mxu0 %v2322
      %2354 = vmatprep.subr.bf16.mxu0 0
      %2355 = vmatpush2.bf16.msra.mxu0 0
      %2356 = vmatprep.subr.bf16.mxu0 0
      %2357 = vmatpush2.bf16.msra.mxu0 0
      %2358 = vmatprep.subr.bf16.mxu0 0
      %2359 = vmatpush2.bf16.msra.mxu0 0
      %2360 = vmatprep.subr.bf16.mxu0 0
      %2361 = vmatpush2.bf16.msra.mxu0 0
      %2362 = vmatprep.subr.bf16.mxu0 0
      %2363 = vmatpush2.bf16.msra.mxu0 0
      %2364 = vmatprep.subr.bf16.mxu0 0
      %2365 = vmatpush2.bf16.msra.mxu0 0
      %2366 = vmatprep.subr.bf16.mxu0 0
      %2367 = vmatpush2.bf16.msra.mxu0 0
      %2368 = vmatprep.subr.bf16.mxu0 0
      %2369 = vmatpush2.bf16.msra.mxu0 0
      %2370 = vmatprep.mubr.bf16.mxu0 0
      %2371 = vmatmul.mubr.bf16.gmra.mxu0 %v1909
      %v2372 = vpop.f32.mrf.mxu0
      %v2373 = vadd.f32 0.0, %v2372
      %v2374 = vpop.f32.mrf.mxu0
      %v2375 = vpop.f32.mrf.mxu0
      %v2376 = vadd.f32 0.0, %v2375
      %v2377 = vpop.f32.mrf.mxu0
      %2378 = vmatprep.mubr.bf16.mxu0 0
      %2379 = vmatmul.mubr.bf16.gmra.mxu0 %v1910
      %v2380 = vpop.f32.mrf.mxu0
      %v2381 = vadd.f32 0.0, %v2380
      %v2382 = vpop.f32.mrf.mxu0
      %v2383 = vpop.f32.mrf.mxu0
      %v2384 = vadd.f32 0.0, %v2383
      %v2385 = vpop.f32.mrf.mxu0
      %2386 = vmatprep.mubr.bf16.mxu0 0
      %2387 = vmatmul.mubr.bf16.gmra.mxu0 %v1911
      %v2388 = vpop.f32.mrf.mxu0
      %v2389 = vadd.f32 0.0, %v2388
      %v2390 = vpop.f32.mrf.mxu0
      %v2391 = vpop.f32.mrf.mxu0
      %v2392 = vadd.f32 0.0, %v2391
      %v2393 = vpop.f32.mrf.mxu0
      %2394 = vmatprep.mubr.bf16.mxu0 0
      %2395 = vmatmul.mubr.bf16.gmra.mxu0 %v1912
      %v2396 = vpop.f32.mrf.mxu0
      %v2397 = vadd.f32 0.0, %v2396
      %v2398 = vpop.f32.mrf.mxu0
      %v2399 = vpop.f32.mrf.mxu0
      %v2400 = vadd.f32 0.0, %v2399
      %v2401 = vpop.f32.mrf.mxu0
      %2402 = vmatprep.mubr.bf16.mxu0 0
      %2403 = vmatmul.mubr.bf16.gmra.mxu0 %v1905
      %v2404 = vpop.f32.mrf.mxu0
      %v2405 = vadd.f32 0.0, %v2404
      %v2406 = vpop.f32.mrf.mxu0
      %v2407 = vpop.f32.mrf.mxu0
      %v2408 = vadd.f32 0.0, %v2407
      %v2409 = vpop.f32.mrf.mxu0
      %2410 = vmatprep.mubr.bf16.mxu0 0
      %2411 = vmatmul.mubr.bf16.gmra.mxu0 %v1906
      %v2412 = vpop.f32.mrf.mxu0
      %v2413 = vadd.f32 0.0, %v2412
      %v2414 = vpop.f32.mrf.mxu0
      %v2415 = vpop.f32.mrf.mxu0
      %v2416 = vadd.f32 0.0, %v2415
      %v2417 = vpop.f32.mrf.mxu0
      %2418 = vmatprep.mubr.bf16.mxu0 0
      %2419 = vmatmul.mubr.bf16.gmra.mxu0 %v1907
      %v2420 = vpop.f32.mrf.mxu0
      %v2421 = vadd.f32 0.0, %v2420
      %v2422 = vpop.f32.mrf.mxu0
      %v2423 = vpop.f32.mrf.mxu0
      %v2424 = vadd.f32 0.0, %v2423
      %v2425 = vpop.f32.mrf.mxu0
      %2426 = vmatprep.mubr.bf16.mxu0 0
      %2427 = vmatmul.mubr.bf16.gmra.mxu0 %v1908
      %v2428 = vpop.f32.mrf.mxu0
      %v2429 = vadd.f32 0.0, %v2428
      %v2430 = vpop.f32.mrf.mxu0
      %v2431 = vpop.f32.mrf.mxu0
      %v2432 = vadd.f32 0.0, %v2431
      %v2433 = vpop.f32.mrf.mxu0
      %2434 = vdwg.mxu0
      %v2451 = vunpack.c.l.b16 %v2258
      %v2452 = vunpack.c.l.b16 %v2259
      %v2453 = vunpack.c.l.b16 %v2260
      %v2454 = vunpack.c.l.b16 %v2261
      %v2455 = vunpack.c.l.b16 %v2262
      %v2456 = vunpack.c.l.b16 %v2263
      %v2457 = vunpack.c.l.b16 %v2264
      %v2458 = vunpack.c.l.b16 %v2265
      %v2459 = vunpack.c.l.b16 %v2266
      %v2460 = vunpack.c.l.b16 %v2267
      %v2461 = vunpack.c.l.b16 %v2268
      %v2462 = vunpack.c.l.b16 %v2269
      %v2463 = vunpack.c.l.b16 %v2270
      %v2464 = vunpack.c.l.b16 %v2271
      %v2465 = vunpack.c.l.b16 %v2272
      %v2466 = vunpack.c.l.b16 %v2273
      %v2467 = vpack.c.b16 %v2452, %v2451
      %v2468 = vpack.c.b16 %v2454, %v2453
      %v2469 = vpack.c.b16 %v2456, %v2455
      %v2470 = vpack.c.b16 %v2458, %v2457
      %v2471 = vpack.c.b16 %v2460, %v2459
      %v2472 = vpack.c.b16 %v2462, %v2461
      %v2473 = vpack.c.b16 %v2464, %v2463
      %v2474 = vpack.c.b16 %v2466, %v2465
      %2483 = vmatprep.subr.bf16.mxu0 0
      %2484 = vmatpush1.bf16.msra.mxu0 %v2474
      %2485 = vmatprep.subr.bf16.mxu0 0
      %2486 = vmatpush1.bf16.msra.mxu0 %v2473
      %2487 = vmatprep.subr.bf16.mxu0 0
      %2488 = vmatpush1.bf16.msra.mxu0 %v2472
      %2489 = vmatprep.subr.bf16.mxu0 0
      %2490 = vmatpush1.bf16.msra.mxu0 %v2471
      %2491 = vmatprep.subr.bf16.mxu0 0
      %2492 = vmatpush1.bf16.msra.mxu0 %v2470
      %2493 = vmatprep.subr.bf16.mxu0 0
      %2494 = vmatpush1.bf16.msra.mxu0 %v2469
      %2495 = vmatprep.subr.bf16.mxu0 0
      %2496 = vmatpush1.bf16.msra.mxu0 %v2468
      %2497 = vmatprep.subr.bf16.mxu0 0
      %2498 = vmatpush1.bf16.msra.mxu0 %v2467
      %2499 = vmatprep.subr.bf16.mxu0 0
      %2500 = vmatpush2.bf16.msra.mxu0 0
      %2501 = vmatprep.subr.bf16.mxu0 0
      %2502 = vmatpush2.bf16.msra.mxu0 0
      %2503 = vmatprep.subr.bf16.mxu0 0
      %2504 = vmatpush2.bf16.msra.mxu0 0
      %2505 = vmatprep.subr.bf16.mxu0 0
      %2506 = vmatpush2.bf16.msra.mxu0 0
      %2507 = vmatprep.subr.bf16.mxu0 0
      %2508 = vmatpush2.bf16.msra.mxu0 0
      %2509 = vmatprep.subr.bf16.mxu0 0
      %2510 = vmatpush2.bf16.msra.mxu0 0
      %2511 = vmatprep.subr.bf16.mxu0 0
      %2512 = vmatpush2.bf16.msra.mxu0 0
      %2513 = vmatprep.subr.bf16.mxu0 0
      %2514 = vmatpush2.bf16.msra.mxu0 0
      %2515 = vmatprep.mubr.bf16.mxu0 0
      %2516 = vmatmul.mubr.bf16.gmra.mxu0 %v1905
      %v2517 = vpop.f32.mrf.mxu0
      %v2518 = vadd.f32 %v2373, %v2517
      %v2519 = vpop.f32.mrf.mxu0
      %v2520 = vpop.f32.mrf.mxu0
      %v2521 = vadd.f32 %v2376, %v2520
      %v2522 = vpop.f32.mrf.mxu0
      %2523 = vmatprep.mubr.bf16.mxu0 0
      %2524 = vmatmul.mubr.bf16.gmra.mxu0 %v1906
      %v2525 = vpop.f32.mrf.mxu0
      %v2526 = vadd.f32 %v2381, %v2525
      %v2527 = vpop.f32.mrf.mxu0
      %v2528 = vpop.f32.mrf.mxu0
      %v2529 = vadd.f32 %v2384, %v2528
      %v2530 = vpop.f32.mrf.mxu0
      %2531 = vmatprep.mubr.bf16.mxu0 0
      %2532 = vmatmul.mubr.bf16.gmra.mxu0 %v1907
      %v2533 = vpop.f32.mrf.mxu0
      %v2534 = vadd.f32 %v2389, %v2533
      %v2535 = vpop.f32.mrf.mxu0
      %v2536 = vpop.f32.mrf.mxu0
      %v2537 = vadd.f32 %v2392, %v2536
      %v2538 = vpop.f32.mrf.mxu0
      %2539 = vmatprep.mubr.bf16.mxu0 0
      %2540 = vmatmul.mubr.bf16.gmra.mxu0 %v1908
      %v2541 = vpop.f32.mrf.mxu0
      %v2542 = vadd.f32 %v2397, %v2541
      %v2543 = vpop.f32.mrf.mxu0
      %v2544 = vpop.f32.mrf.mxu0
      %v2545 = vadd.f32 %v2400, %v2544
      %v2546 = vpop.f32.mrf.mxu0
      %2547 = vmatprep.mubr.bf16.mxu0 0
      %2548 = vmatmul.mubr.bf16.gmra.mxu0 %v1909
      %v2549 = vpop.f32.mrf.mxu0
      %v2550 = vadd.f32 %v2405, %v2549
      %v2551 = vpop.f32.mrf.mxu0
      %v2552 = vpop.f32.mrf.mxu0
      %v2553 = vadd.f32 %v2408, %v2552
      %v2554 = vpop.f32.mrf.mxu0
      %2555 = vmatprep.mubr.bf16.mxu0 0
      %2556 = vmatmul.mubr.bf16.gmra.mxu0 %v1910
      %v2557 = vpop.f32.mrf.mxu0
      %v2558 = vadd.f32 %v2413, %v2557
      %v2559 = vpop.f32.mrf.mxu0
      %v2560 = vpop.f32.mrf.mxu0
      %v2561 = vadd.f32 %v2416, %v2560
      %v2562 = vpop.f32.mrf.mxu0
      %2563 = vmatprep.mubr.bf16.mxu0 0
      %2564 = vmatmul.mubr.bf16.gmra.mxu0 %v1911
      %v2565 = vpop.f32.mrf.mxu0
      %v2566 = vadd.f32 %v2421, %v2565
      %v2567 = vpop.f32.mrf.mxu0
      %v2568 = vpop.f32.mrf.mxu0
      %v2569 = vadd.f32 %v2424, %v2568
      %v2570 = vpop.f32.mrf.mxu0
      %2571 = vmatprep.mubr.bf16.mxu0 0
      %2572 = vmatmul.mubr.bf16.gmra.mxu0 %v1912
      %v2573 = vpop.f32.mrf.mxu0
      %v2574 = vadd.f32 %v2429, %v2573
      %v2575 = vpop.f32.mrf.mxu0
      %v2576 = vpop.f32.mrf.mxu0
      %v2577 = vadd.f32 %v2432, %v2576
      %v2578 = vpop.f32.mrf.mxu0
      %2579 = vdwg.mxu0
      %v2580 = vld [vmem:[%s753] sm:$0x1]
      %v2582 = vlaneseq
      %v2583 = vshrl.u32 %v2582, 7
      %v2584 = vsub.s32 0, %v2583
      %v2585 = vrot.slane %v2580, %v2584
      %v2587 = vadd.f32 %v2518, %v2585
      %v2588 = vadd.f32 %v2521, %v2585
      %v2589 = vadd.f32 %v2526, %v2585
      %v2590 = vadd.f32 %v2529, %v2585
      %v2591 = vadd.f32 %v2534, %v2585
      %v2592 = vadd.f32 %v2537, %v2585
      %v2593 = vadd.f32 %v2542, %v2585
      %v2594 = vadd.f32 %v2545, %v2585
      %v2595 = vadd.f32 %v2550, %v2585
      %v2596 = vadd.f32 %v2553, %v2585
      %v2597 = vadd.f32 %v2558, %v2585
      %v2598 = vadd.f32 %v2561, %v2585
      %v2599 = vadd.f32 %v2566, %v2585
      %v2600 = vadd.f32 %v2569, %v2585
      %v2601 = vadd.f32 %v2574, %v2585
      %v2602 = vadd.f32 %v2577, %v2585
      %v2603 = vld [vmem:[%s4] sm:$0xf]
      %v2604 = vld [vmem:[%s4 + $0x4] sm:$0xf]
      %v2605 = vld [vmem:[%s4 + $0x8] sm:$0xf]
      %v2606 = vld [vmem:[%s4 + $0xc] sm:$0xf]
      %v2607 = vld [vmem:[%s4 + $0x10] sm:$0xf]
      %v2608 = vld [vmem:[%s4 + $0x14] sm:$0xf]
      %v2609 = vld [vmem:[%s4 + $0x18] sm:$0xf]
      %v2610 = vld [vmem:[%s4 + $0x1c] sm:$0xf]
      %v2611 = vld [vmem:[%s4 + $0x20] sm:$0xf]
      %v2612 = vld [vmem:[%s4 + $0x24] sm:$0xf]
      %v2613 = vld [vmem:[%s4 + $0x28] sm:$0xf]
      %v2614 = vld [vmem:[%s4 + $0x2c] sm:$0xf]
      %v2615 = vld [vmem:[%s4 + $0x30] sm:$0xf]
      %v2616 = vld [vmem:[%s4 + $0x34] sm:$0xf]
      %v2617 = vld [vmem:[%s4 + $0x38] sm:$0xf]
      %v2618 = vld [vmem:[%s4 + $0x3c] sm:$0xf]
      %v2619 = vpack.c.bf16 %v2243, %v2242
      %v2620 = vpack.c.bf16 %v2245, %v2244
      %v2621 = vpack.c.bf16 %v2247, %v2246
      %v2622 = vpack.c.bf16 %v2249, %v2248
      %v2623 = vpack.c.bf16 %v2251, %v2250
      %v2624 = vpack.c.bf16 %v2253, %v2252
      %v2625 = vpack.c.bf16 %v2255, %v2254
      %v2626 = vpack.c.bf16 %v2257, %v2256
      %v2627 = vld [vmem:[%s5] sm:$0xf]
      %v2628 = vld [vmem:[%s5 + $0x4] sm:$0xf]
      %v2629 = vld [vmem:[%s5 + $0x8] sm:$0xf]
      %v2630 = vld [vmem:[%s5 + $0xc] sm:$0xf]
      %v2631 = vld [vmem:[%s5 + $0x10] sm:$0xf]
      %v2632 = vld [vmem:[%s5 + $0x14] sm:$0xf]
      %v2633 = vld [vmem:[%s5 + $0x18] sm:$0xf]
      %v2634 = vld [vmem:[%s5 + $0x1c] sm:$0xf]
      %v2635 = vld [vmem:[%s5 + $0x20] sm:$0xf]
      %v2636 = vld [vmem:[%s5 + $0x24] sm:$0xf]
      %v2637 = vld [vmem:[%s5 + $0x28] sm:$0xf]
      %v2638 = vld [vmem:[%s5 + $0x2c] sm:$0xf]
      %v2639 = vld [vmem:[%s5 + $0x30] sm:$0xf]
      %v2640 = vld [vmem:[%s5 + $0x34] sm:$0xf]
      %v2641 = vld [vmem:[%s5 + $0x38] sm:$0xf]
      %v2642 = vld [vmem:[%s5 + $0x3c] sm:$0xf]
      %v2643 = vpack.c.bf16 %v2588, %v2587
      %v2644 = vpack.c.bf16 %v2590, %v2589
      %v2645 = vpack.c.bf16 %v2592, %v2591
      %v2646 = vpack.c.bf16 %v2594, %v2593
      %v2647 = vpack.c.bf16 %v2596, %v2595
      %v2648 = vpack.c.bf16 %v2598, %v2597
      %v2649 = vpack.c.bf16 %v2600, %v2599
      %v2650 = vpack.c.bf16 %v2602, %v2601
      %v2667 = vunpack.c.l.b16 %v2627
      %v2668 = vunpack.c.l.b16 %v2628
      %v2669 = vunpack.c.l.b16 %v2629
      %v2670 = vunpack.c.l.b16 %v2630
      %v2671 = vunpack.c.l.b16 %v2631
      %v2672 = vunpack.c.l.b16 %v2632
      %v2673 = vunpack.c.l.b16 %v2633
      %v2674 = vunpack.c.l.b16 %v2634
      %v2675 = vunpack.c.l.b16 %v2635
      %v2676 = vunpack.c.l.b16 %v2636
      %v2677 = vunpack.c.l.b16 %v2637
      %v2678 = vunpack.c.l.b16 %v2638
      %v2679 = vunpack.c.l.b16 %v2639
      %v2680 = vunpack.c.l.b16 %v2640
      %v2681 = vunpack.c.l.b16 %v2641
      %v2682 = vunpack.c.l.b16 %v2642
      %v2683 = vpack.c.b16 %v2668, %v2667
      %v2684 = vpack.c.b16 %v2670, %v2669
      %v2685 = vpack.c.b16 %v2672, %v2671
      %v2686 = vpack.c.b16 %v2674, %v2673
      %v2687 = vpack.c.b16 %v2676, %v2675
      %v2688 = vpack.c.b16 %v2678, %v2677
      %v2689 = vpack.c.b16 %v2680, %v2679
      %v2690 = vpack.c.b16 %v2682, %v2681
      %2699 = vmatprep.subr.bf16.mxu0 0
      %2700 = vmatpush1.bf16.msra.mxu0 %v2650
      %2701 = vmatprep.subr.bf16.mxu0 0
      %2702 = vmatpush1.bf16.msra.mxu0 %v2649
      %2703 = vmatprep.subr.bf16.mxu0 0
      %2704 = vmatpush1.bf16.msra.mxu0 %v2648
      %2705 = vmatprep.subr.bf16.mxu0 0
      %2706 = vmatpush1.bf16.msra.mxu0 %v2647
      %2707 = vmatprep.subr.bf16.mxu0 0
      %2708 = vmatpush1.bf16.msra.mxu0 %v2646
      %2709 = vmatprep.subr.bf16.mxu0 0
      %2710 = vmatpush1.bf16.msra.mxu0 %v2645
      %2711 = vmatprep.subr.bf16.mxu0 0
      %2712 = vmatpush1.bf16.msra.mxu0 %v2644
      %2713 = vmatprep.subr.bf16.mxu0 0
      %2714 = vmatpush1.bf16.msra.mxu0 %v2643
      %2715 = vmatprep.subr.bf16.mxu0 0
      %2716 = vmatpush2.bf16.msra.mxu0 0
      %2717 = vmatprep.subr.bf16.mxu0 0
      %2718 = vmatpush2.bf16.msra.mxu0 0
      %2719 = vmatprep.subr.bf16.mxu0 0
      %2720 = vmatpush2.bf16.msra.mxu0 0
      %2721 = vmatprep.subr.bf16.mxu0 0
      %2722 = vmatpush2.bf16.msra.mxu0 0
      %2723 = vmatprep.subr.bf16.mxu0 0
      %2724 = vmatpush2.bf16.msra.mxu0 0
      %2725 = vmatprep.subr.bf16.mxu0 0
      %2726 = vmatpush2.bf16.msra.mxu0 0
      %2727 = vmatprep.subr.bf16.mxu0 0
      %2728 = vmatpush2.bf16.msra.mxu0 0
      %2729 = vmatprep.subr.bf16.mxu0 0
      %2730 = vmatpush2.bf16.msra.mxu0 0
      %2731 = vmatprep.mubr.bf16.mxu0 0
      %2732 = vmatmul.mubr.bf16.gmra.mxu0 %v2683
      %v2733 = vpop.f32.mrf.mxu0
      %v2734 = vadd.f32 0.0, %v2733
      %v2735 = vpop.f32.mrf.mxu0
      %v2736 = vpop.f32.mrf.mxu0
      %v2737 = vadd.f32 0.0, %v2736
      %v2738 = vpop.f32.mrf.mxu0
      %2739 = vmatprep.mubr.bf16.mxu0 0
      %2740 = vmatmul.mubr.bf16.gmra.mxu0 %v2684
      %v2741 = vpop.f32.mrf.mxu0
      %v2742 = vadd.f32 0.0, %v2741
      %v2743 = vpop.f32.mrf.mxu0
      %v2744 = vpop.f32.mrf.mxu0
      %v2745 = vadd.f32 0.0, %v2744
      %v2746 = vpop.f32.mrf.mxu0
      %2747 = vmatprep.mubr.bf16.mxu0 0
      %2748 = vmatmul.mubr.bf16.gmra.mxu0 %v2685
      %v2749 = vpop.f32.mrf.mxu0
      %v2750 = vadd.f32 0.0, %v2749
      %v2751 = vpop.f32.mrf.mxu0
      %v2752 = vpop.f32.mrf.mxu0
      %v2753 = vadd.f32 0.0, %v2752
      %v2754 = vpop.f32.mrf.mxu0
      %2755 = vmatprep.mubr.bf16.mxu0 0
      %2756 = vmatmul.mubr.bf16.gmra.mxu0 %v2686
      %v2757 = vpop.f32.mrf.mxu0
      %v2758 = vadd.f32 0.0, %v2757
      %v2759 = vpop.f32.mrf.mxu0
      %v2760 = vpop.f32.mrf.mxu0
      %v2761 = vadd.f32 0.0, %v2760
      %v2762 = vpop.f32.mrf.mxu0
      %2763 = vmatprep.mubr.bf16.mxu0 0
      %2764 = vmatmul.mubr.bf16.gmra.mxu0 %v2687
      %v2765 = vpop.f32.mrf.mxu0
      %v2766 = vadd.f32 0.0, %v2765
      %v2767 = vpop.f32.mrf.mxu0
      %v2768 = vpop.f32.mrf.mxu0
      %v2769 = vadd.f32 0.0, %v2768
      %v2770 = vpop.f32.mrf.mxu0
      %2771 = vmatprep.mubr.bf16.mxu0 0
      %2772 = vmatmul.mubr.bf16.gmra.mxu0 %v2688
      %v2773 = vpop.f32.mrf.mxu0
      %v2774 = vadd.f32 0.0, %v2773
      %v2775 = vpop.f32.mrf.mxu0
      %v2776 = vpop.f32.mrf.mxu0
      %v2777 = vadd.f32 0.0, %v2776
      %v2778 = vpop.f32.mrf.mxu0
      %2779 = vmatprep.mubr.bf16.mxu0 0
      %2780 = vmatmul.mubr.bf16.gmra.mxu0 %v2689
      %v2781 = vpop.f32.mrf.mxu0
      %v2782 = vadd.f32 0.0, %v2781
      %v2783 = vpop.f32.mrf.mxu0
      %v2784 = vpop.f32.mrf.mxu0
      %v2785 = vadd.f32 0.0, %v2784
      %v2786 = vpop.f32.mrf.mxu0
      %2787 = vmatprep.mubr.bf16.mxu0 0
      %2788 = vmatmul.mubr.bf16.gmra.mxu0 %v2690
      %v2789 = vpop.f32.mrf.mxu0
      %v2790 = vadd.f32 0.0, %v2789
      %v2791 = vpop.f32.mrf.mxu0
      %v2792 = vpop.f32.mrf.mxu0
      %v2793 = vadd.f32 0.0, %v2792
      %v2794 = vpop.f32.mrf.mxu0
      %2795 = vdwg.mxu0
      %v2812 = vunpack.c.l.b16 %v2603
      %v2813 = vunpack.c.l.b16 %v2604
      %v2814 = vunpack.c.l.b16 %v2605
      %v2815 = vunpack.c.l.b16 %v2606
      %v2816 = vunpack.c.l.b16 %v2607
      %v2817 = vunpack.c.l.b16 %v2608
      %v2818 = vunpack.c.l.b16 %v2609
      %v2819 = vunpack.c.l.b16 %v2610
      %v2820 = vunpack.c.l.b16 %v2611
      %v2821 = vunpack.c.l.b16 %v2612
      %v2822 = vunpack.c.l.b16 %v2613
      %v2823 = vunpack.c.l.b16 %v2614
      %v2824 = vunpack.c.l.b16 %v2615
      %v2825 = vunpack.c.l.b16 %v2616
      %v2826 = vunpack.c.l.b16 %v2617
      %v2827 = vunpack.c.l.b16 %v2618
      %v2828 = vpack.c.b16 %v2813, %v2812
      %v2829 = vpack.c.b16 %v2815, %v2814
      %v2830 = vpack.c.b16 %v2817, %v2816
      %v2831 = vpack.c.b16 %v2819, %v2818
      %v2832 = vpack.c.b16 %v2821, %v2820
      %v2833 = vpack.c.b16 %v2823, %v2822
      %v2834 = vpack.c.b16 %v2825, %v2824
      %v2835 = vpack.c.b16 %v2827, %v2826
      %2844 = vmatprep.subr.bf16.mxu0 0
      %2845 = vmatpush1.bf16.msra.mxu0 %v2626
      %2846 = vmatprep.subr.bf16.mxu0 0
      %2847 = vmatpush1.bf16.msra.mxu0 %v2625
      %2848 = vmatprep.subr.bf16.mxu0 0
      %2849 = vmatpush1.bf16.msra.mxu0 %v2624
      %2850 = vmatprep.subr.bf16.mxu0 0
      %2851 = vmatpush1.bf16.msra.mxu0 %v2623
      %2852 = vmatprep.subr.bf16.mxu0 0
      %2853 = vmatpush1.bf16.msra.mxu0 %v2622
      %2854 = vmatprep.subr.bf16.mxu0 0
      %2855 = vmatpush1.bf16.msra.mxu0 %v2621
      %2856 = vmatprep.subr.bf16.mxu0 0
      %2857 = vmatpush1.bf16.msra.mxu0 %v2620
      %2858 = vmatprep.subr.bf16.mxu0 0
      %2859 = vmatpush1.bf16.msra.mxu0 %v2619
      %2860 = vmatprep.subr.bf16.mxu0 0
      %2861 = vmatpush2.bf16.msra.mxu0 0
      %2862 = vmatprep.subr.bf16.mxu0 0
      %2863 = vmatpush2.bf16.msra.mxu0 0
      %2864 = vmatprep.subr.bf16.mxu0 0
      %2865 = vmatpush2.bf16.msra.mxu0 0
      %2866 = vmatprep.subr.bf16.mxu0 0
      %2867 = vmatpush2.bf16.msra.mxu0 0
      %2868 = vmatprep.subr.bf16.mxu0 0
      %2869 = vmatpush2.bf16.msra.mxu0 0
      %2870 = vmatprep.subr.bf16.mxu0 0
      %2871 = vmatpush2.bf16.msra.mxu0 0
      %2872 = vmatprep.subr.bf16.mxu0 0
      %2873 = vmatpush2.bf16.msra.mxu0 0
      %2874 = vmatprep.subr.bf16.mxu0 0
      %2875 = vmatpush2.bf16.msra.mxu0 0
      %2876 = vmatprep.mubr.bf16.mxu0 0
      %2877 = vmatmul.mubr.bf16.gmra.mxu0 %v2828
      %v2878 = vpop.f32.mrf.mxu0
      %v2879 = vadd.f32 %v2734, %v2878
      %v2880 = vpop.f32.mrf.mxu0
      %v2881 = vpop.f32.mrf.mxu0
      %v2882 = vadd.f32 %v2737, %v2881
      %v2883 = vpop.f32.mrf.mxu0
      %2884 = vmatprep.mubr.bf16.mxu0 0
      %2885 = vmatmul.mubr.bf16.gmra.mxu0 %v2829
      %v2886 = vpop.f32.mrf.mxu0
      %v2887 = vadd.f32 %v2742, %v2886
      %v2888 = vpop.f32.mrf.mxu0
      %v2889 = vpop.f32.mrf.mxu0
      %v2890 = vadd.f32 %v2745, %v2889
      %v2891 = vpop.f32.mrf.mxu0
      %2892 = vmatprep.mubr.bf16.mxu0 0
      %2893 = vmatmul.mubr.bf16.gmra.mxu0 %v2830
      %v2894 = vpop.f32.mrf.mxu0
      %v2895 = vadd.f32 %v2750, %v2894
      %v2896 = vpop.f32.mrf.mxu0
      %v2897 = vpop.f32.mrf.mxu0
      %v2898 = vadd.f32 %v2753, %v2897
      %v2899 = vpop.f32.mrf.mxu0
      %2900 = vmatprep.mubr.bf16.mxu0 0
      %2901 = vmatmul.mubr.bf16.gmra.mxu0 %v2831
      %v2902 = vpop.f32.mrf.mxu0
      %v2903 = vadd.f32 %v2758, %v2902
      %v2904 = vpop.f32.mrf.mxu0
      %v2905 = vpop.f32.mrf.mxu0
      %v2906 = vadd.f32 %v2761, %v2905
      %v2907 = vpop.f32.mrf.mxu0
      %2908 = vmatprep.mubr.bf16.mxu0 0
      %2909 = vmatmul.mubr.bf16.gmra.mxu0 %v2832
      %v2910 = vpop.f32.mrf.mxu0
      %v2911 = vadd.f32 %v2766, %v2910
      %v2912 = vpop.f32.mrf.mxu0
      %v2913 = vpop.f32.mrf.mxu0
      %v2914 = vadd.f32 %v2769, %v2913
      %v2915 = vpop.f32.mrf.mxu0
      %2916 = vmatprep.mubr.bf16.mxu0 0
      %2917 = vmatmul.mubr.bf16.gmra.mxu0 %v2833
      %v2918 = vpop.f32.mrf.mxu0
      %v2919 = vadd.f32 %v2774, %v2918
      %v2920 = vpop.f32.mrf.mxu0
      %v2921 = vpop.f32.mrf.mxu0
      %v2922 = vadd.f32 %v2777, %v2921
      %v2923 = vpop.f32.mrf.mxu0
      %2924 = vmatprep.mubr.bf16.mxu0 0
      %2925 = vmatmul.mubr.bf16.gmra.mxu0 %v2834
      %v2926 = vpop.f32.mrf.mxu0
      %v2927 = vadd.f32 %v2782, %v2926
      %v2928 = vpop.f32.mrf.mxu0
      %v2929 = vpop.f32.mrf.mxu0
      %v2930 = vadd.f32 %v2785, %v2929
      %v2931 = vpop.f32.mrf.mxu0
      %2932 = vmatprep.mubr.bf16.mxu0 0
      %2933 = vmatmul.mubr.bf16.gmra.mxu0 %v2835
      %v2934 = vpop.f32.mrf.mxu0
      %v2935 = vadd.f32 %v2790, %v2934
      %v2936 = vpop.f32.mrf.mxu0
      %v2937 = vpop.f32.mrf.mxu0
      %v2938 = vadd.f32 %v2793, %v2937
      %v2939 = vpop.f32.mrf.mxu0
      %2940 = vdwg.mxu0
      %v2941 = vmax.f32 %v2879, 0.0
      %v2942 = vmax.f32 %v2882, 0.0
      %v2943 = vmax.f32 %v2887, 0.0
      %v2944 = vmax.f32 %v2890, 0.0
      %v2945 = vmax.f32 %v2895, 0.0
      %v2946 = vmax.f32 %v2898, 0.0
      %v2947 = vmax.f32 %v2903, 0.0
      %v2948 = vmax.f32 %v2906, 0.0
      %v2949 = vmax.f32 %v2911, 0.0
      %v2950 = vmax.f32 %v2914, 0.0
      %v2951 = vmax.f32 %v2919, 0.0
      %v2952 = vmax.f32 %v2922, 0.0
      %v2953 = vmax.f32 %v2927, 0.0
      %v2954 = vmax.f32 %v2930, 0.0
      %v2955 = vmax.f32 %v2935, 0.0
      %v2956 = vmax.f32 %v2938, 0.0
      %2957 = vst [vmem:[#allocation2] sm:$0xff] %v2941
      %2958 = vst [vmem:[#allocation2 + $0x8] sm:$0xff] %v2942
      %2959 = vst [vmem:[#allocation2 + $0x10] sm:$0xff] %v2943
      %2960 = vst [vmem:[#allocation2 + $0x18] sm:$0xff] %v2944
      %2961 = vst [vmem:[#allocation2 + $0x20] sm:$0xff] %v2945
      %2962 = vst [vmem:[#allocation2 + $0x28] sm:$0xff] %v2946
      %2963 = vst [vmem:[#allocation2 + $0x30] sm:$0xff] %v2947
      %2964 = vst [vmem:[#allocation2 + $0x38] sm:$0xff] %v2948
      %2965 = vst [vmem:[#allocation2 + $0x40] sm:$0xff] %v2949
      %2966 = vst [vmem:[#allocation2 + $0x48] sm:$0xff] %v2950
      %2967 = vst [vmem:[#allocation2 + $0x50] sm:$0xff] %v2951
      %2968 = vst [vmem:[#allocation2 + $0x58] sm:$0xff] %v2952
      %2969 = vst [vmem:[#allocation2 + $0x60] sm:$0xff] %v2953
      %2970 = vst [vmem:[#allocation2 + $0x68] sm:$0xff] %v2954
      %2971 = vst [vmem:[#allocation2 + $0x70] sm:$0xff] %v2955
      %2972 = vst [vmem:[#allocation2 + $0x78] sm:$0xff] %v2956
      %p2973 = scmp.eq.s32.totalorder %s29, 1
      // Predicated region
      $region97: #{cnf_aag_encoder_forward.1} parent=91 // pred_check
        %p2974 = pneg %p2973
      $region98: #{cnf_aag_encoder_forward.1} parent=91 // pred_check_branch
        %2976 = sbr.rel (%p2974) target = $region100
      $region99: #{cnf_aag_encoder_forward.1} parent=91 // pred_region
        %2977 = vst [vmem:[%s18] sm:$0xff] %v2941
        %2978 = vst [vmem:[%s18 + $0x10] sm:$0xff] %v2942
        %2979 = vst [vmem:[%s18 + $0x20] sm:$0xff] %v2943
        %2980 = vst [vmem:[%s18 + $0x30] sm:$0xff] %v2944
        %2981 = vst [vmem:[%s18 + $0x40] sm:$0xff] %v2945
        %2982 = vst [vmem:[%s18 + $0x50] sm:$0xff] %v2946
        %2983 = vst [vmem:[%s18 + $0x60] sm:$0xff] %v2947
        %2984 = vst [vmem:[%s18 + $0x70] sm:$0xff] %v2948
        %2985 = vst [vmem:[%s18 + $0x80] sm:$0xff] %v2949
        %2986 = vst [vmem:[%s18 + $0x90] sm:$0xff] %v2950
        %2987 = vst [vmem:[%s18 + $0xa0] sm:$0xff] %v2951
        %2988 = vst [vmem:[%s18 + $0xb0] sm:$0xff] %v2952
        %2989 = vst [vmem:[%s18 + $0xc0] sm:$0xff] %v2953
        %2990 = vst [vmem:[%s18 + $0xd0] sm:$0xff] %v2954
        %2991 = vst [vmem:[%s18 + $0xe0] sm:$0xff] %v2955
        %2992 = vst [vmem:[%s18 + $0xf0] sm:$0xff] %v2956
        %2993 = vst [vmem:[%s18 + $0x8] sm:$0xff] %v2949
        %2994 = vst [vmem:[%s18 + $0x18] sm:$0xff] %v2950
        %2995 = vst [vmem:[%s18 + $0x28] sm:$0xff] %v2951
        %2996 = vst [vmem:[%s18 + $0x38] sm:$0xff] %v2952
        %2997 = vst [vmem:[%s18 + $0x48] sm:$0xff] %v2953
        %2998 = vst [vmem:[%s18 + $0x58] sm:$0xff] %v2954
        %2999 = vst [vmem:[%s18 + $0x68] sm:$0xff] %v2955
        %3000 = vst [vmem:[%s18 + $0x78] sm:$0xff] %v2956
        %3001 = vst [vmem:[%s18 + $0x88] sm:$0xff] %v2941
        %3002 = vst [vmem:[%s18 + $0x98] sm:$0xff] %v2942
        %3003 = vst [vmem:[%s18 + $0xa8] sm:$0xff] %v2943
        %3004 = vst [vmem:[%s18 + $0xb8] sm:$0xff] %v2944
        %3005 = vst [vmem:[%s18 + $0xc8] sm:$0xff] %v2945
        %3006 = vst [vmem:[%s18 + $0xd8] sm:$0xff] %v2946
        %3007 = vst [vmem:[%s18 + $0xe8] sm:$0xff] %v2947
        %3008 = vst [vmem:[%s18 + $0xf8] sm:$0xff] %v2948
      $region100: #{cnf_aag_encoder_forward.1} parent=91 // pred_fallthru
        _
      // Predicated region
      $region101: #{cnf_aag_encoder_forward.1} parent=91 // pred_check
        %p3009 = pneg %p480
      $region102: #{cnf_aag_encoder_forward.1} parent=91 // pred_check_branch
        %3011 = sbr.rel (%p3009) target = $region104
      $region103: #{cnf_aag_encoder_forward.1} parent=91 // pred_region
        _
      $region104: #{cnf_aag_encoder_forward.1} parent=91 // pred_fallthru
        _
      // Predicated region
      $region105: #{cnf_aag_encoder_forward.1} parent=91 // pred_check
        %p3012 = pneg %p480
      $region106: #{cnf_aag_encoder_forward.1} parent=91 // pred_check_branch
        %3014 = sbr.rel (%p3012) target = $region108
      $region107: #{cnf_aag_encoder_forward.1} parent=91 // pred_region
        _
      $region108: #{cnf_aag_encoder_forward.1} parent=91 // pred_fallthru
        _
    $region92: #{cnf_aag_encoder_forward.1} parent=5 // pred_fallthru
      _
    %p3015 = scmp.le.s32.totalorder 2, %s24
    // Predicated region
    $region109: #{cnf_aag_encoder_forward.1} parent=5 // pred_check
      %p3016 = pneg %p3015
    $region110: #{cnf_aag_encoder_forward.1} parent=5 // pred_check_branch
      %3018 = sbr.rel (%p3016) target = $region112
    $region111: #{cnf_aag_encoder_forward.1} parent=5 // pred_region
      %s3019 = ssub.s32 %s24, 2
    $region112: #{cnf_aag_encoder_forward.1} parent=5 // pred_fallthru
      _
  $region6: #{cnf_aag_encoder_forward.1} parent=0 // loop_footer
    %s28 = sadd.s32 1, %s24
  $region7: #{cnf_aag_encoder_forward.1} parent=0 // loop_footer_branch
    %23 = sbr.rel target = $region3
  $region8: #{cnf_aag_encoder_forward.1} parent=0 // loop_exit
    _

</llo_original>
